<compile_context>
chip_gen: v5e
topology: v5e:2x2
jax: 0.10.0
libtpu: 0.0.40
codegen_flags: <defaults>
</compile_context>

<pallas_src>
import functools
import math

import jax
import jax.numpy as jnp
from jax.experimental import pallas as pl
from jax.experimental.pallas import tpu as pltpu

# --------------------------------------------------------------------------
# "args" of the original module (chosen small, deterministic)
# --------------------------------------------------------------------------
ARGS = dict(
    vocabularySize=64,
    embeddingSize=32,
    hiddenSize=32,
    nhead=2,
    numLayers=1,
    batchSize=2,
    maxLengthDeco=8,
    dim_feedforward=2048,   # PyTorch nn.TransformerEncoderLayer default
)

VOCAB_PAD = 128  # lane-dense padded vocab for the output projection / CE
NEG_INF = -1e9   # finite "minus infinity" (assumes |real logits| << 1e9)


# --------------------------------------------------------------------------
# In-kernel math helpers (traced inside the fused kernel)
# --------------------------------------------------------------------------
def _ln(x, g, b):
    """LayerNorm over last dim, eps=1e-5 (PyTorch default). x:[N,E] f32."""
    mu = jnp.mean(x, axis=-1, keepdims=True)
    d = x - mu
    var = jnp.mean(d * d, axis=-1, keepdims=True)
    return d * jax.lax.rsqrt(var + 1e-5) * g + b


def _head_attn(q, k, v, scale, mask):
    """Single-head attention on the folded batch slab.

    q:[Nq,Dh], k,v:[Nk,Dh] f32; mask:[Nq,Nk] additive (block-diag / causal).
    """
    s = jax.lax.dot_general(q, k, (((1,), (1,)), ((), ())),
                            preferred_element_type=jnp.float32) * scale
    s = s + mask
    s = s - jnp.max(s, axis=-1, keepdims=True)
    p = jnp.exp(s)
    p = p * pl.reciprocal(jnp.sum(p, axis=-1, keepdims=True), approx=True)
    return jnp.dot(p, v, preferred_element_type=jnp.float32)


def _mha_slab(x, wqkv, bqkv, wo, bo, nhead, mask):
    """Fused self-attention on the whole [B*S, E] slab.

    Heads are handled with a tiny static loop; each head's output is folded
    straight through its row-slice of wo (no jnp.concatenate / lane relayout).
    """
    _, E = x.shape
    Dh = E // nhead
    scale = 1.0 / math.sqrt(Dh)
    qkv = jnp.dot(x.astype(jnp.bfloat16), wqkv,
                  preferred_element_type=jnp.float32) + bqkv          # [N, 3E]
    out = None
    for h in range(nhead):                                            # static
        q = qkv[:, h * Dh:(h + 1) * Dh]
        k = qkv[:, E + h * Dh:E + (h + 1) * Dh]
        v = qkv[:, 2 * E + h * Dh:2 * E + (h + 1) * Dh]
        o_h = _head_attn(q, k, v, scale, mask)                        # [N, Dh]
        proj = jnp.dot(o_h.astype(jnp.bfloat16), wo[h * Dh:(h + 1) * Dh, :],
                       preferred_element_type=jnp.float32)
        out = proj if out is None else out + proj
    return out + bo


def _cross_mha_slab(x, mem, wq, bq, wkv, bkv, wo, bo, nhead, mask):
    """Fused cross-attention: x:[B*Sd,E], mem:[B*Se,E]; block-diag mask."""
    _, E = x.shape
    Dh = E // nhead
    scale = 1.0 / math.sqrt(Dh)
    q = jnp.dot(x.astype(jnp.bfloat16), wq,
                preferred_element_type=jnp.float32) + bq              # [Nd, E]
    kv = jnp.dot(mem.astype(jnp.bfloat16), wkv,
                 preferred_element_type=jnp.float32) + bkv            # [Ne, 2E]
    out = None
    for h in range(nhead):
        qh = q[:, h * Dh:(h + 1) * Dh]
        kh = kv[:, h * Dh:(h + 1) * Dh]
        vh = kv[:, E + h * Dh:E + (h + 1) * Dh]
        o_h = _head_attn(qh, kh, vh, scale, mask)
        proj = jnp.dot(o_h.astype(jnp.bfloat16), wo[h * Dh:(h + 1) * Dh, :],
                       preferred_element_type=jnp.float32)
        out = proj if out is None else out + proj
    return out + bo


def _ffn(h, w1, b1, w2, b2):
    f = jnp.dot(h.astype(jnp.bfloat16), w1,
                preferred_element_type=jnp.float32) + b1
    f = jnp.maximum(f, 0.0)                          # ReLU (PyTorch default)
    return jnp.dot(f.astype(jnp.bfloat16), w2,
                   preferred_element_type=jnp.float32) + b2


# --------------------------------------------------------------------------
# The single fused forward-pass kernel (no grid: one invocation, all VMEM)
# --------------------------------------------------------------------------
def _fused_forward_kernel(
        # encoder inputs
        x_enc_ref, enc_mask_ref,
        e_wqkv, e_bqkv, e_wo, e_bo, e_ln1g, e_ln1b,
        e_w1, e_b1, e_w2, e_b2, e_ln2g, e_ln2b,
        # decoder inputs
        x_dec_ref, dmask_ref, xmask_ref,
        d_swqkv, d_sbqkv, d_swo, d_sbo, d_ln1g, d_ln1b,
        d_cwq, d_cbq, d_cwkv, d_cbkv, d_cwo, d_cbo, d_ln2g, d_ln2b,
        d_w1, d_b1, d_w2, d_b2, d_ln3g, d_ln3b,
        # output projection / CE inputs
        out_w, out_b, tgt_ref,
        # outputs
        logits_ref, enc_out_ref, stats_ref,
        *, L, nhead, B, Sd):
    # ----- encoder layer stack (weights stay resident in VMEM) -----
    x = x_enc_ref[...]                                  # [B*Se, E] f32
    enc_mask = enc_mask_ref[...]
    for l in range(L):                                  # static unroll
        a = _mha_slab(x, e_wqkv[l], e_bqkv[l], e_wo[l], e_bo[l], nhead, enc_mask)
        h = _ln(x + a, e_ln1g[l], e_ln1b[l])
        f = _ffn(h, e_w1[l], e_b1[l], e_w2[l], e_b2[l])
        x = _ln(h + f, e_ln2g[l], e_ln2b[l])
    enc_out_ref[...] = x
    mem = x

    # ----- decoder layer stack -----
    y = x_dec_ref[...]                                  # [B*Sd, E] f32
    dmask = dmask_ref[...]
    xmask = xmask_ref[...]
    for l in range(L):
        a = _mha_slab(y, d_swqkv[l], d_sbqkv[l], d_swo[l], d_sbo[l], nhead, dmask)
        h = _ln(y + a, d_ln1g[l], d_ln1b[l])
        c = _cross_mha_slab(h, mem, d_cwq[l], d_cbq[l], d_cwkv[l], d_cbkv[l],
                            d_cwo[l], d_cbo[l], nhead, xmask)
        h = _ln(h + c, d_ln2g[l], d_ln2b[l])
        f = _ffn(h, d_w1[l], d_b1[l], d_w2[l], d_b2[l])
        y = _ln(h + f, d_ln3g[l], d_ln3b[l])

    # ----- output projection + CE + pad-masked reductions -----
    # Padded vocab columns already carry NEG_INF via the bias -> no iota mask.
    logits = jnp.dot(y.astype(jnp.bfloat16), out_w[...],
                     preferred_element_type=jnp.float32) + out_b[...]  # [B*Sd, Vp]
    logits_ref[...] = logits                                           # lane-dense 128

    m = jnp.max(logits, axis=-1, keepdims=True)
    lse = jnp.log(jnp.sum(jnp.exp(logits - m), axis=-1, keepdims=True)) + m

    tgt = tgt_ref[...]                                                 # [B*Sd,1] int32
    col = jax.lax.broadcasted_iota(jnp.int32, logits.shape, 1)
    tgt_logit = jnp.sum(jnp.where(col == tgt, logits, 0.0),
                        axis=-1, keepdims=True)
    ce = lse - tgt_logit                                               # [B*Sd, 1]

    pad = (tgt != 0).astype(jnp.float32)                               # sign(targets)
    masked = ce * pad

    # per-batch segment sums via a tiny [B, B*Sd] matmul (no int division)
    Nd = B * Sd
    i = jax.lax.broadcasted_iota(jnp.int32, (B, Nd), 1)
    b = jax.lax.broadcasted_iota(jnp.int32, (B, Nd), 0)
    seg = ((i >= b * Sd) & (i < (b + 1) * Sd)).astype(jnp.float32)     # [B, B*Sd]
    total = jnp.dot(seg, masked, preferred_element_type=jnp.float32)   # [B, 1]
    msum = jnp.dot(seg, pad, preferred_element_type=jnp.float32)       # [B, 1]

    loss = total / jnp.float32(Sd)              # torch.mean over full dec_len
    tmean = total / jnp.maximum(msum, 1.0)      # masked mean (NaN-guarded)
    stats_ref[...] = jnp.concatenate([loss, tmean], axis=-1)           # [B, 2]


# --------------------------------------------------------------------------
# Wrapper: embedding + masks (XLA) -> one pallas_call
# --------------------------------------------------------------------------
def _block_mask(B, Sq, Sk, causal):
    """Block-diagonal additive mask over the folded batch slab (f32)."""
    qi = jnp.arange(B * Sq)
    ki = jnp.arange(B * Sk)
    ok = (qi[:, None] // Sq) == (ki[None, :] // Sk)
    if causal:   # generate_square_subsequent_mask within each batch block
        ok = ok & ((qi[:, None] % Sq) >= (ki[None, :] % Sk))
    return jnp.where(ok, 0.0, NEG_INF).astype(jnp.float32)


def translation_model_forward(params, enc_input, dec_input, dec_target):
    B, Se = enc_input.shape
    Sd = dec_input.shape[1]
    H = ARGS['nhead']
    V = ARGS['vocabularySize']
    enc = params['enc']
    dec = params['dec']
    L = enc['wqkv'].shape[0]
    E = params['embedding'].shape[1]
    Vp = params['out_w'].shape[1]

    # embeddings (XLA gather), folded to [B*S, E] row slabs
    enc_embed = jnp.take(params['embedding'], enc_input, axis=0).reshape(B * Se, E)
    dec_embed = jnp.take(params['embedding'], dec_input, axis=0).reshape(B * Sd, E)

    # block-diagonal additive masks (decoder self-attn is also causal)
    enc_mask = _block_mask(B, Se, Se, causal=False)
    dec_mask = _block_mask(B, Sd, Sd, causal=True)
    xmask = _block_mask(B, Sd, Se, causal=False)

    kernel = functools.partial(_fused_forward_kernel, L=L, nhead=H, B=B, Sd=Sd)
    logits_pad, enc_out, stats = pl.pallas_call(
        kernel,
        out_shape=(jax.ShapeDtypeStruct((B * Sd, Vp), jnp.float32),
                   jax.ShapeDtypeStruct((B * Se, E), jnp.float32),
                   jax.ShapeDtypeStruct((B, 2), jnp.float32)),
        compiler_params=pltpu.CompilerParams(vmem_limit_bytes=32 * 1024 * 1024),
    )(enc_embed, enc_mask,
      enc['wqkv'], enc['bqkv'], enc['wo'], enc['bo'], enc['ln1_g'], enc['ln1_b'],
      enc['w1'], enc['b1'], enc['w2'], enc['b2'], enc['ln2_g'], enc['ln2_b'],
      dec_embed, dec_mask, xmask,
      dec['swqkv'], dec['sbqkv'], dec['swo'], dec['sbo'], dec['ln1_g'], dec['ln1_b'],
      dec['cwq'], dec['cbq'], dec['cwkv'], dec['cbkv'], dec['cwo'], dec['cbo'],
      dec['ln2_g'], dec['ln2_b'],
      dec['w1'], dec['b1'], dec['w2'], dec['b2'], dec['ln3_g'], dec['ln3_b'],
      params['out_w'], params['out_b'],
      dec_target.astype(jnp.int32).reshape(B * Sd, 1))

    de_outputs = logits_pad.reshape(B, Sd, Vp)[:, :, :V]
    return {'de_outputs': de_outputs,
            'loss': stats[:, 0],
            'true_mean': stats[:, 1],
            'enc_output': enc_out.reshape(B, Se, E)}


# --------------------------------------------------------------------------
# Deterministic parameter initialization (synthetic); layer weights stacked
# along a leading L axis so the fused kernel loops layers statically.
# --------------------------------------------------------------------------
def init_params(key, cfg):
    E = cfg['embeddingSize']
    V = cfg['vocabularySize']
    F = cfg['dim_feedforward']
    L = cfg['numLayers']
    Vp = max(VOCAB_PAD, ((V + 127) // 128) * 128)
    kit = iter(jax.random.split(key, 1024))

    def w(shape, scale=0.02, dtype=jnp.bfloat16):
        return (scale * jax.random.normal(next(kit), shape, jnp.float32)).astype(dtype)

    def zeros(shape):
        return jnp.zeros(shape, jnp.float32)

    def ones(shape):
        return jnp.ones(shape, jnp.float32)

    enc = dict(wqkv=w((L, E, 3 * E)), bqkv=zeros((L, 1, 3 * E)),
               wo=w((L, E, E)), bo=zeros((L, 1, E)),
               ln1_g=ones((L, 1, E)), ln1_b=zeros((L, 1, E)),
               w1=w((L, E, F)), b1=zeros((L, 1, F)),
               w2=w((L, F, E)), b2=zeros((L, 1, E)),
               ln2_g=ones((L, 1, E)), ln2_b=zeros((L, 1, E)))

    dec = dict(swqkv=w((L, E, 3 * E)), sbqkv=zeros((L, 1, 3 * E)),
               swo=w((L, E, E)), sbo=zeros((L, 1, E)),
               ln1_g=ones((L, 1, E)), ln1_b=zeros((L, 1, E)),
               cwq=w((L, E, E)), cbq=zeros((L, 1, E)),
               cwkv=w((L, E, 2 * E)), cbkv=zeros((L, 1, 2 * E)),
               cwo=w((L, E, E)), cbo=zeros((L, 1, E)),
               ln2_g=ones((L, 1, E)), ln2_b=zeros((L, 1, E)),
               w1=w((L, E, F)), b1=zeros((L, 1, F)),
               w2=w((L, F, E)), b2=zeros((L, 1, E)),
               ln3_g=ones((L, 1, E)), ln3_b=zeros((L, 1, E)))

    # output projection padded to lane-dense Vp=128; the pad mask is baked
    # into the bias (NEG_INF) so the CE kernel needs no column masking.
    out_w = jnp.zeros((E, Vp), jnp.bfloat16).at[:, :V].set(w((E, V)))
    out_b = jnp.full((1, Vp), NEG_INF, jnp.float32).at[:, :V].set(0.0)

    return dict(embedding=jax.random.normal(next(kit), (V, E), jnp.float32),
                enc=enc, dec=dec, out_w=out_w, out_b=out_b)


# --------------------------------------------------------------------------
if __name__ == "__main__":
    key = jax.random.PRNGKey(0)
    pkey, dkey = jax.random.split(key)
    params = init_params(pkey, ARGS)

    B = ARGS['batchSize']
    Se = 8
    Sd = ARGS['maxLengthDeco']
    V = ARGS['vocabularySize']
    E = ARGS['embeddingSize']

    k1, k2, k3 = jax.random.split(dkey, 3)
    enc_input = jax.random.randint(k1, (B, Se), 1, V)
    dec_input = jax.random.randint(k2, (B, Sd), 1, V)
    dec_target = jax.random.randint(k3, (B, Sd), 1, V)
    dec_target = dec_target.at[:, -2:].set(0)   # padding -> exercised by sign() mask

    fwd = jax.jit(translation_model_forward)
    data = fwd(params, enc_input, dec_input, dec_target)
    jax.block_until_ready(data)

    assert data['de_outputs'].shape == (B, Sd, V)
    assert data['loss'].shape == (B,)
    assert data['true_mean'].shape == (B,)
    assert data['enc_output'].shape == (B, Se, E)
    assert bool(jnp.all(jnp.isfinite(data['de_outputs'])))
    assert bool(jnp.all(jnp.isfinite(data['loss'])))
    assert bool(jnp.all(jnp.isfinite(data['true_mean'])))
    print("KERNEL_OK")
</pallas_src>

<mosaic_0001>
module attributes {stable_mosaic.version = 11 : i64} {
  func.func @_fused_forward_kernel(%arg0: memref<16x32xf32, #tpu.memory_space<vmem>>, %arg1: memref<16x16xf32, #tpu.memory_space<vmem>>, %arg2: memref<1x32x96xbf16, #tpu.memory_space<vmem>>, %arg3: memref<1x1x96xf32, #tpu.memory_space<vmem>>, %arg4: memref<1x32x32xbf16, #tpu.memory_space<vmem>>, %arg5: memref<1x1x32xf32, #tpu.memory_space<vmem>>, %arg6: memref<1x1x32xf32, #tpu.memory_space<vmem>>, %arg7: memref<1x1x32xf32, #tpu.memory_space<vmem>>, %arg8: memref<1x32x2048xbf16, #tpu.memory_space<vmem>>, %arg9: memref<1x1x2048xf32, #tpu.memory_space<vmem>>, %arg10: memref<1x2048x32xbf16, #tpu.memory_space<vmem>>, %arg11: memref<1x1x32xf32, #tpu.memory_space<vmem>>, %arg12: memref<1x1x32xf32, #tpu.memory_space<vmem>>, %arg13: memref<1x1x32xf32, #tpu.memory_space<vmem>>, %arg14: memref<16x32xf32, #tpu.memory_space<vmem>>, %arg15: memref<16x16xf32, #tpu.memory_space<vmem>>, %arg16: memref<16x16xf32, #tpu.memory_space<vmem>>, %arg17: memref<1x32x96xbf16, #tpu.memory_space<vmem>>, %arg18: memref<1x1x96xf32, #tpu.memory_space<vmem>>, %arg19: memref<1x32x32xbf16, #tpu.memory_space<vmem>>, %arg20: memref<1x1x32xf32, #tpu.memory_space<vmem>>, %arg21: memref<1x1x32xf32, #tpu.memory_space<vmem>>, %arg22: memref<1x1x32xf32, #tpu.memory_space<vmem>>, %arg23: memref<1x32x32xbf16, #tpu.memory_space<vmem>>, %arg24: memref<1x1x32xf32, #tpu.memory_space<vmem>>, %arg25: memref<1x32x64xbf16, #tpu.memory_space<vmem>>, %arg26: memref<1x1x64xf32, #tpu.memory_space<vmem>>, %arg27: memref<1x32x32xbf16, #tpu.memory_space<vmem>>, %arg28: memref<1x1x32xf32, #tpu.memory_space<vmem>>, %arg29: memref<1x1x32xf32, #tpu.memory_space<vmem>>, %arg30: memref<1x1x32xf32, #tpu.memory_space<vmem>>, %arg31: memref<1x32x2048xbf16, #tpu.memory_space<vmem>>, %arg32: memref<1x1x2048xf32, #tpu.memory_space<vmem>>, %arg33: memref<1x2048x32xbf16, #tpu.memory_space<vmem>>, %arg34: memref<1x1x32xf32, #tpu.memory_space<vmem>>, %arg35: memref<1x1x32xf32, #tpu.memory_space<vmem>>, %arg36: memref<1x1x32xf32, #tpu.memory_space<vmem>>, %arg37: memref<32x128xbf16, #tpu.memory_space<vmem>>, %arg38: memref<1x128xf32, #tpu.memory_space<vmem>>, %arg39: memref<16x1xi32, #tpu.memory_space<vmem>>, %arg40: memref<16x128xf32, #tpu.memory_space<vmem>>, %arg41: memref<16x32xf32, #tpu.memory_space<vmem>>, %arg42: memref<2x2xf32, #tpu.memory_space<vmem>>) attributes {dimension_semantics = [], scalar_prefetch = 0 : i64, scratch_operands = 0 : i64, tpu.core_type = #tpu.core_type<tc>} {
    %c0 = arith.constant 0 : index
    %c0_0 = arith.constant 0 : index
    %0 = vector.load %arg0[%c0, %c0_0] : memref<16x32xf32, #tpu.memory_space<vmem>>, vector<16x32xf32>
    %c0_1 = arith.constant 0 : index
    %c0_2 = arith.constant 0 : index
    %1 = vector.load %arg1[%c0_1, %c0_2] : memref<16x16xf32, #tpu.memory_space<vmem>>, vector<16x16xf32>
    %c0_3 = arith.constant 0 : index
    %c0_4 = arith.constant 0 : index
    %c0_5 = arith.constant 0 : index
    %2 = vector.load %arg2[%c0_3, %c0_4, %c0_5] : memref<1x32x96xbf16, #tpu.memory_space<vmem>>, vector<1x32x96xbf16>
    %3 = vector.shape_cast %2 : vector<1x32x96xbf16> to vector<32x96xbf16>
    %c0_6 = arith.constant 0 : index
    %c0_7 = arith.constant 0 : index
    %c0_8 = arith.constant 0 : index
    %4 = vector.load %arg3[%c0_6, %c0_7, %c0_8] : memref<1x1x96xf32, #tpu.memory_space<vmem>>, vector<1x1x96xf32>
    %5 = vector.shape_cast %4 : vector<1x1x96xf32> to vector<1x96xf32>
    %c0_9 = arith.constant 0 : index
    %c0_10 = arith.constant 0 : index
    %c0_11 = arith.constant 0 : index
    %6 = vector.load %arg4[%c0_9, %c0_10, %c0_11] : memref<1x32x32xbf16, #tpu.memory_space<vmem>>, vector<1x32x32xbf16>
    %7 = vector.shape_cast %6 : vector<1x32x32xbf16> to vector<32x32xbf16>
    %c0_12 = arith.constant 0 : index
    %c0_13 = arith.constant 0 : index
    %c0_14 = arith.constant 0 : index
    %8 = vector.load %arg5[%c0_12, %c0_13, %c0_14] : memref<1x1x32xf32, #tpu.memory_space<vmem>>, vector<1x1x32xf32>
    %9 = vector.shape_cast %8 : vector<1x1x32xf32> to vector<1x32xf32>
    %10 = arith.truncf %0 : vector<16x32xf32> to vector<16x32xbf16>
    %cst = arith.constant dense<0.000000e+00> : vector<16x96xf32>
    %11 = tpu.matmul %10, %3, %cst {dimension_numbers = #tpu.dot_dimension_numbers<[1], [0], [0], [1], [0, 0, 1, 1], [], []>} : vector<16x32xbf16>, vector<32x96xbf16>, vector<16x96xf32> -> vector<16x96xf32>
    %12 = vector.broadcast %5 : vector<1x96xf32> to vector<16x96xf32>
    %13 = arith.addf %11, %12 : vector<16x96xf32>
    %14 = vector.extract_strided_slice %13 {offsets = [0, 0], sizes = [16, 16], strides = [1, 1]} : vector<16x96xf32> to vector<16x16xf32>
    %15 = vector.extract_strided_slice %13 {offsets = [0, 32], sizes = [16, 16], strides = [1, 1]} : vector<16x96xf32> to vector<16x16xf32>
    %16 = vector.extract_strided_slice %13 {offsets = [0, 64], sizes = [16, 16], strides = [1, 1]} : vector<16x96xf32> to vector<16x16xf32>
    %cst_15 = arith.constant dense<0.000000e+00> : vector<16x16xf32>
    %17 = tpu.matmul %14, %15, %cst_15 {dimension_numbers = #tpu.dot_dimension_numbers<[1], [1], [0], [0], [0, 0, 1, 0], [], []>} : vector<16x16xf32>, vector<16x16xf32>, vector<16x16xf32> -> vector<16x16xf32>
    %cst_16 = arith.constant 2.500000e-01 : f32
    %18 = vector.broadcast %cst_16 : f32 to vector<16x16xf32>
    %19 = arith.mulf %17, %18 : vector<16x16xf32>
    %20 = arith.addf %19, %1 : vector<16x16xf32>
    %cst_17 = arith.constant dense<0xFF800000> : vector<16xf32>
    %21 = vector.multi_reduction <maximumf>, %20, %cst_17 [1] : vector<16x16xf32> to vector<16xf32>
    %22 = vector.shape_cast %21 : vector<16xf32> to vector<16x1xf32>
    %23 = vector.broadcast %22 : vector<16x1xf32> to vector<16x16xf32>
    %24 = arith.subf %20, %23 : vector<16x16xf32>
    %25 = math.exp %24 : vector<16x16xf32>
    %cst_18 = arith.constant dense<0.000000e+00> : vector<16xf32>
    %26 = vector.multi_reduction <add>, %25, %cst_18 [1] : vector<16x16xf32> to vector<16xf32>
    %27 = vector.shape_cast %26 : vector<16xf32> to vector<16x1xf32>
    %28 = tpu.reciprocal %27 {approx = true} : vector<16x1xf32> -> vector<16x1xf32>
    %29 = vector.broadcast %28 : vector<16x1xf32> to vector<16x16xf32>
    %30 = arith.mulf %25, %29 : vector<16x16xf32>
    %cst_19 = arith.constant dense<0.000000e+00> : vector<16x16xf32>
    %31 = tpu.matmul %30, %16, %cst_19 {dimension_numbers = #tpu.dot_dimension_numbers<[1], [0], [0], [1], [0, 0, 1, 1], [], []>} : vector<16x16xf32>, vector<16x16xf32>, vector<16x16xf32> -> vector<16x16xf32>
    %32 = arith.truncf %31 : vector<16x16xf32> to vector<16x16xbf16>
    %33 = vector.extract_strided_slice %7 {offsets = [0, 0], sizes = [16, 32], strides = [1, 1]} : vector<32x32xbf16> to vector<16x32xbf16>
    %cst_20 = arith.constant dense<0.000000e+00> : vector<16x32xf32>
    %34 = tpu.matmul %32, %33, %cst_20 {dimension_numbers = #tpu.dot_dimension_numbers<[1], [0], [0], [1], [0, 0, 1, 1], [], []>} : vector<16x16xbf16>, vector<16x32xbf16>, vector<16x32xf32> -> vector<16x32xf32>
    %35 = vector.extract_strided_slice %13 {offsets = [0, 16], sizes = [16, 16], strides = [1, 1]} : vector<16x96xf32> to vector<16x16xf32>
    %36 = vector.extract_strided_slice %13 {offsets = [0, 48], sizes = [16, 16], strides = [1, 1]} : vector<16x96xf32> to vector<16x16xf32>
    %37 = vector.extract_strided_slice %13 {offsets = [0, 80], sizes = [16, 16], strides = [1, 1]} : vector<16x96xf32> to vector<16x16xf32>
    %cst_21 = arith.constant dense<0.000000e+00> : vector<16x16xf32>
    %38 = tpu.matmul %35, %36, %cst_21 {dimension_numbers = #tpu.dot_dimension_numbers<[1], [1], [0], [0], [0, 0, 1, 0], [], []>} : vector<16x16xf32>, vector<16x16xf32>, vector<16x16xf32> -> vector<16x16xf32>
    %cst_22 = arith.constant 2.500000e-01 : f32
    %39 = vector.broadcast %cst_22 : f32 to vector<16x16xf32>
    %40 = arith.mulf %38, %39 : vector<16x16xf32>
    %41 = arith.addf %40, %1 : vector<16x16xf32>
    %cst_23 = arith.constant dense<0xFF800000> : vector<16xf32>
    %42 = vector.multi_reduction <maximumf>, %41, %cst_23 [1] : vector<16x16xf32> to vector<16xf32>
    %43 = vector.shape_cast %42 : vector<16xf32> to vector<16x1xf32>
    %44 = vector.broadcast %43 : vector<16x1xf32> to vector<16x16xf32>
    %45 = arith.subf %41, %44 : vector<16x16xf32>
    %46 = math.exp %45 : vector<16x16xf32>
    %cst_24 = arith.constant dense<0.000000e+00> : vector<16xf32>
    %47 = vector.multi_reduction <add>, %46, %cst_24 [1] : vector<16x16xf32> to vector<16xf32>
    %48 = vector.shape_cast %47 : vector<16xf32> to vector<16x1xf32>
    %49 = tpu.reciprocal %48 {approx = true} : vector<16x1xf32> -> vector<16x1xf32>
    %50 = vector.broadcast %49 : vector<16x1xf32> to vector<16x16xf32>
    %51 = arith.mulf %46, %50 : vector<16x16xf32>
    %cst_25 = arith.constant dense<0.000000e+00> : vector<16x16xf32>
    %52 = tpu.matmul %51, %37, %cst_25 {dimension_numbers = #tpu.dot_dimension_numbers<[1], [0], [0], [1], [0, 0, 1, 1], [], []>} : vector<16x16xf32>, vector<16x16xf32>, vector<16x16xf32> -> vector<16x16xf32>
    %53 = arith.truncf %52 : vector<16x16xf32> to vector<16x16xbf16>
    %54 = vector.extract_strided_slice %7 {offsets = [16, 0], sizes = [16, 32], strides = [1, 1]} : vector<32x32xbf16> to vector<16x32xbf16>
    %cst_26 = arith.constant dense<0.000000e+00> : vector<16x32xf32>
    %55 = tpu.matmul %53, %54, %cst_26 {dimension_numbers = #tpu.dot_dimension_numbers<[1], [0], [0], [1], [0, 0, 1, 1], [], []>} : vector<16x16xbf16>, vector<16x32xbf16>, vector<16x32xf32> -> vector<16x32xf32>
    %56 = arith.addf %34, %55 : vector<16x32xf32>
    %57 = vector.broadcast %9 : vector<1x32xf32> to vector<16x32xf32>
    %58 = arith.addf %56, %57 : vector<16x32xf32>
    %59 = arith.addf %0, %58 : vector<16x32xf32>
    %c0_27 = arith.constant 0 : index
    %c0_28 = arith.constant 0 : index
    %c0_29 = arith.constant 0 : index
    %60 = vector.load %arg6[%c0_27, %c0_28, %c0_29] : memref<1x1x32xf32, #tpu.memory_space<vmem>>, vector<1x1x32xf32>
    %61 = vector.shape_cast %60 : vector<1x1x32xf32> to vector<1x32xf32>
    %c0_30 = arith.constant 0 : index
    %c0_31 = arith.constant 0 : index
    %c0_32 = arith.constant 0 : index
    %62 = vector.load %arg7[%c0_30, %c0_31, %c0_32] : memref<1x1x32xf32, #tpu.memory_space<vmem>>, vector<1x1x32xf32>
    %63 = vector.shape_cast %62 : vector<1x1x32xf32> to vector<1x32xf32>
    %cst_33 = arith.constant dense<0.000000e+00> : vector<16xf32>
    %64 = vector.multi_reduction <add>, %59, %cst_33 [1] : vector<16x32xf32> to vector<16xf32>
    %65 = vector.shape_cast %64 : vector<16xf32> to vector<16x1xf32>
    %cst_34 = arith.constant 3.200000e+01 : f32
    %66 = vector.broadcast %cst_34 : f32 to vector<16x1xf32>
    %67 = arith.divf %65, %66 : vector<16x1xf32>
    %68 = vector.broadcast %67 : vector<16x1xf32> to vector<16x32xf32>
    %69 = arith.subf %59, %68 : vector<16x32xf32>
    %70 = arith.mulf %69, %69 : vector<16x32xf32>
    %cst_35 = arith.constant dense<0.000000e+00> : vector<16xf32>
    %71 = vector.multi_reduction <add>, %70, %cst_35 [1] : vector<16x32xf32> to vector<16xf32>
    %72 = vector.shape_cast %71 : vector<16xf32> to vector<16x1xf32>
    %cst_36 = arith.constant 3.200000e+01 : f32
    %73 = vector.broadcast %cst_36 : f32 to vector<16x1xf32>
    %74 = arith.divf %72, %73 : vector<16x1xf32>
    %cst_37 = arith.constant 9.99999974E-6 : f32
    %75 = vector.broadcast %cst_37 : f32 to vector<16x1xf32>
    %76 = arith.addf %74, %75 : vector<16x1xf32>
    %77 = math.rsqrt %76 : vector<16x1xf32>
    %78 = vector.broadcast %77 : vector<16x1xf32> to vector<16x32xf32>
    %79 = arith.mulf %69, %78 : vector<16x32xf32>
    %80 = vector.broadcast %61 : vector<1x32xf32> to vector<16x32xf32>
    %81 = arith.mulf %79, %80 : vector<16x32xf32>
    %82 = vector.broadcast %63 : vector<1x32xf32> to vector<16x32xf32>
    %83 = arith.addf %81, %82 : vector<16x32xf32>
    %c0_38 = arith.constant 0 : index
    %c0_39 = arith.constant 0 : index
    %c0_40 = arith.constant 0 : index
    %84 = vector.load %arg8[%c0_38, %c0_39, %c0_40] : memref<1x32x2048xbf16, #tpu.memory_space<vmem>>, vector<1x32x2048xbf16>
    %85 = vector.shape_cast %84 : vector<1x32x2048xbf16> to vector<32x2048xbf16>
    %c0_41 = arith.constant 0 : index
    %c0_42 = arith.constant 0 : index
    %c0_43 = arith.constant 0 : index
    %86 = vector.load %arg9[%c0_41, %c0_42, %c0_43] : memref<1x1x2048xf32, #tpu.memory_space<vmem>>, vector<1x1x2048xf32>
    %87 = vector.shape_cast %86 : vector<1x1x2048xf32> to vector<1x2048xf32>
    %c0_44 = arith.constant 0 : index
    %c0_45 = arith.constant 0 : index
    %c0_46 = arith.constant 0 : index
    %88 = vector.load %arg10[%c0_44, %c0_45, %c0_46] : memref<1x2048x32xbf16, #tpu.memory_space<vmem>>, vector<1x2048x32xbf16>
    %89 = vector.shape_cast %88 : vector<1x2048x32xbf16> to vector<2048x32xbf16>
    %c0_47 = arith.constant 0 : index
    %c0_48 = arith.constant 0 : index
    %c0_49 = arith.constant 0 : index
    %90 = vector.load %arg11[%c0_47, %c0_48, %c0_49] : memref<1x1x32xf32, #tpu.memory_space<vmem>>, vector<1x1x32xf32>
    %91 = vector.shape_cast %90 : vector<1x1x32xf32> to vector<1x32xf32>
    %92 = arith.truncf %83 : vector<16x32xf32> to vector<16x32xbf16>
    %cst_50 = arith.constant dense<0.000000e+00> : vector<16x2048xf32>
    %93 = tpu.matmul %92, %85, %cst_50 {dimension_numbers = #tpu.dot_dimension_numbers<[1], [0], [0], [1], [0, 0, 1, 1], [], []>} : vector<16x32xbf16>, vector<32x2048xbf16>, vector<16x2048xf32> -> vector<16x2048xf32>
    %94 = vector.broadcast %87 : vector<1x2048xf32> to vector<16x2048xf32>
    %95 = arith.addf %93, %94 : vector<16x2048xf32>
    %cst_51 = arith.constant 0.000000e+00 : f32
    %96 = vector.broadcast %cst_51 : f32 to vector<16x2048xf32>
    %97 = arith.maximumf %95, %96 : vector<16x2048xf32>
    %98 = arith.truncf %97 : vector<16x2048xf32> to vector<16x2048xbf16>
    %cst_52 = arith.constant dense<0.000000e+00> : vector<16x32xf32>
    %99 = tpu.matmul %98, %89, %cst_52 {dimension_numbers = #tpu.dot_dimension_numbers<[1], [0], [0], [1], [0, 0, 1, 1], [], []>} : vector<16x2048xbf16>, vector<2048x32xbf16>, vector<16x32xf32> -> vector<16x32xf32>
    %100 = vector.broadcast %91 : vector<1x32xf32> to vector<16x32xf32>
    %101 = arith.addf %99, %100 : vector<16x32xf32>
    %102 = arith.addf %83, %101 : vector<16x32xf32>
    %c0_53 = arith.constant 0 : index
    %c0_54 = arith.constant 0 : index
    %c0_55 = arith.constant 0 : index
    %103 = vector.load %arg12[%c0_53, %c0_54, %c0_55] : memref<1x1x32xf32, #tpu.memory_space<vmem>>, vector<1x1x32xf32>
    %104 = vector.shape_cast %103 : vector<1x1x32xf32> to vector<1x32xf32>
    %c0_56 = arith.constant 0 : index
    %c0_57 = arith.constant 0 : index
    %c0_58 = arith.constant 0 : index
    %105 = vector.load %arg13[%c0_56, %c0_57, %c0_58] : memref<1x1x32xf32, #tpu.memory_space<vmem>>, vector<1x1x32xf32>
    %106 = vector.shape_cast %105 : vector<1x1x32xf32> to vector<1x32xf32>
    %cst_59 = arith.constant dense<0.000000e+00> : vector<16xf32>
    %107 = vector.multi_reduction <add>, %102, %cst_59 [1] : vector<16x32xf32> to vector<16xf32>
    %108 = vector.shape_cast %107 : vector<16xf32> to vector<16x1xf32>
    %cst_60 = arith.constant 3.200000e+01 : f32
    %109 = vector.broadcast %cst_60 : f32 to vector<16x1xf32>
    %110 = arith.divf %108, %109 : vector<16x1xf32>
    %111 = vector.broadcast %110 : vector<16x1xf32> to vector<16x32xf32>
    %112 = arith.subf %102, %111 : vector<16x32xf32>
    %113 = arith.mulf %112, %112 : vector<16x32xf32>
    %cst_61 = arith.constant dense<0.000000e+00> : vector<16xf32>
    %114 = vector.multi_reduction <add>, %113, %cst_61 [1] : vector<16x32xf32> to vector<16xf32>
    %115 = vector.shape_cast %114 : vector<16xf32> to vector<16x1xf32>
    %cst_62 = arith.constant 3.200000e+01 : f32
    %116 = vector.broadcast %cst_62 : f32 to vector<16x1xf32>
    %117 = arith.divf %115, %116 : vector<16x1xf32>
    %cst_63 = arith.constant 9.99999974E-6 : f32
    %118 = vector.broadcast %cst_63 : f32 to vector<16x1xf32>
    %119 = arith.addf %117, %118 : vector<16x1xf32>
    %120 = math.rsqrt %119 : vector<16x1xf32>
    %121 = vector.broadcast %120 : vector<16x1xf32> to vector<16x32xf32>
    %122 = arith.mulf %112, %121 : vector<16x32xf32>
    %123 = vector.broadcast %104 : vector<1x32xf32> to vector<16x32xf32>
    %124 = arith.mulf %122, %123 : vector<16x32xf32>
    %125 = vector.broadcast %106 : vector<1x32xf32> to vector<16x32xf32>
    %126 = arith.addf %124, %125 : vector<16x32xf32>
    %c0_64 = arith.constant 0 : index
    %c0_65 = arith.constant 0 : index
    %127 = vector.load %arg41[%c0_64, %c0_65] : memref<16x32xf32, #tpu.memory_space<vmem>>, vector<16x32xf32>
    tpu.vector_store %arg41[%c0_64, %c0_65], %126 {strides = array<i32>} : memref<16x32xf32, #tpu.memory_space<vmem>>, vector<16x32xf32>,
    %c0_66 = arith.constant 0 : index
    %c0_67 = arith.constant 0 : index
    %128 = vector.load %arg14[%c0_66, %c0_67] : memref<16x32xf32, #tpu.memory_space<vmem>>, vector<16x32xf32>
    %c0_68 = arith.constant 0 : index
    %c0_69 = arith.constant 0 : index
    %129 = vector.load %arg15[%c0_68, %c0_69] : memref<16x16xf32, #tpu.memory_space<vmem>>, vector<16x16xf32>
    %c0_70 = arith.constant 0 : index
    %c0_71 = arith.constant 0 : index
    %130 = vector.load %arg16[%c0_70, %c0_71] : memref<16x16xf32, #tpu.memory_space<vmem>>, vector<16x16xf32>
    %c0_72 = arith.constant 0 : index
    %c0_73 = arith.constant 0 : index
    %c0_74 = arith.constant 0 : index
    %131 = vector.load %arg17[%c0_72, %c0_73, %c0_74] : memref<1x32x96xbf16, #tpu.memory_space<vmem>>, vector<1x32x96xbf16>
    %132 = vector.shape_cast %131 : vector<1x32x96xbf16> to vector<32x96xbf16>
    %c0_75 = arith.constant 0 : index
    %c0_76 = arith.constant 0 : index
    %c0_77 = arith.constant 0 : index
    %133 = vector.load %arg18[%c0_75, %c0_76, %c0_77] : memref<1x1x96xf32, #tpu.memory_space<vmem>>, vector<1x1x96xf32>
    %134 = vector.shape_cast %133 : vector<1x1x96xf32> to vector<1x96xf32>
    %c0_78 = arith.constant 0 : index
    %c0_79 = arith.constant 0 : index
    %c0_80 = arith.constant 0 : index
    %135 = vector.load %arg19[%c0_78, %c0_79, %c0_80] : memref<1x32x32xbf16, #tpu.memory_space<vmem>>, vector<1x32x32xbf16>
    %136 = vector.shape_cast %135 : vector<1x32x32xbf16> to vector<32x32xbf16>
    %c0_81 = arith.constant 0 : index
    %c0_82 = arith.constant 0 : index
    %c0_83 = arith.constant 0 : index
    %137 = vector.load %arg20[%c0_81, %c0_82, %c0_83] : memref<1x1x32xf32, #tpu.memory_space<vmem>>, vector<1x1x32xf32>
    %138 = vector.shape_cast %137 : vector<1x1x32xf32> to vector<1x32xf32>
    %139 = arith.truncf %128 : vector<16x32xf32> to vector<16x32xbf16>
    %cst_84 = arith.constant dense<0.000000e+00> : vector<16x96xf32>
    %140 = tpu.matmul %139, %132, %cst_84 {dimension_numbers = #tpu.dot_dimension_numbers<[1], [0], [0], [1], [0, 0, 1, 1], [], []>} : vector<16x32xbf16>, vector<32x96xbf16>, vector<16x96xf32> -> vector<16x96xf32>
    %141 = vector.broadcast %134 : vector<1x96xf32> to vector<16x96xf32>
    %142 = arith.addf %140, %141 : vector<16x96xf32>
    %143 = vector.extract_strided_slice %142 {offsets = [0, 0], sizes = [16, 16], strides = [1, 1]} : vector<16x96xf32> to vector<16x16xf32>
    %144 = vector.extract_strided_slice %142 {offsets = [0, 32], sizes = [16, 16], strides = [1, 1]} : vector<16x96xf32> to vector<16x16xf32>
    %145 = vector.extract_strided_slice %142 {offsets = [0, 64], sizes = [16, 16], strides = [1, 1]} : vector<16x96xf32> to vector<16x16xf32>
    %cst_85 = arith.constant dense<0.000000e+00> : vector<16x16xf32>
    %146 = tpu.matmul %143, %144, %cst_85 {dimension_numbers = #tpu.dot_dimension_numbers<[1], [1], [0], [0], [0, 0, 1, 0], [], []>} : vector<16x16xf32>, vector<16x16xf32>, vector<16x16xf32> -> vector<16x16xf32>
    %cst_86 = arith.constant 2.500000e-01 : f32
    %147 = vector.broadcast %cst_86 : f32 to vector<16x16xf32>
    %148 = arith.mulf %146, %147 : vector<16x16xf32>
    %149 = arith.addf %148, %129 : vector<16x16xf32>
    %cst_87 = arith.constant dense<0xFF800000> : vector<16xf32>
    %150 = vector.multi_reduction <maximumf>, %149, %cst_87 [1] : vector<16x16xf32> to vector<16xf32>
    %151 = vector.shape_cast %150 : vector<16xf32> to vector<16x1xf32>
    %152 = vector.broadcast %151 : vector<16x1xf32> to vector<16x16xf32>
    %153 = arith.subf %149, %152 : vector<16x16xf32>
    %154 = math.exp %153 : vector<16x16xf32>
    %cst_88 = arith.constant dense<0.000000e+00> : vector<16xf32>
    %155 = vector.multi_reduction <add>, %154, %cst_88 [1] : vector<16x16xf32> to vector<16xf32>
    %156 = vector.shape_cast %155 : vector<16xf32> to vector<16x1xf32>
    %157 = tpu.reciprocal %156 {approx = true} : vector<16x1xf32> -> vector<16x1xf32>
    %158 = vector.broadcast %157 : vector<16x1xf32> to vector<16x16xf32>
    %159 = arith.mulf %154, %158 : vector<16x16xf32>
    %cst_89 = arith.constant dense<0.000000e+00> : vector<16x16xf32>
    %160 = tpu.matmul %159, %145, %cst_89 {dimension_numbers = #tpu.dot_dimension_numbers<[1], [0], [0], [1], [0, 0, 1, 1], [], []>} : vector<16x16xf32>, vector<16x16xf32>, vector<16x16xf32> -> vector<16x16xf32>
    %161 = arith.truncf %160 : vector<16x16xf32> to vector<16x16xbf16>
    %162 = vector.extract_strided_slice %136 {offsets = [0, 0], sizes = [16, 32], strides = [1, 1]} : vector<32x32xbf16> to vector<16x32xbf16>
    %cst_90 = arith.constant dense<0.000000e+00> : vector<16x32xf32>
    %163 = tpu.matmul %161, %162, %cst_90 {dimension_numbers = #tpu.dot_dimension_numbers<[1], [0], [0], [1], [0, 0, 1, 1], [], []>} : vector<16x16xbf16>, vector<16x32xbf16>, vector<16x32xf32> -> vector<16x32xf32>
    %164 = vector.extract_strided_slice %142 {offsets = [0, 16], sizes = [16, 16], strides = [1, 1]} : vector<16x96xf32> to vector<16x16xf32>
    %165 = vector.extract_strided_slice %142 {offsets = [0, 48], sizes = [16, 16], strides = [1, 1]} : vector<16x96xf32> to vector<16x16xf32>
    %166 = vector.extract_strided_slice %142 {offsets = [0, 80], sizes = [16, 16], strides = [1, 1]} : vector<16x96xf32> to vector<16x16xf32>
    %cst_91 = arith.constant dense<0.000000e+00> : vector<16x16xf32>
    %167 = tpu.matmul %164, %165, %cst_91 {dimension_numbers = #tpu.dot_dimension_numbers<[1], [1], [0], [0], [0, 0, 1, 0], [], []>} : vector<16x16xf32>, vector<16x16xf32>, vector<16x16xf32> -> vector<16x16xf32>
    %cst_92 = arith.constant 2.500000e-01 : f32
    %168 = vector.broadcast %cst_92 : f32 to vector<16x16xf32>
    %169 = arith.mulf %167, %168 : vector<16x16xf32>
    %170 = arith.addf %169, %129 : vector<16x16xf32>
    %cst_93 = arith.constant dense<0xFF800000> : vector<16xf32>
    %171 = vector.multi_reduction <maximumf>, %170, %cst_93 [1] : vector<16x16xf32> to vector<16xf32>
    %172 = vector.shape_cast %171 : vector<16xf32> to vector<16x1xf32>
    %173 = vector.broadcast %172 : vector<16x1xf32> to vector<16x16xf32>
    %174 = arith.subf %170, %173 : vector<16x16xf32>
    %175 = math.exp %174 : vector<16x16xf32>
    %cst_94 = arith.constant dense<0.000000e+00> : vector<16xf32>
    %176 = vector.multi_reduction <add>, %175, %cst_94 [1] : vector<16x16xf32> to vector<16xf32>
    %177 = vector.shape_cast %176 : vector<16xf32> to vector<16x1xf32>
    %178 = tpu.reciprocal %177 {approx = true} : vector<16x1xf32> -> vector<16x1xf32>
    %179 = vector.broadcast %178 : vector<16x1xf32> to vector<16x16xf32>
    %180 = arith.mulf %175, %179 : vector<16x16xf32>
    %cst_95 = arith.constant dense<0.000000e+00> : vector<16x16xf32>
    %181 = tpu.matmul %180, %166, %cst_95 {dimension_numbers = #tpu.dot_dimension_numbers<[1], [0], [0], [1], [0, 0, 1, 1], [], []>} : vector<16x16xf32>, vector<16x16xf32>, vector<16x16xf32> -> vector<16x16xf32>
    %182 = arith.truncf %181 : vector<16x16xf32> to vector<16x16xbf16>
    %183 = vector.extract_strided_slice %136 {offsets = [16, 0], sizes = [16, 32], strides = [1, 1]} : vector<32x32xbf16> to vector<16x32xbf16>
    %cst_96 = arith.constant dense<0.000000e+00> : vector<16x32xf32>
    %184 = tpu.matmul %182, %183, %cst_96 {dimension_numbers = #tpu.dot_dimension_numbers<[1], [0], [0], [1], [0, 0, 1, 1], [], []>} : vector<16x16xbf16>, vector<16x32xbf16>, vector<16x32xf32> -> vector<16x32xf32>
    %185 = arith.addf %163, %184 : vector<16x32xf32>
    %186 = vector.broadcast %138 : vector<1x32xf32> to vector<16x32xf32>
    %187 = arith.addf %185, %186 : vector<16x32xf32>
    %188 = arith.addf %128, %187 : vector<16x32xf32>
    %c0_97 = arith.constant 0 : index
    %c0_98 = arith.constant 0 : index
    %c0_99 = arith.constant 0 : index
    %189 = vector.load %arg21[%c0_97, %c0_98, %c0_99] : memref<1x1x32xf32, #tpu.memory_space<vmem>>, vector<1x1x32xf32>
    %190 = vector.shape_cast %189 : vector<1x1x32xf32> to vector<1x32xf32>
    %c0_100 = arith.constant 0 : index
    %c0_101 = arith.constant 0 : index
    %c0_102 = arith.constant 0 : index
    %191 = vector.load %arg22[%c0_100, %c0_101, %c0_102] : memref<1x1x32xf32, #tpu.memory_space<vmem>>, vector<1x1x32xf32>
    %192 = vector.shape_cast %191 : vector<1x1x32xf32> to vector<1x32xf32>
    %cst_103 = arith.constant dense<0.000000e+00> : vector<16xf32>
    %193 = vector.multi_reduction <add>, %188, %cst_103 [1] : vector<16x32xf32> to vector<16xf32>
    %194 = vector.shape_cast %193 : vector<16xf32> to vector<16x1xf32>
    %cst_104 = arith.constant 3.200000e+01 : f32
    %195 = vector.broadcast %cst_104 : f32 to vector<16x1xf32>
    %196 = arith.divf %194, %195 : vector<16x1xf32>
    %197 = vector.broadcast %196 : vector<16x1xf32> to vector<16x32xf32>
    %198 = arith.subf %188, %197 : vector<16x32xf32>
    %199 = arith.mulf %198, %198 : vector<16x32xf32>
    %cst_105 = arith.constant dense<0.000000e+00> : vector<16xf32>
    %200 = vector.multi_reduction <add>, %199, %cst_105 [1] : vector<16x32xf32> to vector<16xf32>
    %201 = vector.shape_cast %200 : vector<16xf32> to vector<16x1xf32>
    %cst_106 = arith.constant 3.200000e+01 : f32
    %202 = vector.broadcast %cst_106 : f32 to vector<16x1xf32>
    %203 = arith.divf %201, %202 : vector<16x1xf32>
    %cst_107 = arith.constant 9.99999974E-6 : f32
    %204 = vector.broadcast %cst_107 : f32 to vector<16x1xf32>
    %205 = arith.addf %203, %204 : vector<16x1xf32>
    %206 = math.rsqrt %205 : vector<16x1xf32>
    %207 = vector.broadcast %206 : vector<16x1xf32> to vector<16x32xf32>
    %208 = arith.mulf %198, %207 : vector<16x32xf32>
    %209 = vector.broadcast %190 : vector<1x32xf32> to vector<16x32xf32>
    %210 = arith.mulf %208, %209 : vector<16x32xf32>
    %211 = vector.broadcast %192 : vector<1x32xf32> to vector<16x32xf32>
    %212 = arith.addf %210, %211 : vector<16x32xf32>
    %c0_108 = arith.constant 0 : index
    %c0_109 = arith.constant 0 : index
    %c0_110 = arith.constant 0 : index
    %213 = vector.load %arg23[%c0_108, %c0_109, %c0_110] : memref<1x32x32xbf16, #tpu.memory_space<vmem>>, vector<1x32x32xbf16>
    %214 = vector.shape_cast %213 : vector<1x32x32xbf16> to vector<32x32xbf16>
    %c0_111 = arith.constant 0 : index
    %c0_112 = arith.constant 0 : index
    %c0_113 = arith.constant 0 : index
    %215 = vector.load %arg24[%c0_111, %c0_112, %c0_113] : memref<1x1x32xf32, #tpu.memory_space<vmem>>, vector<1x1x32xf32>
    %216 = vector.shape_cast %215 : vector<1x1x32xf32> to vector<1x32xf32>
    %c0_114 = arith.constant 0 : index
    %c0_115 = arith.constant 0 : index
    %c0_116 = arith.constant 0 : index
    %217 = vector.load %arg25[%c0_114, %c0_115, %c0_116] : memref<1x32x64xbf16, #tpu.memory_space<vmem>>, vector<1x32x64xbf16>
    %218 = vector.shape_cast %217 : vector<1x32x64xbf16> to vector<32x64xbf16>
    %c0_117 = arith.constant 0 : index
    %c0_118 = arith.constant 0 : index
    %c0_119 = arith.constant 0 : index
    %219 = vector.load %arg26[%c0_117, %c0_118, %c0_119] : memref<1x1x64xf32, #tpu.memory_space<vmem>>, vector<1x1x64xf32>
    %220 = vector.shape_cast %219 : vector<1x1x64xf32> to vector<1x64xf32>
    %c0_120 = arith.constant 0 : index
    %c0_121 = arith.constant 0 : index
    %c0_122 = arith.constant 0 : index
    %221 = vector.load %arg27[%c0_120, %c0_121, %c0_122] : memref<1x32x32xbf16, #tpu.memory_space<vmem>>, vector<1x32x32xbf16>
    %222 = vector.shape_cast %221 : vector<1x32x32xbf16> to vector<32x32xbf16>
    %c0_123 = arith.constant 0 : index
    %c0_124 = arith.constant 0 : index
    %c0_125 = arith.constant 0 : index
    %223 = vector.load %arg28[%c0_123, %c0_124, %c0_125] : memref<1x1x32xf32, #tpu.memory_space<vmem>>, vector<1x1x32xf32>
    %224 = vector.shape_cast %223 : vector<1x1x32xf32> to vector<1x32xf32>
    %225 = arith.truncf %212 : vector<16x32xf32> to vector<16x32xbf16>
    %cst_126 = arith.constant dense<0.000000e+00> : vector<16x32xf32>
    %226 = tpu.matmul %225, %214, %cst_126 {dimension_numbers = #tpu.dot_dimension_numbers<[1], [0], [0], [1], [0, 0, 1, 1], [], []>} : vector<16x32xbf16>, vector<32x32xbf16>, vector<16x32xf32> -> vector<16x32xf32>
    %227 = vector.broadcast %216 : vector<1x32xf32> to vector<16x32xf32>
    %228 = arith.addf %226, %227 : vector<16x32xf32>
    %229 = arith.truncf %126 : vector<16x32xf32> to vector<16x32xbf16>
    %cst_127 = arith.constant dense<0.000000e+00> : vector<16x64xf32>
    %230 = tpu.matmul %229, %218, %cst_127 {dimension_numbers = #tpu.dot_dimension_numbers<[1], [0], [0], [1], [0, 0, 1, 1], [], []>} : vector<16x32xbf16>, vector<32x64xbf16>, vector<16x64xf32> -> vector<16x64xf32>
    %231 = vector.broadcast %220 : vector<1x64xf32> to vector<16x64xf32>
    %232 = arith.addf %230, %231 : vector<16x64xf32>
    %233 = vector.extract_strided_slice %228 {offsets = [0, 0], sizes = [16, 16], strides = [1, 1]} : vector<16x32xf32> to vector<16x16xf32>
    %234 = vector.extract_strided_slice %232 {offsets = [0, 0], sizes = [16, 16], strides = [1, 1]} : vector<16x64xf32> to vector<16x16xf32>
    %235 = vector.extract_strided_slice %232 {offsets = [0, 32], sizes = [16, 16], strides = [1, 1]} : vector<16x64xf32> to vector<16x16xf32>
    %cst_128 = arith.constant dense<0.000000e+00> : vector<16x16xf32>
    %236 = tpu.matmul %233, %234, %cst_128 {dimension_numbers = #tpu.dot_dimension_numbers<[1], [1], [0], [0], [0, 0, 1, 0], [], []>} : vector<16x16xf32>, vector<16x16xf32>, vector<16x16xf32> -> vector<16x16xf32>
    %cst_129 = arith.constant 2.500000e-01 : f32
    %237 = vector.broadcast %cst_129 : f32 to vector<16x16xf32>
    %238 = arith.mulf %236, %237 : vector<16x16xf32>
    %239 = arith.addf %238, %130 : vector<16x16xf32>
    %cst_130 = arith.constant dense<0xFF800000> : vector<16xf32>
    %240 = vector.multi_reduction <maximumf>, %239, %cst_130 [1] : vector<16x16xf32> to vector<16xf32>
    %241 = vector.shape_cast %240 : vector<16xf32> to vector<16x1xf32>
    %242 = vector.broadcast %241 : vector<16x1xf32> to vector<16x16xf32>
    %243 = arith.subf %239, %242 : vector<16x16xf32>
    %244 = math.exp %243 : vector<16x16xf32>
    %cst_131 = arith.constant dense<0.000000e+00> : vector<16xf32>
    %245 = vector.multi_reduction <add>, %244, %cst_131 [1] : vector<16x16xf32> to vector<16xf32>
    %246 = vector.shape_cast %245 : vector<16xf32> to vector<16x1xf32>
    %247 = tpu.reciprocal %246 {approx = true} : vector<16x1xf32> -> vector<16x1xf32>
    %248 = vector.broadcast %247 : vector<16x1xf32> to vector<16x16xf32>
    %249 = arith.mulf %244, %248 : vector<16x16xf32>
    %cst_132 = arith.constant dense<0.000000e+00> : vector<16x16xf32>
    %250 = tpu.matmul %249, %235, %cst_132 {dimension_numbers = #tpu.dot_dimension_numbers<[1], [0], [0], [1], [0, 0, 1, 1], [], []>} : vector<16x16xf32>, vector<16x16xf32>, vector<16x16xf32> -> vector<16x16xf32>
    %251 = arith.truncf %250 : vector<16x16xf32> to vector<16x16xbf16>
    %252 = vector.extract_strided_slice %222 {offsets = [0, 0], sizes = [16, 32], strides = [1, 1]} : vector<32x32xbf16> to vector<16x32xbf16>
    %cst_133 = arith.constant dense<0.000000e+00> : vector<16x32xf32>
    %253 = tpu.matmul %251, %252, %cst_133 {dimension_numbers = #tpu.dot_dimension_numbers<[1], [0], [0], [1], [0, 0, 1, 1], [], []>} : vector<16x16xbf16>, vector<16x32xbf16>, vector<16x32xf32> -> vector<16x32xf32>
    %254 = vector.extract_strided_slice %228 {offsets = [0, 16], sizes = [16, 16], strides = [1, 1]} : vector<16x32xf32> to vector<16x16xf32>
    %255 = vector.extract_strided_slice %232 {offsets = [0, 16], sizes = [16, 16], strides = [1, 1]} : vector<16x64xf32> to vector<16x16xf32>
    %256 = vector.extract_strided_slice %232 {offsets = [0, 48], sizes = [16, 16], strides = [1, 1]} : vector<16x64xf32> to vector<16x16xf32>
    %cst_134 = arith.constant dense<0.000000e+00> : vector<16x16xf32>
    %257 = tpu.matmul %254, %255, %cst_134 {dimension_numbers = #tpu.dot_dimension_numbers<[1], [1], [0], [0], [0, 0, 1, 0], [], []>} : vector<16x16xf32>, vector<16x16xf32>, vector<16x16xf32> -> vector<16x16xf32>
    %cst_135 = arith.constant 2.500000e-01 : f32
    %258 = vector.broadcast %cst_135 : f32 to vector<16x16xf32>
    %259 = arith.mulf %257, %258 : vector<16x16xf32>
    %260 = arith.addf %259, %130 : vector<16x16xf32>
    %cst_136 = arith.constant dense<0xFF800000> : vector<16xf32>
    %261 = vector.multi_reduction <maximumf>, %260, %cst_136 [1] : vector<16x16xf32> to vector<16xf32>
    %262 = vector.shape_cast %261 : vector<16xf32> to vector<16x1xf32>
    %263 = vector.broadcast %262 : vector<16x1xf32> to vector<16x16xf32>
    %264 = arith.subf %260, %263 : vector<16x16xf32>
    %265 = math.exp %264 : vector<16x16xf32>
    %cst_137 = arith.constant dense<0.000000e+00> : vector<16xf32>
    %266 = vector.multi_reduction <add>, %265, %cst_137 [1] : vector<16x16xf32> to vector<16xf32>
    %267 = vector.shape_cast %266 : vector<16xf32> to vector<16x1xf32>
    %268 = tpu.reciprocal %267 {approx = true} : vector<16x1xf32> -> vector<16x1xf32>
    %269 = vector.broadcast %268 : vector<16x1xf32> to vector<16x16xf32>
    %270 = arith.mulf %265, %269 : vector<16x16xf32>
    %cst_138 = arith.constant dense<0.000000e+00> : vector<16x16xf32>
    %271 = tpu.matmul %270, %256, %cst_138 {dimension_numbers = #tpu.dot_dimension_numbers<[1], [0], [0], [1], [0, 0, 1, 1], [], []>} : vector<16x16xf32>, vector<16x16xf32>, vector<16x16xf32> -> vector<16x16xf32>
    %272 = arith.truncf %271 : vector<16x16xf32> to vector<16x16xbf16>
    %273 = vector.extract_strided_slice %222 {offsets = [16, 0], sizes = [16, 32], strides = [1, 1]} : vector<32x32xbf16> to vector<16x32xbf16>
    %cst_139 = arith.constant dense<0.000000e+00> : vector<16x32xf32>
    %274 = tpu.matmul %272, %273, %cst_139 {dimension_numbers = #tpu.dot_dimension_numbers<[1], [0], [0], [1], [0, 0, 1, 1], [], []>} : vector<16x16xbf16>, vector<16x32xbf16>, vector<16x32xf32> -> vector<16x32xf32>
    %275 = arith.addf %253, %274 : vector<16x32xf32>
    %276 = vector.broadcast %224 : vector<1x32xf32> to vector<16x32xf32>
    %277 = arith.addf %275, %276 : vector<16x32xf32>
    %278 = arith.addf %212, %277 : vector<16x32xf32>
    %c0_140 = arith.constant 0 : index
    %c0_141 = arith.constant 0 : index
    %c0_142 = arith.constant 0 : index
    %279 = vector.load %arg29[%c0_140, %c0_141, %c0_142] : memref<1x1x32xf32, #tpu.memory_space<vmem>>, vector<1x1x32xf32>
    %280 = vector.shape_cast %279 : vector<1x1x32xf32> to vector<1x32xf32>
    %c0_143 = arith.constant 0 : index
    %c0_144 = arith.constant 0 : index
    %c0_145 = arith.constant 0 : index
    %281 = vector.load %arg30[%c0_143, %c0_144, %c0_145] : memref<1x1x32xf32, #tpu.memory_space<vmem>>, vector<1x1x32xf32>
    %282 = vector.shape_cast %281 : vector<1x1x32xf32> to vector<1x32xf32>
    %cst_146 = arith.constant dense<0.000000e+00> : vector<16xf32>
    %283 = vector.multi_reduction <add>, %278, %cst_146 [1] : vector<16x32xf32> to vector<16xf32>
    %284 = vector.shape_cast %283 : vector<16xf32> to vector<16x1xf32>
    %cst_147 = arith.constant 3.200000e+01 : f32
    %285 = vector.broadcast %cst_147 : f32 to vector<16x1xf32>
    %286 = arith.divf %284, %285 : vector<16x1xf32>
    %287 = vector.broadcast %286 : vector<16x1xf32> to vector<16x32xf32>
    %288 = arith.subf %278, %287 : vector<16x32xf32>
    %289 = arith.mulf %288, %288 : vector<16x32xf32>
    %cst_148 = arith.constant dense<0.000000e+00> : vector<16xf32>
    %290 = vector.multi_reduction <add>, %289, %cst_148 [1] : vector<16x32xf32> to vector<16xf32>
    %291 = vector.shape_cast %290 : vector<16xf32> to vector<16x1xf32>
    %cst_149 = arith.constant 3.200000e+01 : f32
    %292 = vector.broadcast %cst_149 : f32 to vector<16x1xf32>
    %293 = arith.divf %291, %292 : vector<16x1xf32>
    %cst_150 = arith.constant 9.99999974E-6 : f32
    %294 = vector.broadcast %cst_150 : f32 to vector<16x1xf32>
    %295 = arith.addf %293, %294 : vector<16x1xf32>
    %296 = math.rsqrt %295 : vector<16x1xf32>
    %297 = vector.broadcast %296 : vector<16x1xf32> to vector<16x32xf32>
    %298 = arith.mulf %288, %297 : vector<16x32xf32>
    %299 = vector.broadcast %280 : vector<1x32xf32> to vector<16x32xf32>
    %300 = arith.mulf %298, %299 : vector<16x32xf32>
    %301 = vector.broadcast %282 : vector<1x32xf32> to vector<16x32xf32>
    %302 = arith.addf %300, %301 : vector<16x32xf32>
    %c0_151 = arith.constant 0 : index
    %c0_152 = arith.constant 0 : index
    %c0_153 = arith.constant 0 : index
    %303 = vector.load %arg31[%c0_151, %c0_152, %c0_153] : memref<1x32x2048xbf16, #tpu.memory_space<vmem>>, vector<1x32x2048xbf16>
    %304 = vector.shape_cast %303 : vector<1x32x2048xbf16> to vector<32x2048xbf16>
    %c0_154 = arith.constant 0 : index
    %c0_155 = arith.constant 0 : index
    %c0_156 = arith.constant 0 : index
    %305 = vector.load %arg32[%c0_154, %c0_155, %c0_156] : memref<1x1x2048xf32, #tpu.memory_space<vmem>>, vector<1x1x2048xf32>
    %306 = vector.shape_cast %305 : vector<1x1x2048xf32> to vector<1x2048xf32>
    %c0_157 = arith.constant 0 : index
    %c0_158 = arith.constant 0 : index
    %c0_159 = arith.constant 0 : index
    %307 = vector.load %arg33[%c0_157, %c0_158, %c0_159] : memref<1x2048x32xbf16, #tpu.memory_space<vmem>>, vector<1x2048x32xbf16>
    %308 = vector.shape_cast %307 : vector<1x2048x32xbf16> to vector<2048x32xbf16>
    %c0_160 = arith.constant 0 : index
    %c0_161 = arith.constant 0 : index
    %c0_162 = arith.constant 0 : index
    %309 = vector.load %arg34[%c0_160, %c0_161, %c0_162] : memref<1x1x32xf32, #tpu.memory_space<vmem>>, vector<1x1x32xf32>
    %310 = vector.shape_cast %309 : vector<1x1x32xf32> to vector<1x32xf32>
    %311 = arith.truncf %302 : vector<16x32xf32> to vector<16x32xbf16>
    %cst_163 = arith.constant dense<0.000000e+00> : vector<16x2048xf32>
    %312 = tpu.matmul %311, %304, %cst_163 {dimension_numbers = #tpu.dot_dimension_numbers<[1], [0], [0], [1], [0, 0, 1, 1], [], []>} : vector<16x32xbf16>, vector<32x2048xbf16>, vector<16x2048xf32> -> vector<16x2048xf32>
    %313 = vector.broadcast %306 : vector<1x2048xf32> to vector<16x2048xf32>
    %314 = arith.addf %312, %313 : vector<16x2048xf32>
    %cst_164 = arith.constant 0.000000e+00 : f32
    %315 = vector.broadcast %cst_164 : f32 to vector<16x2048xf32>
    %316 = arith.maximumf %314, %315 : vector<16x2048xf32>
    %317 = arith.truncf %316 : vector<16x2048xf32> to vector<16x2048xbf16>
    %cst_165 = arith.constant dense<0.000000e+00> : vector<16x32xf32>
    %318 = tpu.matmul %317, %308, %cst_165 {dimension_numbers = #tpu.dot_dimension_numbers<[1], [0], [0], [1], [0, 0, 1, 1], [], []>} : vector<16x2048xbf16>, vector<2048x32xbf16>, vector<16x32xf32> -> vector<16x32xf32>
    %319 = vector.broadcast %310 : vector<1x32xf32> to vector<16x32xf32>
    %320 = arith.addf %318, %319 : vector<16x32xf32>
    %321 = arith.addf %302, %320 : vector<16x32xf32>
    %c0_166 = arith.constant 0 : index
    %c0_167 = arith.constant 0 : index
    %c0_168 = arith.constant 0 : index
    %322 = vector.load %arg35[%c0_166, %c0_167, %c0_168] : memref<1x1x32xf32, #tpu.memory_space<vmem>>, vector<1x1x32xf32>
    %323 = vector.shape_cast %322 : vector<1x1x32xf32> to vector<1x32xf32>
    %c0_169 = arith.constant 0 : index
    %c0_170 = arith.constant 0 : index
    %c0_171 = arith.constant 0 : index
    %324 = vector.load %arg36[%c0_169, %c0_170, %c0_171] : memref<1x1x32xf32, #tpu.memory_space<vmem>>, vector<1x1x32xf32>
    %325 = vector.shape_cast %324 : vector<1x1x32xf32> to vector<1x32xf32>
    %cst_172 = arith.constant dense<0.000000e+00> : vector<16xf32>
    %326 = vector.multi_reduction <add>, %321, %cst_172 [1] : vector<16x32xf32> to vector<16xf32>
    %327 = vector.shape_cast %326 : vector<16xf32> to vector<16x1xf32>
    %cst_173 = arith.constant 3.200000e+01 : f32
    %328 = vector.broadcast %cst_173 : f32 to vector<16x1xf32>
    %329 = arith.divf %327, %328 : vector<16x1xf32>
    %330 = vector.broadcast %329 : vector<16x1xf32> to vector<16x32xf32>
    %331 = arith.subf %321, %330 : vector<16x32xf32>
    %332 = arith.mulf %331, %331 : vector<16x32xf32>
    %cst_174 = arith.constant dense<0.000000e+00> : vector<16xf32>
    %333 = vector.multi_reduction <add>, %332, %cst_174 [1] : vector<16x32xf32> to vector<16xf32>
    %334 = vector.shape_cast %333 : vector<16xf32> to vector<16x1xf32>
    %cst_175 = arith.constant 3.200000e+01 : f32
    %335 = vector.broadcast %cst_175 : f32 to vector<16x1xf32>
    %336 = arith.divf %334, %335 : vector<16x1xf32>
    %cst_176 = arith.constant 9.99999974E-6 : f32
    %337 = vector.broadcast %cst_176 : f32 to vector<16x1xf32>
    %338 = arith.addf %336, %337 : vector<16x1xf32>
    %339 = math.rsqrt %338 : vector<16x1xf32>
    %340 = vector.broadcast %339 : vector<16x1xf32> to vector<16x32xf32>
    %341 = arith.mulf %331, %340 : vector<16x32xf32>
    %342 = vector.broadcast %323 : vector<1x32xf32> to vector<16x32xf32>
    %343 = arith.mulf %341, %342 : vector<16x32xf32>
    %344 = vector.broadcast %325 : vector<1x32xf32> to vector<16x32xf32>
    %345 = arith.addf %343, %344 : vector<16x32xf32>
    %346 = arith.truncf %345 : vector<16x32xf32> to vector<16x32xbf16>
    %c0_177 = arith.constant 0 : index
    %c0_178 = arith.constant 0 : index
    %347 = vector.load %arg37[%c0_177, %c0_178] : memref<32x128xbf16, #tpu.memory_space<vmem>>, vector<32x128xbf16>
    %cst_179 = arith.constant dense<0.000000e+00> : vector<16x128xf32>
    %348 = tpu.matmul %346, %347, %cst_179 {dimension_numbers = #tpu.dot_dimension_numbers<[1], [0], [0], [1], [0, 0, 1, 1], [], []>} : vector<16x32xbf16>, vector<32x128xbf16>, vector<16x128xf32> -> vector<16x128xf32>
    %c0_180 = arith.constant 0 : index
    %c0_181 = arith.constant 0 : index
    %349 = vector.load %arg38[%c0_180, %c0_181] : memref<1x128xf32, #tpu.memory_space<vmem>>, vector<1x128xf32>
    %350 = vector.broadcast %349 : vector<1x128xf32> to vector<16x128xf32>
    %351 = arith.addf %348, %350 : vector<16x128xf32>
    %c0_182 = arith.constant 0 : index
    %c0_183 = arith.constant 0 : index
    %352 = vector.load %arg40[%c0_182, %c0_183] : memref<16x128xf32, #tpu.memory_space<vmem>>, vector<16x128xf32>
    tpu.vector_store %arg40[%c0_182, %c0_183], %351 {strides = array<i32>} : memref<16x128xf32, #tpu.memory_space<vmem>>, vector<16x128xf32>,
    %cst_184 = arith.constant dense<0xFF800000> : vector<16xf32>
    %353 = vector.multi_reduction <maximumf>, %351, %cst_184 [1] : vector<16x128xf32> to vector<16xf32>
    %354 = vector.shape_cast %353 : vector<16xf32> to vector<16x1xf32>
    %355 = vector.broadcast %354 : vector<16x1xf32> to vector<16x128xf32>
    %356 = arith.subf %351, %355 : vector<16x128xf32>
    %357 = math.exp %356 : vector<16x128xf32>
    %cst_185 = arith.constant dense<0.000000e+00> : vector<16xf32>
    %358 = vector.multi_reduction <add>, %357, %cst_185 [1] : vector<16x128xf32> to vector<16xf32>
    %359 = vector.shape_cast %358 : vector<16xf32> to vector<16x1xf32>
    %360 = math.log %359 : vector<16x1xf32>
    %361 = arith.addf %360, %354 : vector<16x1xf32>
    %c0_186 = arith.constant 0 : index
    %c0_187 = arith.constant 0 : index
    %362 = vector.load %arg39[%c0_186, %c0_187] : memref<16x1xi32, #tpu.memory_space<vmem>>, vector<16x1xi32>
    %363 = tpu.iota {dimensions = array<i32: 1>} : vector<16x128xi32>
    %364 = vector.broadcast %362 : vector<16x1xi32> to vector<16x128xi32>
    %365 = arith.cmpi eq, %363, %364 : vector<16x128xi32>
    %cst_188 = arith.constant 0.000000e+00 : f32
    %366 = vector.broadcast %cst_188 : f32 to vector<16x128xf32>
    %367 = arith.select %365, %351, %366 : vector<16x128xi1>, vector<16x128xf32>
    %cst_189 = arith.constant dense<0.000000e+00> : vector<16xf32>
    %368 = vector.multi_reduction <add>, %367, %cst_189 [1] : vector<16x128xf32> to vector<16xf32>
    %369 = vector.shape_cast %368 : vector<16xf32> to vector<16x1xf32>
    %370 = arith.subf %361, %369 : vector<16x1xf32>
    %c0_i32 = arith.constant 0 : i32
    %371 = vector.broadcast %c0_i32 : i32 to vector<16x1xi32>
    %372 = arith.cmpi ne, %362, %371 : vector<16x1xi32>
    %373 = arith.extui %372 : vector<16x1xi1> to vector<16x1xi32>
    %374 = arith.sitofp %373 : vector<16x1xi32> to vector<16x1xf32>
    %375 = arith.mulf %370, %374 : vector<16x1xf32>
    %376 = tpu.iota {dimensions = array<i32: 1>} : vector<2x16xi32>
    %377 = tpu.iota {dimensions = array<i32: 0>} : vector<2x16xi32>
    %c8_i32 = arith.constant 8 : i32
    %378 = vector.broadcast %c8_i32 : i32 to vector<2x16xi32>
    %379 = arith.muli %377, %378 : vector<2x16xi32>
    %380 = arith.cmpi sge, %376, %379 : vector<2x16xi32>
    %c1_i32 = arith.constant 1 : i32
    %381 = vector.broadcast %c1_i32 : i32 to vector<2x16xi32>
    %382 = arith.addi %377, %381 : vector<2x16xi32>
    %c8_i32_190 = arith.constant 8 : i32
    %383 = vector.broadcast %c8_i32_190 : i32 to vector<2x16xi32>
    %384 = arith.muli %382, %383 : vector<2x16xi32>
    %385 = arith.cmpi slt, %376, %384 : vector<2x16xi32>
    %386 = arith.andi %380, %385 : vector<2x16xi1>
    %387 = arith.extui %386 : vector<2x16xi1> to vector<2x16xi32>
    %388 = arith.sitofp %387 : vector<2x16xi32> to vector<2x16xf32>
    %cst_191 = arith.constant dense<0.000000e+00> : vector<2x1xf32>
    %389 = tpu.matmul %388, %375, %cst_191 {dimension_numbers = #tpu.dot_dimension_numbers<[1], [0], [0], [1], [0, 0, 1, 1], [], []>} : vector<2x16xf32>, vector<16x1xf32>, vector<2x1xf32> -> vector<2x1xf32>
    %cst_192 = arith.constant dense<0.000000e+00> : vector<2x1xf32>
    %390 = tpu.matmul %388, %374, %cst_192 {dimension_numbers = #tpu.dot_dimension_numbers<[1], [0], [0], [1], [0, 0, 1, 1], [], []>} : vector<2x16xf32>, vector<16x1xf32>, vector<2x1xf32> -> vector<2x1xf32>
    %cst_193 = arith.constant 8.000000e+00 : f32
    %391 = vector.broadcast %cst_193 : f32 to vector<2x1xf32>
    %392 = arith.divf %389, %391 : vector<2x1xf32>
    %cst_194 = arith.constant 1.000000e+00 : f32
    %393 = vector.broadcast %cst_194 : f32 to vector<2x1xf32>
    %394 = arith.maximumf %390, %393 : vector<2x1xf32>
    %395 = arith.divf %389, %394 : vector<2x1xf32>
    %396 = tpu.concatenate %392, %395 in 1 : vector<2x1xf32>, vector<2x1xf32> -> vector<2x2xf32>
    %c0_195 = arith.constant 0 : index
    %c0_196 = arith.constant 0 : index
    %397 = vector.load %arg42[%c0_195, %c0_196] : memref<2x2xf32, #tpu.memory_space<vmem>>, vector<2x2xf32>
    tpu.vector_store %arg42[%c0_195, %c0_196], %396 {strides = array<i32>} : memref<2x2xf32, #tpu.memory_space<vmem>>, vector<2x2xf32>,
    return
  }
}

</mosaic_0001>

<llo_original>
// kernel: translation_model_forward.1
$region0: #{translation_model_forward.1}
  #allocation0 [shape = 'u32[]', space=smem, size = 0x4, offset = 0x4, fixed_abs, tag = 'smem constant byte address 0x4 - core index']
  #allocation1 [shape = 'u32[72,128]{1,0:T(1,128)}', space=vmem, size = 0x9000, scoped, tag = 'internal scratch']
  %s0 = inlined_call_operand.smem [shape: u32[43], index: -1, kind: input, shape index: {}]
  %s1 = sld [smem:[%s0]]
  %s2 = scalar_lea.smem %s0, 1
  %s3 = sld [smem:[%s2]]
  %s4 = scalar_lea.smem %s0, 2
  %s5 = sld [smem:[%s4]]
  %s6 = scalar_lea.smem %s0, 3
  %s7 = sld [smem:[%s6]]
  %s8 = scalar_lea.smem %s0, 4
  %s9 = sld [smem:[%s8]]
  %s10 = scalar_lea.smem %s0, 5
  %s11 = sld [smem:[%s10]]
  %s12 = scalar_lea.smem %s0, 6
  %s13 = sld [smem:[%s12]]
  %s14 = scalar_lea.smem %s0, 7
  %s15 = sld [smem:[%s14]]
  %s16 = scalar_lea.smem %s0, 8
  %s17 = sld [smem:[%s16]]
  %s18 = scalar_lea.smem %s0, 9
  %s19 = sld [smem:[%s18]]
  %s20 = scalar_lea.smem %s0, 10
  %s21 = sld [smem:[%s20]]
  %s22 = scalar_lea.smem %s0, 11
  %s23 = sld [smem:[%s22]]
  %s24 = scalar_lea.smem %s0, 12
  %s25 = sld [smem:[%s24]]
  %s26 = scalar_lea.smem %s0, 13
  %s27 = sld [smem:[%s26]]
  %s28 = scalar_lea.smem %s0, 14
  %s29 = sld [smem:[%s28]]
  %s30 = scalar_lea.smem %s0, 15
  %s31 = sld [smem:[%s30]]
  %s32 = scalar_lea.smem %s0, 16
  %s33 = sld [smem:[%s32]]
  %s34 = scalar_lea.smem %s0, 17
  %s35 = sld [smem:[%s34]]
  %s36 = scalar_lea.smem %s0, 18
  %s37 = sld [smem:[%s36]]
  %s38 = scalar_lea.smem %s0, 19
  %s39 = sld [smem:[%s38]]
  %s40 = scalar_lea.smem %s0, 20
  %s41 = sld [smem:[%s40]]
  %s42 = scalar_lea.smem %s0, 21
  %s43 = sld [smem:[%s42]]
  %s44 = scalar_lea.smem %s0, 22
  %s45 = sld [smem:[%s44]]
  %s46 = scalar_lea.smem %s0, 23
  %s47 = sld [smem:[%s46]]
  %s48 = scalar_lea.smem %s0, 24
  %s49 = sld [smem:[%s48]]
  %s50 = scalar_lea.smem %s0, 25
  %s51 = sld [smem:[%s50]]
  %s52 = scalar_lea.smem %s0, 26
  %s53 = sld [smem:[%s52]]
  %s54 = scalar_lea.smem %s0, 27
  %s55 = sld [smem:[%s54]]
  %s56 = scalar_lea.smem %s0, 28
  %s57 = sld [smem:[%s56]]
  %s58 = scalar_lea.smem %s0, 29
  %s59 = sld [smem:[%s58]]
  %s60 = scalar_lea.smem %s0, 30
  %s61 = sld [smem:[%s60]]
  %s62 = scalar_lea.smem %s0, 31
  %s63 = sld [smem:[%s62]]
  %s64 = scalar_lea.smem %s0, 32
  %s65 = sld [smem:[%s64]]
  %s66 = scalar_lea.smem %s0, 33
  %s67 = sld [smem:[%s66]]
  %s68 = scalar_lea.smem %s0, 34
  %s69 = sld [smem:[%s68]]
  %s70 = scalar_lea.smem %s0, 35
  %s71 = sld [smem:[%s70]]
  %s72 = scalar_lea.smem %s0, 36
  %s73 = sld [smem:[%s72]]
  %s74 = scalar_lea.smem %s0, 37
  %s75 = sld [smem:[%s74]]
  %s76 = scalar_lea.smem %s0, 38
  %s77 = sld [smem:[%s76]]
  %s78 = scalar_lea.smem %s0, 39
  %s79 = sld [smem:[%s78]]
  %s80 = scalar_lea.smem %s0, 40
  %s81 = sld [smem:[%s80]]
  %s82 = scalar_lea.smem %s0, 41
  %s83 = sld [smem:[%s82]]
  %s84 = scalar_lea.smem %s0, 42
  %s85 = sld [smem:[%s84]]
  %86 = xla_tuple %s81, %s83, %s85
  %s87 = sld [smem:[#allocation0]]
  $region186: #{translation_model_forward.1} parent=0
    _
  %s89 = ssub.s32 1, %s87
  %s90 = scalar_select 0, %s89, %s87
  $region1: #{translation_model_forward.1} parent=0
    #allocation2 [shape = 'u8[8192]{0}', space=vmem, size = 0x2000, scoped, tag = 'output window, operand 0, single buffered']
    #allocation3 [shape = 's32[1]{0}', space=sflag, size = 0x4, scoped, tag = 'scoped memory for translation_model_forward.1']
    #allocation4 [shape = 'u8[8192]{0}', space=vmem, size = 0x2000, scoped, tag = 'output window, operand 1, single buffered']
    #allocation5 [shape = 's32[1]{0}', space=sflag, size = 0x4, scoped, tag = 'scoped memory for translation_model_forward.1']
    %91 = vsyncpa [#allocation3], 0
    %92 = vsyncpa [#allocation5], 0
    // Predicated region
    $region2: #{translation_model_forward.1} parent=1 // pred_check
      _
    $region3: #{translation_model_forward.1} parent=1 // pred_check_branch
      %94 = sbr.rel (0) target = $region5
    $region4: #{translation_model_forward.1} parent=1 // pred_region
      _
    $region5: #{translation_model_forward.1} parent=1 // pred_fallthru
      _
    // Predicated region
    $region6: #{translation_model_forward.1} parent=1 // pred_check
      _
    $region7: #{translation_model_forward.1} parent=1 // pred_check_branch
      %96 = sbr.rel (0) target = $region9
    $region8: #{translation_model_forward.1} parent=1 // pred_region
      _
    $region9: #{translation_model_forward.1} parent=1 // pred_fallthru
      _
    // Predicated region
    $region10: #{translation_model_forward.1} parent=1 // pred_check
      _
    $region11: #{translation_model_forward.1} parent=1 // pred_check_branch
      %98 = sbr.rel (0) target = $region13
    $region12: #{translation_model_forward.1} parent=1 // pred_region
      _
    $region13: #{translation_model_forward.1} parent=1 // pred_fallthru
      _
    // Predicated region
    $region14: #{translation_model_forward.1} parent=1 // pred_check
      _
    $region15: #{translation_model_forward.1} parent=1 // pred_check_branch
      %100 = sbr.rel (0) target = $region17
    $region16: #{translation_model_forward.1} parent=1 // pred_region
      _
    $region17: #{translation_model_forward.1} parent=1 // pred_fallthru
      _
    // Predicated region
    $region18: #{translation_model_forward.1} parent=1 // pred_check
      _
    $region19: #{translation_model_forward.1} parent=1 // pred_check_branch
      %102 = sbr.rel (0) target = $region21
    $region20: #{translation_model_forward.1} parent=1 // pred_region
      _
    $region21: #{translation_model_forward.1} parent=1 // pred_fallthru
      _
    // Predicated region
    $region22: #{translation_model_forward.1} parent=1 // pred_check
      _
    $region23: #{translation_model_forward.1} parent=1 // pred_check_branch
      %104 = sbr.rel (0) target = $region25
    $region24: #{translation_model_forward.1} parent=1 // pred_region
      _
    $region25: #{translation_model_forward.1} parent=1 // pred_fallthru
      _
    // Predicated region
    $region26: #{translation_model_forward.1} parent=1 // pred_check
      _
    $region27: #{translation_model_forward.1} parent=1 // pred_check_branch
      %106 = sbr.rel (0) target = $region29
    $region28: #{translation_model_forward.1} parent=1 // pred_region
      _
    $region29: #{translation_model_forward.1} parent=1 // pred_fallthru
      _
    // Predicated region
    $region30: #{translation_model_forward.1} parent=1 // pred_check
      _
    $region31: #{translation_model_forward.1} parent=1 // pred_check_branch
      %108 = sbr.rel (0) target = $region33
    $region32: #{translation_model_forward.1} parent=1 // pred_region
      _
    $region33: #{translation_model_forward.1} parent=1 // pred_fallthru
      _
    // Predicated region
    $region34: #{translation_model_forward.1} parent=1 // pred_check
      _
    $region35: #{translation_model_forward.1} parent=1 // pred_check_branch
      %110 = sbr.rel (0) target = $region37
    $region36: #{translation_model_forward.1} parent=1 // pred_region
      _
    $region37: #{translation_model_forward.1} parent=1 // pred_fallthru
      _
    // Predicated region
    $region38: #{translation_model_forward.1} parent=1 // pred_check
      _
    $region39: #{translation_model_forward.1} parent=1 // pred_check_branch
      %112 = sbr.rel (0) target = $region41
    $region40: #{translation_model_forward.1} parent=1 // pred_region
      _
    $region41: #{translation_model_forward.1} parent=1 // pred_fallthru
      _
    // Predicated region
    $region42: #{translation_model_forward.1} parent=1 // pred_check
      _
    $region43: #{translation_model_forward.1} parent=1 // pred_check_branch
      %114 = sbr.rel (0) target = $region45
    $region44: #{translation_model_forward.1} parent=1 // pred_region
      _
    $region45: #{translation_model_forward.1} parent=1 // pred_fallthru
      _
    // Predicated region
    $region46: #{translation_model_forward.1} parent=1 // pred_check
      _
    $region47: #{translation_model_forward.1} parent=1 // pred_check_branch
      %116 = sbr.rel (0) target = $region49
    $region48: #{translation_model_forward.1} parent=1 // pred_region
      _
    $region49: #{translation_model_forward.1} parent=1 // pred_fallthru
      _
    // Predicated region
    $region50: #{translation_model_forward.1} parent=1 // pred_check
      _
    $region51: #{translation_model_forward.1} parent=1 // pred_check_branch
      %118 = sbr.rel (0) target = $region53
    $region52: #{translation_model_forward.1} parent=1 // pred_region
      _
    $region53: #{translation_model_forward.1} parent=1 // pred_fallthru
      _
    // Predicated region
    $region54: #{translation_model_forward.1} parent=1 // pred_check
      _
    $region55: #{translation_model_forward.1} parent=1 // pred_check_branch
      %120 = sbr.rel (0) target = $region57
    $region56: #{translation_model_forward.1} parent=1 // pred_region
      _
    $region57: #{translation_model_forward.1} parent=1 // pred_fallthru
      _
    // Predicated region
    $region58: #{translation_model_forward.1} parent=1 // pred_check
      _
    $region59: #{translation_model_forward.1} parent=1 // pred_check_branch
      %122 = sbr.rel (0) target = $region61
    $region60: #{translation_model_forward.1} parent=1 // pred_region
      _
    $region61: #{translation_model_forward.1} parent=1 // pred_fallthru
      _
    // Predicated region
    $region62: #{translation_model_forward.1} parent=1 // pred_check
      _
    $region63: #{translation_model_forward.1} parent=1 // pred_check_branch
      %124 = sbr.rel (0) target = $region65
    $region64: #{translation_model_forward.1} parent=1 // pred_region
      _
    $region65: #{translation_model_forward.1} parent=1 // pred_fallthru
      _
    // Predicated region
    $region66: #{translation_model_forward.1} parent=1 // pred_check
      _
    $region67: #{translation_model_forward.1} parent=1 // pred_check_branch
      %126 = sbr.rel (0) target = $region69
    $region68: #{translation_model_forward.1} parent=1 // pred_region
      _
    $region69: #{translation_model_forward.1} parent=1 // pred_fallthru
      _
    // Predicated region
    $region70: #{translation_model_forward.1} parent=1 // pred_check
      _
    $region71: #{translation_model_forward.1} parent=1 // pred_check_branch
      %128 = sbr.rel (0) target = $region73
    $region72: #{translation_model_forward.1} parent=1 // pred_region
      _
    $region73: #{translation_model_forward.1} parent=1 // pred_fallthru
      _
    // Predicated region
    $region74: #{translation_model_forward.1} parent=1 // pred_check
      _
    $region75: #{translation_model_forward.1} parent=1 // pred_check_branch
      %130 = sbr.rel (0) target = $region77
    $region76: #{translation_model_forward.1} parent=1 // pred_region
      _
    $region77: #{translation_model_forward.1} parent=1 // pred_fallthru
      _
    // Predicated region
    $region78: #{translation_model_forward.1} parent=1 // pred_check
      _
    $region79: #{translation_model_forward.1} parent=1 // pred_check_branch
      %132 = sbr.rel (0) target = $region81
    $region80: #{translation_model_forward.1} parent=1 // pred_region
      _
    $region81: #{translation_model_forward.1} parent=1 // pred_fallthru
      _
    // Predicated region
    $region82: #{translation_model_forward.1} parent=1 // pred_check
      _
    $region83: #{translation_model_forward.1} parent=1 // pred_check_branch
      %134 = sbr.rel (0) target = $region85
    $region84: #{translation_model_forward.1} parent=1 // pred_region
      _
    $region85: #{translation_model_forward.1} parent=1 // pred_fallthru
      _
    // Predicated region
    $region86: #{translation_model_forward.1} parent=1 // pred_check
      _
    $region87: #{translation_model_forward.1} parent=1 // pred_check_branch
      %136 = sbr.rel (0) target = $region89
    $region88: #{translation_model_forward.1} parent=1 // pred_region
      _
    $region89: #{translation_model_forward.1} parent=1 // pred_fallthru
      _
    // Predicated region
    $region90: #{translation_model_forward.1} parent=1 // pred_check
      _
    $region91: #{translation_model_forward.1} parent=1 // pred_check_branch
      %138 = sbr.rel (0) target = $region93
    $region92: #{translation_model_forward.1} parent=1 // pred_region
      _
    $region93: #{translation_model_forward.1} parent=1 // pred_fallthru
      _
    // Predicated region
    $region94: #{translation_model_forward.1} parent=1 // pred_check
      _
    $region95: #{translation_model_forward.1} parent=1 // pred_check_branch
      %140 = sbr.rel (0) target = $region97
    $region96: #{translation_model_forward.1} parent=1 // pred_region
      _
    $region97: #{translation_model_forward.1} parent=1 // pred_fallthru
      _
    // Predicated region
    $region98: #{translation_model_forward.1} parent=1 // pred_check
      _
    $region99: #{translation_model_forward.1} parent=1 // pred_check_branch
      %142 = sbr.rel (0) target = $region101
    $region100: #{translation_model_forward.1} parent=1 // pred_region
      _
    $region101: #{translation_model_forward.1} parent=1 // pred_fallthru
      _
    // Predicated region
    $region102: #{translation_model_forward.1} parent=1 // pred_check
      _
    $region103: #{translation_model_forward.1} parent=1 // pred_check_branch
      %144 = sbr.rel (0) target = $region105
    $region104: #{translation_model_forward.1} parent=1 // pred_region
      _
    $region105: #{translation_model_forward.1} parent=1 // pred_fallthru
      _
    // Predicated region
    $region106: #{translation_model_forward.1} parent=1 // pred_check
      _
    $region107: #{translation_model_forward.1} parent=1 // pred_check_branch
      %146 = sbr.rel (0) target = $region109
    $region108: #{translation_model_forward.1} parent=1 // pred_region
      _
    $region109: #{translation_model_forward.1} parent=1 // pred_fallthru
      _
    // Predicated region
    $region110: #{translation_model_forward.1} parent=1 // pred_check
      _
    $region111: #{translation_model_forward.1} parent=1 // pred_check_branch
      %148 = sbr.rel (0) target = $region113
    $region112: #{translation_model_forward.1} parent=1 // pred_region
      _
    $region113: #{translation_model_forward.1} parent=1 // pred_fallthru
      _
    // Predicated region
    $region114: #{translation_model_forward.1} parent=1 // pred_check
      _
    $region115: #{translation_model_forward.1} parent=1 // pred_check_branch
      %150 = sbr.rel (0) target = $region117
    $region116: #{translation_model_forward.1} parent=1 // pred_region
      _
    $region117: #{translation_model_forward.1} parent=1 // pred_fallthru
      _
    // Predicated region
    $region118: #{translation_model_forward.1} parent=1 // pred_check
      _
    $region119: #{translation_model_forward.1} parent=1 // pred_check_branch
      %152 = sbr.rel (0) target = $region121
    $region120: #{translation_model_forward.1} parent=1 // pred_region
      _
    $region121: #{translation_model_forward.1} parent=1 // pred_fallthru
      _
    // Predicated region
    $region122: #{translation_model_forward.1} parent=1 // pred_check
      _
    $region123: #{translation_model_forward.1} parent=1 // pred_check_branch
      %154 = sbr.rel (0) target = $region125
    $region124: #{translation_model_forward.1} parent=1 // pred_region
      _
    $region125: #{translation_model_forward.1} parent=1 // pred_fallthru
      _
    // Predicated region
    $region126: #{translation_model_forward.1} parent=1 // pred_check
      _
    $region127: #{translation_model_forward.1} parent=1 // pred_check_branch
      %156 = sbr.rel (0) target = $region129
    $region128: #{translation_model_forward.1} parent=1 // pred_region
      _
    $region129: #{translation_model_forward.1} parent=1 // pred_fallthru
      _
    // Predicated region
    $region130: #{translation_model_forward.1} parent=1 // pred_check
      _
    $region131: #{translation_model_forward.1} parent=1 // pred_check_branch
      %158 = sbr.rel (0) target = $region133
    $region132: #{translation_model_forward.1} parent=1 // pred_region
      _
    $region133: #{translation_model_forward.1} parent=1 // pred_fallthru
      _
    // Predicated region
    $region134: #{translation_model_forward.1} parent=1 // pred_check
      _
    $region135: #{translation_model_forward.1} parent=1 // pred_check_branch
      %160 = sbr.rel (0) target = $region137
    $region136: #{translation_model_forward.1} parent=1 // pred_region
      _
    $region137: #{translation_model_forward.1} parent=1 // pred_fallthru
      _
    // Predicated region
    $region138: #{translation_model_forward.1} parent=1 // pred_check
      _
    $region139: #{translation_model_forward.1} parent=1 // pred_check_branch
      %162 = sbr.rel (0) target = $region141
    $region140: #{translation_model_forward.1} parent=1 // pred_region
      _
    $region141: #{translation_model_forward.1} parent=1 // pred_fallthru
      _
    // Predicated region
    $region142: #{translation_model_forward.1} parent=1 // pred_check
      _
    $region143: #{translation_model_forward.1} parent=1 // pred_check_branch
      %164 = sbr.rel (0) target = $region145
    $region144: #{translation_model_forward.1} parent=1 // pred_region
      _
    $region145: #{translation_model_forward.1} parent=1 // pred_fallthru
      _
    // Predicated region
    $region146: #{translation_model_forward.1} parent=1 // pred_check
      _
    $region147: #{translation_model_forward.1} parent=1 // pred_check_branch
      %166 = sbr.rel (0) target = $region149
    $region148: #{translation_model_forward.1} parent=1 // pred_region
      _
    $region149: #{translation_model_forward.1} parent=1 // pred_fallthru
      _
    // Predicated region
    $region150: #{translation_model_forward.1} parent=1 // pred_check
      _
    $region151: #{translation_model_forward.1} parent=1 // pred_check_branch
      %168 = sbr.rel (0) target = $region153
    $region152: #{translation_model_forward.1} parent=1 // pred_region
      _
    $region153: #{translation_model_forward.1} parent=1 // pred_fallthru
      _
    // Predicated region
    $region154: #{translation_model_forward.1} parent=1 // pred_check
      _
    $region155: #{translation_model_forward.1} parent=1 // pred_check_branch
      %170 = sbr.rel (0) target = $region157
    $region156: #{translation_model_forward.1} parent=1 // pred_region
      _
    $region157: #{translation_model_forward.1} parent=1 // pred_fallthru
      _
    // Predicated region
    $region158: #{translation_model_forward.1} parent=1 // pred_check
      _
    $region159: #{translation_model_forward.1} parent=1 // pred_check_branch
      %172 = sbr.rel (0) target = $region161
    $region160: #{translation_model_forward.1} parent=1 // pred_region
      _
    $region161: #{translation_model_forward.1} parent=1 // pred_fallthru
      _
    %v174 = vld [vmem:[%s1] sm:$0xff]
    %v175 = vld [vmem:[%s1 + $0x8] sm:$0xff]
    %v176 = vld [vmem:[%s3] sm:$0xff]
    %v177 = vld [vmem:[%s3 + $0x8] sm:$0xff]
    %v178 = vld [vmem:[%s5] sm:$0xf]
    %v179 = vld [vmem:[%s5 + $0x4] sm:$0xf]
    %v180 = vld [vmem:[%s5 + $0x8] sm:$0xf]
    %v181 = vld [vmem:[%s5 + $0xc] sm:$0xf]
    %v182 = vld [vmem:[%s7] sm:$0x1]
    %v183 = vld [vmem:[%s9] sm:$0xf]
    %v184 = vld [vmem:[%s9 + $0x4] sm:$0xf]
    %v185 = vld [vmem:[%s9 + $0x8] sm:$0xf]
    %v186 = vld [vmem:[%s9 + $0xc] sm:$0xf]
    %v187 = vld [vmem:[%s11] sm:$0x1]
    %v188 = vpack.c.bf16 %v175, %v174
    %v190 = vperm.slane %v182, 0
    %v196 = vunpack.c.l.b16 %v178
    %v197 = vunpack.c.l.b16 %v179
    %v198 = vunpack.c.l.b16 %v180
    %v199 = vunpack.c.l.b16 %v181
    %v200 = vpack.c.b16 %v197, %v196
    %v201 = vpack.c.b16 %v199, %v198
    %vm204 = vcmask 261120
    %v206 = vsel %vm204, %v188, 0
    %208 = vmatpush.bf16.msra.mxu0 0
    %209 = vmatpush.bf16.msra.mxu0 0
    %210 = vmatpush.bf16.msra.mxu0 0
    %211 = vmatpush.bf16.msra.mxu0 0
    %212 = vmatpush.bf16.msra.mxu0 0
    %213 = vmatpush.bf16.msra.mxu0 0
    %214 = vmatpush.bf16.msra.mxu0 %v201
    %215 = vmatpush.bf16.msra.mxu0 %v200
    %216 = vmatmul.bf16.gmra.mxu0 %v206
    %v217 = vpop.f32.mrf.mxu0
    %v218 = vadd.f32 %v190, %v217
    %v219 = vpop.f32.mrf.mxu0
    %v220 = vadd.f32 %v190, %v219
    %221 = vdwg.mxu0
    %224 = vrot.lane.b32.xlu0 %v218, 96
    %v225 = vpop.permute.xlu0 %224
    %226 = vrot.lane.b32.xlu0 %v220, 96
    %v227 = vpop.permute.xlu0 %226
    %vm228 = vcmask 130048
    %v229 = vsel %vm228, %v218, 0
    %v231 = vsel %vm228, %v220, 0
    %v233 = vsel %vm228, %v225, 0
    %v235 = vsel %vm228, %v227, 0
    %237 = vmatpush.xpose.msra.mxu0 0.0
    %238 = vmatpush.xpose.msra.mxu0 0.0
    %239 = vmatpush.xpose.msra.mxu0 0.0
    %240 = vmatpush.xpose.msra.mxu0 0.0
    %241 = vmatpush.xpose.msra.mxu0 0.0
    %242 = vmatpush.xpose.msra.mxu0 0.0
    %243 = vmatpush.xpose.msra.mxu0 0.0
    %244 = vmatpush.xpose.msra.mxu0 0.0
    %245 = vmatpush.xpose.msra.mxu0 0.0
    %246 = vmatpush.xpose.msra.mxu0 0.0
    %247 = vmatpush.xpose.msra.mxu0 0.0
    %248 = vmatpush.xpose.msra.mxu0 0.0
    %249 = vmatpush.xpose.msra.mxu0 0.0
    %250 = vmatpush.xpose.msra.mxu0 0.0
    %251 = vmatpush.xpose.msra.mxu0 %v235
    %252 = vmatpush.xpose.msra.mxu0 %v233
    %253 = vmatmul.f32.gmra.mxu0 %v229
    %v254 = vpop.f32.mrf.mxu0
    %v255 = vadd.f32 0.0, %v254
    %256 = vmatmul.f32.gmra.mxu0 %v231
    %v257 = vpop.f32.mrf.mxu0
    %v258 = vadd.f32 0.0, %v257
    %259 = vdwg.mxu0
    %v260 = vmul.f32 %v255, 0.25
    %v261 = vmul.f32 %v258, 0.25
    %v262 = vadd.f32 %v260, %v176
    %v263 = vadd.f32 %v261, %v177
    %v264 = vsel %vm228, %v262, -inf
    %265 = vmax.xlane.f32.xlu0 %v264
    %v266 = vpop.xlane.xlu0 %265
    %v267 = vsel %vm228, %v263, -inf
    %268 = vmax.xlane.f32.xlu0 %v267
    %v269 = vpop.xlane.xlu0 %268
    %v270 = vsub.f32 %v262, %v266
    %v271 = vsub.f32 %v263, %v269
    %v272 = vmul.f32 %v270, 1.442695
    %v273 = vpow.pop %v272
    %v274 = vmul.f32 %v271, 1.442695
    %v275 = vpow.pop %v274
    %v276 = vsel %vm228, %v273, 0.0
    %277 = vadd.xlane.f32.xlu0 %v276
    %v278 = vpop.xlane.xlu0 %277
    %v279 = vsel %vm228, %v275, 0.0
    %280 = vadd.xlane.f32.xlu0 %v279
    %v281 = vpop.xlane.xlu0 %280
    %v282 = vrcp.pop %v278
    %v283 = vrcp.pop %v281
    %v284 = vmul.f32 %v273, %v282
    %v285 = vmul.f32 %v275, %v283
    %286 = vrot.lane.b32.xlu0 %v218, 64
    %v287 = vpop.permute.xlu0 %286
    %288 = vrot.lane.b32.xlu0 %v220, 64
    %v289 = vpop.permute.xlu0 %288
    %v293 = vsel %vm228, %v284, 0
    %v296 = vsel %vm228, %v285, 0
    %298 = vmatpush.msra.mxu0 0.0
    %299 = vmatpush.msra.mxu0 0.0
    %300 = vmatpush.msra.mxu0 0.0
    %301 = vmatpush.msra.mxu0 0.0
    %302 = vmatpush.msra.mxu0 0.0
    %303 = vmatpush.msra.mxu0 0.0
    %304 = vmatpush.msra.mxu0 0.0
    %305 = vmatpush.msra.mxu0 0.0
    %306 = vmatpush.msra.mxu0 0.0
    %307 = vmatpush.msra.mxu0 0.0
    %308 = vmatpush.msra.mxu0 0.0
    %309 = vmatpush.msra.mxu0 0.0
    %310 = vmatpush.msra.mxu0 0.0
    %311 = vmatpush.msra.mxu0 0.0
    %312 = vmatpush.msra.mxu0 %v289
    %313 = vmatpush.msra.mxu0 %v287
    %314 = vmatmul.f32.gmra.mxu0 %v293
    %v315 = vpop.f32.mrf.mxu0
    %v316 = vadd.f32 0.0, %v315
    %317 = vmatmul.f32.gmra.mxu0 %v296
    %v318 = vpop.f32.mrf.mxu0
    %v319 = vadd.f32 0.0, %v318
    %320 = vdwg.mxu0
    %v321 = vpack.c.bf16 %v319, %v316
    %322 = vrot.lane.b32.xlu0 %v218, 112
    %v323 = vpop.permute.xlu0 %322
    %324 = vrot.lane.b32.xlu0 %v220, 112
    %v325 = vpop.permute.xlu0 %324
    %326 = vrot.lane.b32.xlu0 %v218, 80
    %v327 = vpop.permute.xlu0 %326
    %328 = vrot.lane.b32.xlu0 %v220, 80
    %v329 = vpop.permute.xlu0 %328
    %v330 = vsel %vm228, %v323, 0
    %v332 = vsel %vm228, %v325, 0
    %v334 = vsel %vm228, %v327, 0
    %v336 = vsel %vm228, %v329, 0
    %338 = vmatpush.xpose.msra.mxu0 0.0
    %339 = vmatpush.xpose.msra.mxu0 0.0
    %340 = vmatpush.xpose.msra.mxu0 0.0
    %341 = vmatpush.xpose.msra.mxu0 0.0
    %342 = vmatpush.xpose.msra.mxu0 0.0
    %343 = vmatpush.xpose.msra.mxu0 0.0
    %344 = vmatpush.xpose.msra.mxu0 0.0
    %345 = vmatpush.xpose.msra.mxu0 0.0
    %346 = vmatpush.xpose.msra.mxu0 0.0
    %347 = vmatpush.xpose.msra.mxu0 0.0
    %348 = vmatpush.xpose.msra.mxu0 0.0
    %349 = vmatpush.xpose.msra.mxu0 0.0
    %350 = vmatpush.xpose.msra.mxu0 0.0
    %351 = vmatpush.xpose.msra.mxu0 0.0
    %352 = vmatpush.xpose.msra.mxu0 %v336
    %353 = vmatpush.xpose.msra.mxu0 %v334
    %354 = vmatmul.f32.gmra.mxu0 %v330
    %v355 = vpop.f32.mrf.mxu0
    %v356 = vadd.f32 0.0, %v355
    %357 = vmatmul.f32.gmra.mxu0 %v332
    %v358 = vpop.f32.mrf.mxu0
    %v359 = vadd.f32 0.0, %v358
    %360 = vdwg.mxu0
    %v361 = vmul.f32 %v356, 0.25
    %v362 = vmul.f32 %v359, 0.25
    %v363 = vadd.f32 %v361, %v176
    %v364 = vadd.f32 %v362, %v177
    %v365 = vsel %vm228, %v363, -inf
    %366 = vmax.xlane.f32.xlu0 %v365
    %v367 = vpop.xlane.xlu0 %366
    %v368 = vsel %vm228, %v364, -inf
    %369 = vmax.xlane.f32.xlu0 %v368
    %v370 = vpop.xlane.xlu0 %369
    %v371 = vsub.f32 %v363, %v367
    %v372 = vsub.f32 %v364, %v370
    %v373 = vmul.f32 %v371, 1.442695
    %v374 = vpow.pop %v373
    %v375 = vmul.f32 %v372, 1.442695
    %v376 = vpow.pop %v375
    %v377 = vsel %vm228, %v374, 0.0
    %378 = vadd.xlane.f32.xlu0 %v377
    %v379 = vpop.xlane.xlu0 %378
    %v380 = vsel %vm228, %v376, 0.0
    %381 = vadd.xlane.f32.xlu0 %v380
    %v382 = vpop.xlane.xlu0 %381
    %v383 = vrcp.pop %v379
    %v384 = vrcp.pop %v382
    %v385 = vmul.f32 %v374, %v383
    %v386 = vmul.f32 %v376, %v384
    %387 = vrot.lane.b32.xlu0 %v218, 48
    %v388 = vpop.permute.xlu0 %387
    %389 = vrot.lane.b32.xlu0 %v220, 48
    %v390 = vpop.permute.xlu0 %389
    %v394 = vsel %vm228, %v385, 0
    %v397 = vsel %vm228, %v386, 0
    %399 = vmatpush.msra.mxu0 0.0
    %400 = vmatpush.msra.mxu0 0.0
    %401 = vmatpush.msra.mxu0 0.0
    %402 = vmatpush.msra.mxu0 0.0
    %403 = vmatpush.msra.mxu0 0.0
    %404 = vmatpush.msra.mxu0 0.0
    %405 = vmatpush.msra.mxu0 0.0
    %406 = vmatpush.msra.mxu0 0.0
    %407 = vmatpush.msra.mxu0 0.0
    %408 = vmatpush.msra.mxu0 0.0
    %409 = vmatpush.msra.mxu0 0.0
    %410 = vmatpush.msra.mxu0 0.0
    %411 = vmatpush.msra.mxu0 0.0
    %412 = vmatpush.msra.mxu0 0.0
    %413 = vmatpush.msra.mxu0 %v390
    %414 = vmatpush.msra.mxu0 %v388
    %415 = vmatmul.f32.gmra.mxu0 %v394
    %v416 = vpop.f32.mrf.mxu0
    %v417 = vadd.f32 0.0, %v416
    %418 = vmatmul.f32.gmra.mxu0 %v397
    %v419 = vpop.f32.mrf.mxu0
    %v420 = vadd.f32 0.0, %v419
    %421 = vdwg.mxu0
    %v422 = vpack.c.bf16 %v420, %v417
    %v425 = vunpack.c.l.b16 %v185
    %v426 = vunpack.c.l.b16 %v186
    %v427 = vpack.c.b16 %v426, %v425
    %v430 = vsel %vm228, %v422, 0
    %432 = vmatpush.bf16.msra.mxu0 0
    %433 = vmatpush.bf16.msra.mxu0 0
    %434 = vmatpush.bf16.msra.mxu0 0
    %435 = vmatpush.bf16.msra.mxu0 0
    %436 = vmatpush.bf16.msra.mxu0 0
    %437 = vmatpush.bf16.msra.mxu0 0
    %438 = vmatpush.bf16.msra.mxu0 0
    %439 = vmatpush.bf16.msra.mxu0 %v427
    %440 = vmatmul.bf16.gmra.mxu0 %v430
    %v441 = vpop.f32.mrf.mxu0
    %v442 = vadd.f32 0.0, %v441
    %v443 = vpop.f32.mrf.mxu0
    %v444 = vadd.f32 0.0, %v443
    %445 = vdwg.mxu0
    %v448 = vunpack.c.l.b16 %v183
    %v449 = vunpack.c.l.b16 %v184
    %v450 = vpack.c.b16 %v449, %v448
    %v453 = vsel %vm228, %v321, 0
    %455 = vmatpush.bf16.msra.mxu0 0
    %456 = vmatpush.bf16.msra.mxu0 0
    %457 = vmatpush.bf16.msra.mxu0 0
    %458 = vmatpush.bf16.msra.mxu0 0
    %459 = vmatpush.bf16.msra.mxu0 0
    %460 = vmatpush.bf16.msra.mxu0 0
    %461 = vmatpush.bf16.msra.mxu0 0
    %462 = vmatpush.bf16.msra.mxu0 %v450
    %463 = vmatmul.bf16.gmra.mxu0 %v453
    %v464 = vpop.f32.mrf.mxu0
    %v465 = vadd.f32 %v442, %v464
    %v466 = vpop.f32.mrf.mxu0
    %v467 = vadd.f32 %v444, %v466
    %468 = vdwg.mxu0
    %v470 = vperm.slane %v187, 0
    %v472 = vadd.f32 %v465, %v470
    %v473 = vadd.f32 %v467, %v470
    %v474 = vadd.f32 %v174, %v472
    %v475 = vadd.f32 %v175, %v473
    %v476 = vld [vmem:[%s13] sm:$0x1]
    %v477 = vld [vmem:[%s15] sm:$0x1]
    %v478 = vsel %vm204, %v474, 0.0
    %479 = vadd.xlane.f32.xlu0 %v478
    %v480 = vpop.xlane.xlu0 %479
    %v481 = vsel %vm204, %v475, 0.0
    %482 = vadd.xlane.f32.xlu0 %v481
    %v483 = vpop.xlane.xlu0 %482
    %v484 = vrcp.pop 32.0
    %v485 = vmul.f32 32.0, %v484
    %v486 = vsub.f32 1.0, %v485
    %v487 = vmul.f32 %v484, %v486
    %v488 = vadd.f32 %v484, %v487
    %vm489 = vweird.f32 %v484
    %v490 = vsel %vm489, %v484, %v488
    %v491 = vmul.f32 %v480, %v490
    %v492 = vmul.f32 %v483, %v490
    %v493 = vsub.f32 %v474, %v491
    %v494 = vsub.f32 %v475, %v492
    %v495 = vmul.f32 %v493, %v493
    %v496 = vmul.f32 %v494, %v494
    %v497 = vsel %vm204, %v495, 0.0
    %498 = vadd.xlane.f32.xlu0 %v497
    %v499 = vpop.xlane.xlu0 %498
    %v500 = vsel %vm204, %v496, 0.0
    %501 = vadd.xlane.f32.xlu0 %v500
    %v502 = vpop.xlane.xlu0 %501
    %v503 = vmul.f32 %v499, %v490
    %v504 = vmul.f32 %v502, %v490
    %v505 = vadd.f32 %v503, 1e-05
    %v506 = vadd.f32 %v504, 1e-05
    %v507 = vrsqrt.pop %v505
    %v508 = vmul.f32 %v507, %v505
    %v509 = vmul.f32 %v508, %v507
    %v510 = vmul.f32 0.5, %v509
    %v511 = vsub.f32 1.5, %v510
    %v512 = vmul.f32 %v507, %v511
    %vm513 = vweird.f32 %v505
    %vm514 = vweird.f32 %v507
    %vm515 = vmor %vm513, %vm514
    %v516 = vsel %vm515, %v507, %v512
    %v517 = vrsqrt.pop %v506
    %v518 = vmul.f32 %v517, %v506
    %v519 = vmul.f32 %v518, %v517
    %v520 = vmul.f32 0.5, %v519
    %v521 = vsub.f32 1.5, %v520
    %v522 = vmul.f32 %v517, %v521
    %vm523 = vweird.f32 %v506
    %vm524 = vweird.f32 %v517
    %vm525 = vmor %vm523, %vm524
    %v526 = vsel %vm525, %v517, %v522
    %v527 = vmul.f32 %v493, %v516
    %v528 = vmul.f32 %v494, %v526
    %v530 = vperm.slane %v476, 0
    %v532 = vmul.f32 %v527, %v530
    %v533 = vmul.f32 %v528, %v530
    %v535 = vperm.slane %v477, 0
    %v537 = vadd.f32 %v532, %v535
    %v538 = vadd.f32 %v533, %v535
    %v539 = vld [vmem:[%s17] sm:$0xff]
    %v540 = vld [vmem:[%s17 + $0x8] sm:$0xff]
    %v541 = vld [vmem:[%s17 + $0x10] sm:$0xff]
    %v542 = vld [vmem:[%s17 + $0x18] sm:$0xff]
    %v543 = vld [vmem:[%s17 + $0x20] sm:$0xff]
    %v544 = vld [vmem:[%s17 + $0x28] sm:$0xff]
    %v545 = vld [vmem:[%s17 + $0x30] sm:$0xff]
    %v546 = vld [vmem:[%s17 + $0x38] sm:$0xff]
    %v547 = vld [vmem:[%s17 + $0x40] sm:$0xff]
    %v548 = vld [vmem:[%s17 + $0x48] sm:$0xff]
    %v549 = vld [vmem:[%s17 + $0x50] sm:$0xff]
    %v550 = vld [vmem:[%s17 + $0x58] sm:$0xff]
    %v551 = vld [vmem:[%s17 + $0x60] sm:$0xff]
    %v552 = vld [vmem:[%s17 + $0x68] sm:$0xff]
    %v553 = vld [vmem:[%s17 + $0x70] sm:$0xff]
    %v554 = vld [vmem:[%s17 + $0x78] sm:$0xff]
    %v555 = vld [vmem:[%s17 + $0x80] sm:$0xff]
    %v556 = vld [vmem:[%s17 + $0x88] sm:$0xff]
    %v557 = vld [vmem:[%s17 + $0x90] sm:$0xff]
    %v558 = vld [vmem:[%s17 + $0x98] sm:$0xff]
    %v559 = vld [vmem:[%s17 + $0xa0] sm:$0xff]
    %v560 = vld [vmem:[%s17 + $0xa8] sm:$0xff]
    %v561 = vld [vmem:[%s17 + $0xb0] sm:$0xff]
    %v562 = vld [vmem:[%s17 + $0xb8] sm:$0xff]
    %v563 = vld [vmem:[%s17 + $0xc0] sm:$0xff]
    %v564 = vld [vmem:[%s17 + $0xc8] sm:$0xff]
    %v565 = vld [vmem:[%s17 + $0xd0] sm:$0xff]
    %v566 = vld [vmem:[%s17 + $0xd8] sm:$0xff]
    %v567 = vld [vmem:[%s17 + $0xe0] sm:$0xff]
    %v568 = vld [vmem:[%s17 + $0xe8] sm:$0xff]
    %v569 = vld [vmem:[%s17 + $0xf0] sm:$0xff]
    %v570 = vld [vmem:[%s17 + $0xf8] sm:$0xff]
    %v571 = vld [vmem:[%s19] sm:$0xff]
    %v572 = vld [vmem:[%s19 + $0x8] sm:$0xff]
    %v573 = vld [vmem:[%s21] sm:$0xf]
    %v574 = vld [vmem:[%s21 + $0x4] sm:$0xf]
    %v575 = vld [vmem:[%s21 + $0x8] sm:$0xf]
    %v576 = vld [vmem:[%s21 + $0xc] sm:$0xf]
    %v577 = vld [vmem:[%s21 + $0x10] sm:$0xf]
    %v578 = vld [vmem:[%s21 + $0x14] sm:$0xf]
    %v579 = vld [vmem:[%s21 + $0x18] sm:$0xf]
    %v580 = vld [vmem:[%s21 + $0x1c] sm:$0xf]
    %v581 = vld [vmem:[%s21 + $0x20] sm:$0xf]
    %v582 = vld [vmem:[%s21 + $0x24] sm:$0xf]
    %v583 = vld [vmem:[%s21 + $0x28] sm:$0xf]
    %v584 = vld [vmem:[%s21 + $0x2c] sm:$0xf]
    %v585 = vld [vmem:[%s21 + $0x30] sm:$0xf]
    %v586 = vld [vmem:[%s21 + $0x34] sm:$0xf]
    %v587 = vld [vmem:[%s21 + $0x38] sm:$0xf]
    %v588 = vld [vmem:[%s21 + $0x3c] sm:$0xf]
    %v589 = vld [vmem:[%s21 + $0x40] sm:$0xf]
    %v590 = vld [vmem:[%s21 + $0x44] sm:$0xf]
    %v591 = vld [vmem:[%s21 + $0x48] sm:$0xf]
    %v592 = vld [vmem:[%s21 + $0x4c] sm:$0xf]
    %v593 = vld [vmem:[%s21 + $0x50] sm:$0xf]
    %v594 = vld [vmem:[%s21 + $0x54] sm:$0xf]
    %v595 = vld [vmem:[%s21 + $0x58] sm:$0xf]
    %v596 = vld [vmem:[%s21 + $0x5c] sm:$0xf]
    %v597 = vld [vmem:[%s21 + $0x60] sm:$0xf]
    %v598 = vld [vmem:[%s21 + $0x64] sm:$0xf]
    %v599 = vld [vmem:[%s21 + $0x68] sm:$0xf]
    %v600 = vld [vmem:[%s21 + $0x6c] sm:$0xf]
    %v601 = vld [vmem:[%s21 + $0x70] sm:$0xf]
    %v602 = vld [vmem:[%s21 + $0x74] sm:$0xf]
    %v603 = vld [vmem:[%s21 + $0x78] sm:$0xf]
    %v604 = vld [vmem:[%s21 + $0x7c] sm:$0xf]
    %v605 = vld [vmem:[%s21 + $0x80] sm:$0xf]
    %v606 = vld [vmem:[%s21 + $0x84] sm:$0xf]
    %v607 = vld [vmem:[%s21 + $0x88] sm:$0xf]
    %v608 = vld [vmem:[%s21 + $0x8c] sm:$0xf]
    %v609 = vld [vmem:[%s21 + $0x90] sm:$0xf]
    %v610 = vld [vmem:[%s21 + $0x94] sm:$0xf]
    %v611 = vld [vmem:[%s21 + $0x98] sm:$0xf]
    %v612 = vld [vmem:[%s21 + $0x9c] sm:$0xf]
    %v613 = vld [vmem:[%s21 + $0xa0] sm:$0xf]
    %v614 = vld [vmem:[%s21 + $0xa4] sm:$0xf]
    %v615 = vld [vmem:[%s21 + $0xa8] sm:$0xf]
    %v616 = vld [vmem:[%s21 + $0xac] sm:$0xf]
    %v617 = vld [vmem:[%s21 + $0xb0] sm:$0xf]
    %v618 = vld [vmem:[%s21 + $0xb4] sm:$0xf]
    %v619 = vld [vmem:[%s21 + $0xb8] sm:$0xf]
    %v620 = vld [vmem:[%s21 + $0xbc] sm:$0xf]
    %v621 = vld [vmem:[%s21 + $0xc0] sm:$0xf]
    %v622 = vld [vmem:[%s21 + $0xc4] sm:$0xf]
    %v623 = vld [vmem:[%s21 + $0xc8] sm:$0xf]
    %v624 = vld [vmem:[%s21 + $0xcc] sm:$0xf]
    %v625 = vld [vmem:[%s21 + $0xd0] sm:$0xf]
    %v626 = vld [vmem:[%s21 + $0xd4] sm:$0xf]
    %v627 = vld [vmem:[%s21 + $0xd8] sm:$0xf]
    %v628 = vld [vmem:[%s21 + $0xdc] sm:$0xf]
    %v629 = vld [vmem:[%s21 + $0xe0] sm:$0xf]
    %v630 = vld [vmem:[%s21 + $0xe4] sm:$0xf]
    %v631 = vld [vmem:[%s21 + $0xe8] sm:$0xf]
    %v632 = vld [vmem:[%s21 + $0xec] sm:$0xf]
    %v633 = vld [vmem:[%s21 + $0xf0] sm:$0xf]
    %v634 = vld [vmem:[%s21 + $0xf4] sm:$0xf]
    %v635 = vld [vmem:[%s21 + $0xf8] sm:$0xf]
    %v636 = vld [vmem:[%s21 + $0xfc] sm:$0xf]
    %v637 = vld [vmem:[%s21 + $0x100] sm:$0xf]
    %v638 = vld [vmem:[%s21 + $0x104] sm:$0xf]
    %v639 = vld [vmem:[%s21 + $0x108] sm:$0xf]
    %v640 = vld [vmem:[%s21 + $0x10c] sm:$0xf]
    %v641 = vld [vmem:[%s21 + $0x110] sm:$0xf]
    %v642 = vld [vmem:[%s21 + $0x114] sm:$0xf]
    %v643 = vld [vmem:[%s21 + $0x118] sm:$0xf]
    %v644 = vld [vmem:[%s21 + $0x11c] sm:$0xf]
    %v645 = vld [vmem:[%s21 + $0x120] sm:$0xf]
    %v646 = vld [vmem:[%s21 + $0x124] sm:$0xf]
    %v647 = vld [vmem:[%s21 + $0x128] sm:$0xf]
    %v648 = vld [vmem:[%s21 + $0x12c] sm:$0xf]
    %v649 = vld [vmem:[%s21 + $0x130] sm:$0xf]
    %v650 = vld [vmem:[%s21 + $0x134] sm:$0xf]
    %v651 = vld [vmem:[%s21 + $0x138] sm:$0xf]
    %v652 = vld [vmem:[%s21 + $0x13c] sm:$0xf]
    %v653 = vld [vmem:[%s21 + $0x140] sm:$0xf]
    %v654 = vld [vmem:[%s21 + $0x144] sm:$0xf]
    %v655 = vld [vmem:[%s21 + $0x148] sm:$0xf]
    %v656 = vld [vmem:[%s21 + $0x14c] sm:$0xf]
    %v657 = vld [vmem:[%s21 + $0x150] sm:$0xf]
    %v658 = vld [vmem:[%s21 + $0x154] sm:$0xf]
    %v659 = vld [vmem:[%s21 + $0x158] sm:$0xf]
    %v660 = vld [vmem:[%s21 + $0x15c] sm:$0xf]
    %v661 = vld [vmem:[%s21 + $0x160] sm:$0xf]
    %v662 = vld [vmem:[%s21 + $0x164] sm:$0xf]
    %v663 = vld [vmem:[%s21 + $0x168] sm:$0xf]
    %v664 = vld [vmem:[%s21 + $0x16c] sm:$0xf]
    %v665 = vld [vmem:[%s21 + $0x170] sm:$0xf]
    %v666 = vld [vmem:[%s21 + $0x174] sm:$0xf]
    %v667 = vld [vmem:[%s21 + $0x178] sm:$0xf]
    %v668 = vld [vmem:[%s21 + $0x17c] sm:$0xf]
    %v669 = vld [vmem:[%s21 + $0x180] sm:$0xf]
    %v670 = vld [vmem:[%s21 + $0x184] sm:$0xf]
    %v671 = vld [vmem:[%s21 + $0x188] sm:$0xf]
    %v672 = vld [vmem:[%s21 + $0x18c] sm:$0xf]
    %v673 = vld [vmem:[%s21 + $0x190] sm:$0xf]
    %v674 = vld [vmem:[%s21 + $0x194] sm:$0xf]
    %v675 = vld [vmem:[%s21 + $0x198] sm:$0xf]
    %v676 = vld [vmem:[%s21 + $0x19c] sm:$0xf]
    %v677 = vld [vmem:[%s21 + $0x1a0] sm:$0xf]
    %v678 = vld [vmem:[%s21 + $0x1a4] sm:$0xf]
    %v679 = vld [vmem:[%s21 + $0x1a8] sm:$0xf]
    %v680 = vld [vmem:[%s21 + $0x1ac] sm:$0xf]
    %v681 = vld [vmem:[%s21 + $0x1b0] sm:$0xf]
    %v682 = vld [vmem:[%s21 + $0x1b4] sm:$0xf]
    %v683 = vld [vmem:[%s21 + $0x1b8] sm:$0xf]
    %v684 = vld [vmem:[%s21 + $0x1bc] sm:$0xf]
    %v685 = vld [vmem:[%s21 + $0x1c0] sm:$0xf]
    %v686 = vld [vmem:[%s21 + $0x1c4] sm:$0xf]
    %v687 = vld [vmem:[%s21 + $0x1c8] sm:$0xf]
    %v688 = vld [vmem:[%s21 + $0x1cc] sm:$0xf]
    %v689 = vld [vmem:[%s21 + $0x1d0] sm:$0xf]
    %v690 = vld [vmem:[%s21 + $0x1d4] sm:$0xf]
    %v691 = vld [vmem:[%s21 + $0x1d8] sm:$0xf]
    %v692 = vld [vmem:[%s21 + $0x1dc] sm:$0xf]
    %v693 = vld [vmem:[%s21 + $0x1e0] sm:$0xf]
    %v694 = vld [vmem:[%s21 + $0x1e4] sm:$0xf]
    %v695 = vld [vmem:[%s21 + $0x1e8] sm:$0xf]
    %v696 = vld [vmem:[%s21 + $0x1ec] sm:$0xf]
    %v697 = vld [vmem:[%s21 + $0x1f0] sm:$0xf]
    %v698 = vld [vmem:[%s21 + $0x1f4] sm:$0xf]
    %v699 = vld [vmem:[%s21 + $0x1f8] sm:$0xf]
    %v700 = vld [vmem:[%s21 + $0x1fc] sm:$0xf]
    %v701 = vld [vmem:[%s21 + $0x200] sm:$0xf]
    %v702 = vld [vmem:[%s21 + $0x204] sm:$0xf]
    %v703 = vld [vmem:[%s21 + $0x208] sm:$0xf]
    %v704 = vld [vmem:[%s21 + $0x20c] sm:$0xf]
    %v705 = vld [vmem:[%s21 + $0x210] sm:$0xf]
    %v706 = vld [vmem:[%s21 + $0x214] sm:$0xf]
    %v707 = vld [vmem:[%s21 + $0x218] sm:$0xf]
    %v708 = vld [vmem:[%s21 + $0x21c] sm:$0xf]
    %v709 = vld [vmem:[%s21 + $0x220] sm:$0xf]
    %v710 = vld [vmem:[%s21 + $0x224] sm:$0xf]
    %v711 = vld [vmem:[%s21 + $0x228] sm:$0xf]
    %v712 = vld [vmem:[%s21 + $0x22c] sm:$0xf]
    %v713 = vld [vmem:[%s21 + $0x230] sm:$0xf]
    %v714 = vld [vmem:[%s21 + $0x234] sm:$0xf]
    %v715 = vld [vmem:[%s21 + $0x238] sm:$0xf]
    %v716 = vld [vmem:[%s21 + $0x23c] sm:$0xf]
    %v717 = vld [vmem:[%s21 + $0x240] sm:$0xf]
    %v718 = vld [vmem:[%s21 + $0x244] sm:$0xf]
    %v719 = vld [vmem:[%s21 + $0x248] sm:$0xf]
    %v720 = vld [vmem:[%s21 + $0x24c] sm:$0xf]
    %v721 = vld [vmem:[%s21 + $0x250] sm:$0xf]
    %v722 = vld [vmem:[%s21 + $0x254] sm:$0xf]
    %v723 = vld [vmem:[%s21 + $0x258] sm:$0xf]
    %v724 = vld [vmem:[%s21 + $0x25c] sm:$0xf]
    %v725 = vld [vmem:[%s21 + $0x260] sm:$0xf]
    %v726 = vld [vmem:[%s21 + $0x264] sm:$0xf]
    %v727 = vld [vmem:[%s21 + $0x268] sm:$0xf]
    %v728 = vld [vmem:[%s21 + $0x26c] sm:$0xf]
    %v729 = vld [vmem:[%s21 + $0x270] sm:$0xf]
    %v730 = vld [vmem:[%s21 + $0x274] sm:$0xf]
    %v731 = vld [vmem:[%s21 + $0x278] sm:$0xf]
    %v732 = vld [vmem:[%s21 + $0x27c] sm:$0xf]
    %v733 = vld [vmem:[%s21 + $0x280] sm:$0xf]
    %v734 = vld [vmem:[%s21 + $0x284] sm:$0xf]
    %v735 = vld [vmem:[%s21 + $0x288] sm:$0xf]
    %v736 = vld [vmem:[%s21 + $0x28c] sm:$0xf]
    %v737 = vld [vmem:[%s21 + $0x290] sm:$0xf]
    %v738 = vld [vmem:[%s21 + $0x294] sm:$0xf]
    %v739 = vld [vmem:[%s21 + $0x298] sm:$0xf]
    %v740 = vld [vmem:[%s21 + $0x29c] sm:$0xf]
    %v741 = vld [vmem:[%s21 + $0x2a0] sm:$0xf]
    %v742 = vld [vmem:[%s21 + $0x2a4] sm:$0xf]
    %v743 = vld [vmem:[%s21 + $0x2a8] sm:$0xf]
    %v744 = vld [vmem:[%s21 + $0x2ac] sm:$0xf]
    %v745 = vld [vmem:[%s21 + $0x2b0] sm:$0xf]
    %v746 = vld [vmem:[%s21 + $0x2b4] sm:$0xf]
    %v747 = vld [vmem:[%s21 + $0x2b8] sm:$0xf]
    %v748 = vld [vmem:[%s21 + $0x2bc] sm:$0xf]
    %v749 = vld [vmem:[%s21 + $0x2c0] sm:$0xf]
    %v750 = vld [vmem:[%s21 + $0x2c4] sm:$0xf]
    %v751 = vld [vmem:[%s21 + $0x2c8] sm:$0xf]
    %v752 = vld [vmem:[%s21 + $0x2cc] sm:$0xf]
    %v753 = vld [vmem:[%s21 + $0x2d0] sm:$0xf]
    %v754 = vld [vmem:[%s21 + $0x2d4] sm:$0xf]
    %v755 = vld [vmem:[%s21 + $0x2d8] sm:$0xf]
    %v756 = vld [vmem:[%s21 + $0x2dc] sm:$0xf]
    %v757 = vld [vmem:[%s21 + $0x2e0] sm:$0xf]
    %v758 = vld [vmem:[%s21 + $0x2e4] sm:$0xf]
    %v759 = vld [vmem:[%s21 + $0x2e8] sm:$0xf]
    %v760 = vld [vmem:[%s21 + $0x2ec] sm:$0xf]
    %v761 = vld [vmem:[%s21 + $0x2f0] sm:$0xf]
    %v762 = vld [vmem:[%s21 + $0x2f4] sm:$0xf]
    %v763 = vld [vmem:[%s21 + $0x2f8] sm:$0xf]
    %v764 = vld [vmem:[%s21 + $0x2fc] sm:$0xf]
    %v765 = vld [vmem:[%s21 + $0x300] sm:$0xf]
    %v766 = vld [vmem:[%s21 + $0x304] sm:$0xf]
    %v767 = vld [vmem:[%s21 + $0x308] sm:$0xf]
    %v768 = vld [vmem:[%s21 + $0x30c] sm:$0xf]
    %v769 = vld [vmem:[%s21 + $0x310] sm:$0xf]
    %v770 = vld [vmem:[%s21 + $0x314] sm:$0xf]
    %v771 = vld [vmem:[%s21 + $0x318] sm:$0xf]
    %v772 = vld [vmem:[%s21 + $0x31c] sm:$0xf]
    %v773 = vld [vmem:[%s21 + $0x320] sm:$0xf]
    %v774 = vld [vmem:[%s21 + $0x324] sm:$0xf]
    %v775 = vld [vmem:[%s21 + $0x328] sm:$0xf]
    %v776 = vld [vmem:[%s21 + $0x32c] sm:$0xf]
    %v777 = vld [vmem:[%s21 + $0x330] sm:$0xf]
    %v778 = vld [vmem:[%s21 + $0x334] sm:$0xf]
    %v779 = vld [vmem:[%s21 + $0x338] sm:$0xf]
    %v780 = vld [vmem:[%s21 + $0x33c] sm:$0xf]
    %v781 = vld [vmem:[%s21 + $0x340] sm:$0xf]
    %v782 = vld [vmem:[%s21 + $0x344] sm:$0xf]
    %v783 = vld [vmem:[%s21 + $0x348] sm:$0xf]
    %v784 = vld [vmem:[%s21 + $0x34c] sm:$0xf]
    %v785 = vld [vmem:[%s21 + $0x350] sm:$0xf]
    %v786 = vld [vmem:[%s21 + $0x354] sm:$0xf]
    %v787 = vld [vmem:[%s21 + $0x358] sm:$0xf]
    %v788 = vld [vmem:[%s21 + $0x35c] sm:$0xf]
    %v789 = vld [vmem:[%s21 + $0x360] sm:$0xf]
    %v790 = vld [vmem:[%s21 + $0x364] sm:$0xf]
    %v791 = vld [vmem:[%s21 + $0x368] sm:$0xf]
    %v792 = vld [vmem:[%s21 + $0x36c] sm:$0xf]
    %v793 = vld [vmem:[%s21 + $0x370] sm:$0xf]
    %v794 = vld [vmem:[%s21 + $0x374] sm:$0xf]
    %v795 = vld [vmem:[%s21 + $0x378] sm:$0xf]
    %v796 = vld [vmem:[%s21 + $0x37c] sm:$0xf]
    %v797 = vld [vmem:[%s21 + $0x380] sm:$0xf]
    %v798 = vld [vmem:[%s21 + $0x384] sm:$0xf]
    %v799 = vld [vmem:[%s21 + $0x388] sm:$0xf]
    %v800 = vld [vmem:[%s21 + $0x38c] sm:$0xf]
    %v801 = vld [vmem:[%s21 + $0x390] sm:$0xf]
    %v802 = vld [vmem:[%s21 + $0x394] sm:$0xf]
    %v803 = vld [vmem:[%s21 + $0x398] sm:$0xf]
    %v804 = vld [vmem:[%s21 + $0x39c] sm:$0xf]
    %v805 = vld [vmem:[%s21 + $0x3a0] sm:$0xf]
    %v806 = vld [vmem:[%s21 + $0x3a4] sm:$0xf]
    %v807 = vld [vmem:[%s21 + $0x3a8] sm:$0xf]
    %v808 = vld [vmem:[%s21 + $0x3ac] sm:$0xf]
    %v809 = vld [vmem:[%s21 + $0x3b0] sm:$0xf]
    %v810 = vld [vmem:[%s21 + $0x3b4] sm:$0xf]
    %v811 = vld [vmem:[%s21 + $0x3b8] sm:$0xf]
    %v812 = vld [vmem:[%s21 + $0x3bc] sm:$0xf]
    %v813 = vld [vmem:[%s21 + $0x3c0] sm:$0xf]
    %v814 = vld [vmem:[%s21 + $0x3c4] sm:$0xf]
    %v815 = vld [vmem:[%s21 + $0x3c8] sm:$0xf]
    %v816 = vld [vmem:[%s21 + $0x3cc] sm:$0xf]
    %v817 = vld [vmem:[%s21 + $0x3d0] sm:$0xf]
    %v818 = vld [vmem:[%s21 + $0x3d4] sm:$0xf]
    %v819 = vld [vmem:[%s21 + $0x3d8] sm:$0xf]
    %v820 = vld [vmem:[%s21 + $0x3dc] sm:$0xf]
    %v821 = vld [vmem:[%s21 + $0x3e0] sm:$0xf]
    %v822 = vld [vmem:[%s21 + $0x3e4] sm:$0xf]
    %v823 = vld [vmem:[%s21 + $0x3e8] sm:$0xf]
    %v824 = vld [vmem:[%s21 + $0x3ec] sm:$0xf]
    %v825 = vld [vmem:[%s21 + $0x3f0] sm:$0xf]
    %v826 = vld [vmem:[%s21 + $0x3f4] sm:$0xf]
    %v827 = vld [vmem:[%s21 + $0x3f8] sm:$0xf]
    %v828 = vld [vmem:[%s21 + $0x3fc] sm:$0xf]
    %v829 = vld [vmem:[%s23] sm:$0x1]
    %v830 = vpack.c.bf16 %v538, %v537
    %v833 = vperm.slane %v571, 0
    %v834 = vperm.slane %v571, 1
    %v835 = vperm.slane %v571, 2
    %v836 = vperm.slane %v571, 3
    %v837 = vperm.slane %v571, 4
    %v838 = vperm.slane %v571, 5
    %v839 = vperm.slane %v571, 6
    %v840 = vperm.slane %v571, 7
    %v841 = vperm.slane %v572, 0
    %v842 = vperm.slane %v572, 1
    %v843 = vperm.slane %v572, 2
    %v844 = vperm.slane %v572, 3
    %v845 = vperm.slane %v572, 4
    %v846 = vperm.slane %v572, 5
    %v847 = vperm.slane %v572, 6
    %v848 = vperm.slane %v572, 7
    %v897 = vunpack.c.l.b16 %v539
    %v898 = vunpack.c.h.b16 %v539
    %v899 = vunpack.c.l.b16 %v540
    %v900 = vunpack.c.h.b16 %v540
    %v901 = vunpack.c.l.b16 %v541
    %v902 = vunpack.c.h.b16 %v541
    %v903 = vunpack.c.l.b16 %v542
    %v904 = vunpack.c.h.b16 %v542
    %v905 = vunpack.c.l.b16 %v543
    %v906 = vunpack.c.h.b16 %v543
    %v907 = vunpack.c.l.b16 %v544
    %v908 = vunpack.c.h.b16 %v544
    %v909 = vunpack.c.l.b16 %v545
    %v910 = vunpack.c.h.b16 %v545
    %v911 = vunpack.c.l.b16 %v546
    %v912 = vunpack.c.h.b16 %v546
    %v913 = vunpack.c.l.b16 %v547
    %v914 = vunpack.c.h.b16 %v547
    %v915 = vunpack.c.l.b16 %v548
    %v916 = vunpack.c.h.b16 %v548
    %v917 = vunpack.c.l.b16 %v549
    %v918 = vunpack.c.h.b16 %v549
    %v919 = vunpack.c.l.b16 %v550
    %v920 = vunpack.c.h.b16 %v550
    %v921 = vunpack.c.l.b16 %v551
    %v922 = vunpack.c.h.b16 %v551
    %v923 = vunpack.c.l.b16 %v552
    %v924 = vunpack.c.h.b16 %v552
    %v925 = vunpack.c.l.b16 %v553
    %v926 = vunpack.c.h.b16 %v553
    %v927 = vunpack.c.l.b16 %v554
    %v928 = vunpack.c.h.b16 %v554
    %v929 = vunpack.c.l.b16 %v555
    %v930 = vunpack.c.h.b16 %v555
    %v931 = vunpack.c.l.b16 %v556
    %v932 = vunpack.c.h.b16 %v556
    %v933 = vunpack.c.l.b16 %v557
    %v934 = vunpack.c.h.b16 %v557
    %v935 = vunpack.c.l.b16 %v558
    %v936 = vunpack.c.h.b16 %v558
    %v937 = vunpack.c.l.b16 %v559
    %v938 = vunpack.c.h.b16 %v559
    %v939 = vunpack.c.l.b16 %v560
    %v940 = vunpack.c.h.b16 %v560
    %v941 = vunpack.c.l.b16 %v561
    %v942 = vunpack.c.h.b16 %v561
    %v943 = vunpack.c.l.b16 %v562
    %v944 = vunpack.c.h.b16 %v562
    %v945 = vunpack.c.l.b16 %v563
    %v946 = vunpack.c.h.b16 %v563
    %v947 = vunpack.c.l.b16 %v564
    %v948 = vunpack.c.h.b16 %v564
    %v949 = vunpack.c.l.b16 %v565
    %v950 = vunpack.c.h.b16 %v565
    %v951 = vunpack.c.l.b16 %v566
    %v952 = vunpack.c.h.b16 %v566
    %v953 = vunpack.c.l.b16 %v567
    %v954 = vunpack.c.h.b16 %v567
    %v955 = vunpack.c.l.b16 %v568
    %v956 = vunpack.c.h.b16 %v568
    %v957 = vunpack.c.l.b16 %v569
    %v958 = vunpack.c.h.b16 %v569
    %v959 = vunpack.c.l.b16 %v570
    %v960 = vunpack.c.h.b16 %v570
    %v961 = vpack.c.b16 %v913, %v897
    %v962 = vpack.c.b16 %v914, %v898
    %v963 = vpack.c.b16 %v915, %v899
    %v964 = vpack.c.b16 %v916, %v900
    %v965 = vpack.c.b16 %v917, %v901
    %v966 = vpack.c.b16 %v918, %v902
    %v967 = vpack.c.b16 %v919, %v903
    %v968 = vpack.c.b16 %v920, %v904
    %v969 = vpack.c.b16 %v921, %v905
    %v970 = vpack.c.b16 %v922, %v906
    %v971 = vpack.c.b16 %v923, %v907
    %v972 = vpack.c.b16 %v924, %v908
    %v973 = vpack.c.b16 %v925, %v909
    %v974 = vpack.c.b16 %v926, %v910
    %v975 = vpack.c.b16 %v927, %v911
    %v976 = vpack.c.b16 %v928, %v912
    %v977 = vpack.c.b16 %v945, %v929
    %v978 = vpack.c.b16 %v946, %v930
    %v979 = vpack.c.b16 %v947, %v931
    %v980 = vpack.c.b16 %v948, %v932
    %v981 = vpack.c.b16 %v949, %v933
    %v982 = vpack.c.b16 %v950, %v934
    %v983 = vpack.c.b16 %v951, %v935
    %v984 = vpack.c.b16 %v952, %v936
    %v985 = vpack.c.b16 %v953, %v937
    %v986 = vpack.c.b16 %v954, %v938
    %v987 = vpack.c.b16 %v955, %v939
    %v988 = vpack.c.b16 %v956, %v940
    %v989 = vpack.c.b16 %v957, %v941
    %v990 = vpack.c.b16 %v958, %v942
    %v991 = vpack.c.b16 %v959, %v943
    %v992 = vpack.c.b16 %v960, %v944
    %v1026 = vsel %vm204, %v830, 0
    %1028 = vmatpush.bf16.msra.mxu0 0
    %1029 = vmatpush.bf16.msra.mxu0 0
    %1030 = vmatpush.bf16.msra.mxu0 0
    %1031 = vmatpush.bf16.msra.mxu0 0
    %1032 = vmatpush.bf16.msra.mxu0 0
    %1033 = vmatpush.bf16.msra.mxu0 0
    %1034 = vmatpush.bf16.msra.mxu0 %v977
    %1035 = vmatpush.bf16.msra.mxu0 %v961
    %1036 = vmatmul.bf16.gmra.mxu0 %v1026
    %v1037 = vpop.f32.mrf.mxu0
    %v1038 = vadd.f32 %v833, %v1037
    %v1039 = vpop.f32.mrf.mxu0
    %v1040 = vadd.f32 %v833, %v1039
    %1041 = vdwg.mxu0
    %1042 = vmatpush.bf16.msra.mxu0 0
    %1043 = vmatpush.bf16.msra.mxu0 0
    %1044 = vmatpush.bf16.msra.mxu0 0
    %1045 = vmatpush.bf16.msra.mxu0 0
    %1046 = vmatpush.bf16.msra.mxu0 0
    %1047 = vmatpush.bf16.msra.mxu0 0
    %1048 = vmatpush.bf16.msra.mxu0 %v978
    %1049 = vmatpush.bf16.msra.mxu0 %v962
    %1050 = vmatmul.bf16.gmra.mxu0 %v1026
    %v1051 = vpop.f32.mrf.mxu0
    %v1052 = vadd.f32 %v834, %v1051
    %v1053 = vpop.f32.mrf.mxu0
    %v1054 = vadd.f32 %v834, %v1053
    %1055 = vdwg.mxu0
    %1056 = vmatpush.bf16.msra.mxu0 0
    %1057 = vmatpush.bf16.msra.mxu0 0
    %1058 = vmatpush.bf16.msra.mxu0 0
    %1059 = vmatpush.bf16.msra.mxu0 0
    %1060 = vmatpush.bf16.msra.mxu0 0
    %1061 = vmatpush.bf16.msra.mxu0 0
    %1062 = vmatpush.bf16.msra.mxu0 %v979
    %1063 = vmatpush.bf16.msra.mxu0 %v963
    %1064 = vmatmul.bf16.gmra.mxu0 %v1026
    %v1065 = vpop.f32.mrf.mxu0
    %v1066 = vadd.f32 %v835, %v1065
    %v1067 = vpop.f32.mrf.mxu0
    %v1068 = vadd.f32 %v835, %v1067
    %1069 = vdwg.mxu0
    %1070 = vmatpush.bf16.msra.mxu0 0
    %1071 = vmatpush.bf16.msra.mxu0 0
    %1072 = vmatpush.bf16.msra.mxu0 0
    %1073 = vmatpush.bf16.msra.mxu0 0
    %1074 = vmatpush.bf16.msra.mxu0 0
    %1075 = vmatpush.bf16.msra.mxu0 0
    %1076 = vmatpush.bf16.msra.mxu0 %v980
    %1077 = vmatpush.bf16.msra.mxu0 %v964
    %1078 = vmatmul.bf16.gmra.mxu0 %v1026
    %v1079 = vpop.f32.mrf.mxu0
    %v1080 = vadd.f32 %v836, %v1079
    %v1081 = vpop.f32.mrf.mxu0
    %v1082 = vadd.f32 %v836, %v1081
    %1083 = vdwg.mxu0
    %1084 = vmatpush.bf16.msra.mxu0 0
    %1085 = vmatpush.bf16.msra.mxu0 0
    %1086 = vmatpush.bf16.msra.mxu0 0
    %1087 = vmatpush.bf16.msra.mxu0 0
    %1088 = vmatpush.bf16.msra.mxu0 0
    %1089 = vmatpush.bf16.msra.mxu0 0
    %1090 = vmatpush.bf16.msra.mxu0 %v981
    %1091 = vmatpush.bf16.msra.mxu0 %v965
    %1092 = vmatmul.bf16.gmra.mxu0 %v1026
    %v1093 = vpop.f32.mrf.mxu0
    %v1094 = vadd.f32 %v837, %v1093
    %v1095 = vpop.f32.mrf.mxu0
    %v1096 = vadd.f32 %v837, %v1095
    %1097 = vdwg.mxu0
    %1098 = vmatpush.bf16.msra.mxu0 0
    %1099 = vmatpush.bf16.msra.mxu0 0
    %1100 = vmatpush.bf16.msra.mxu0 0
    %1101 = vmatpush.bf16.msra.mxu0 0
    %1102 = vmatpush.bf16.msra.mxu0 0
    %1103 = vmatpush.bf16.msra.mxu0 0
    %1104 = vmatpush.bf16.msra.mxu0 %v982
    %1105 = vmatpush.bf16.msra.mxu0 %v966
    %1106 = vmatmul.bf16.gmra.mxu0 %v1026
    %v1107 = vpop.f32.mrf.mxu0
    %v1108 = vadd.f32 %v838, %v1107
    %v1109 = vpop.f32.mrf.mxu0
    %v1110 = vadd.f32 %v838, %v1109
    %1111 = vdwg.mxu0
    %1112 = vmatpush.bf16.msra.mxu0 0
    %1113 = vmatpush.bf16.msra.mxu0 0
    %1114 = vmatpush.bf16.msra.mxu0 0
    %1115 = vmatpush.bf16.msra.mxu0 0
    %1116 = vmatpush.bf16.msra.mxu0 0
    %1117 = vmatpush.bf16.msra.mxu0 0
    %1118 = vmatpush.bf16.msra.mxu0 %v983
    %1119 = vmatpush.bf16.msra.mxu0 %v967
    %1120 = vmatmul.bf16.gmra.mxu0 %v1026
    %v1121 = vpop.f32.mrf.mxu0
    %v1122 = vadd.f32 %v839, %v1121
    %v1123 = vpop.f32.mrf.mxu0
    %v1124 = vadd.f32 %v839, %v1123
    %1125 = vdwg.mxu0
    %1126 = vmatpush.bf16.msra.mxu0 0
    %1127 = vmatpush.bf16.msra.mxu0 0
    %1128 = vmatpush.bf16.msra.mxu0 0
    %1129 = vmatpush.bf16.msra.mxu0 0
    %1130 = vmatpush.bf16.msra.mxu0 0
    %1131 = vmatpush.bf16.msra.mxu0 0
    %1132 = vmatpush.bf16.msra.mxu0 %v984
    %1133 = vmatpush.bf16.msra.mxu0 %v968
    %1134 = vmatmul.bf16.gmra.mxu0 %v1026
    %v1135 = vpop.f32.mrf.mxu0
    %v1136 = vadd.f32 %v840, %v1135
    %v1137 = vpop.f32.mrf.mxu0
    %v1138 = vadd.f32 %v840, %v1137
    %1139 = vdwg.mxu0
    %1140 = vmatpush.bf16.msra.mxu0 0
    %1141 = vmatpush.bf16.msra.mxu0 0
    %1142 = vmatpush.bf16.msra.mxu0 0
    %1143 = vmatpush.bf16.msra.mxu0 0
    %1144 = vmatpush.bf16.msra.mxu0 0
    %1145 = vmatpush.bf16.msra.mxu0 0
    %1146 = vmatpush.bf16.msra.mxu0 %v985
    %1147 = vmatpush.bf16.msra.mxu0 %v969
    %1148 = vmatmul.bf16.gmra.mxu0 %v1026
    %v1149 = vpop.f32.mrf.mxu0
    %v1150 = vadd.f32 %v841, %v1149
    %v1151 = vpop.f32.mrf.mxu0
    %v1152 = vadd.f32 %v841, %v1151
    %1153 = vdwg.mxu0
    %1154 = vmatpush.bf16.msra.mxu0 0
    %1155 = vmatpush.bf16.msra.mxu0 0
    %1156 = vmatpush.bf16.msra.mxu0 0
    %1157 = vmatpush.bf16.msra.mxu0 0
    %1158 = vmatpush.bf16.msra.mxu0 0
    %1159 = vmatpush.bf16.msra.mxu0 0
    %1160 = vmatpush.bf16.msra.mxu0 %v986
    %1161 = vmatpush.bf16.msra.mxu0 %v970
    %1162 = vmatmul.bf16.gmra.mxu0 %v1026
    %v1163 = vpop.f32.mrf.mxu0
    %v1164 = vadd.f32 %v842, %v1163
    %v1165 = vpop.f32.mrf.mxu0
    %v1166 = vadd.f32 %v842, %v1165
    %1167 = vdwg.mxu0
    %1168 = vmatpush.bf16.msra.mxu0 0
    %1169 = vmatpush.bf16.msra.mxu0 0
    %1170 = vmatpush.bf16.msra.mxu0 0
    %1171 = vmatpush.bf16.msra.mxu0 0
    %1172 = vmatpush.bf16.msra.mxu0 0
    %1173 = vmatpush.bf16.msra.mxu0 0
    %1174 = vmatpush.bf16.msra.mxu0 %v987
    %1175 = vmatpush.bf16.msra.mxu0 %v971
    %1176 = vmatmul.bf16.gmra.mxu0 %v1026
    %v1177 = vpop.f32.mrf.mxu0
    %v1178 = vadd.f32 %v843, %v1177
    %v1179 = vpop.f32.mrf.mxu0
    %v1180 = vadd.f32 %v843, %v1179
    %1181 = vdwg.mxu0
    %1182 = vmatpush.bf16.msra.mxu0 0
    %1183 = vmatpush.bf16.msra.mxu0 0
    %1184 = vmatpush.bf16.msra.mxu0 0
    %1185 = vmatpush.bf16.msra.mxu0 0
    %1186 = vmatpush.bf16.msra.mxu0 0
    %1187 = vmatpush.bf16.msra.mxu0 0
    %1188 = vmatpush.bf16.msra.mxu0 %v988
    %1189 = vmatpush.bf16.msra.mxu0 %v972
    %1190 = vmatmul.bf16.gmra.mxu0 %v1026
    %v1191 = vpop.f32.mrf.mxu0
    %v1192 = vadd.f32 %v844, %v1191
    %v1193 = vpop.f32.mrf.mxu0
    %v1194 = vadd.f32 %v844, %v1193
    %1195 = vdwg.mxu0
    %1196 = vmatpush.bf16.msra.mxu0 0
    %1197 = vmatpush.bf16.msra.mxu0 0
    %1198 = vmatpush.bf16.msra.mxu0 0
    %1199 = vmatpush.bf16.msra.mxu0 0
    %1200 = vmatpush.bf16.msra.mxu0 0
    %1201 = vmatpush.bf16.msra.mxu0 0
    %1202 = vmatpush.bf16.msra.mxu0 %v989
    %1203 = vmatpush.bf16.msra.mxu0 %v973
    %1204 = vmatmul.bf16.gmra.mxu0 %v1026
    %v1205 = vpop.f32.mrf.mxu0
    %v1206 = vadd.f32 %v845, %v1205
    %v1207 = vpop.f32.mrf.mxu0
    %v1208 = vadd.f32 %v845, %v1207
    %1209 = vdwg.mxu0
    %1210 = vmatpush.bf16.msra.mxu0 0
    %1211 = vmatpush.bf16.msra.mxu0 0
    %1212 = vmatpush.bf16.msra.mxu0 0
    %1213 = vmatpush.bf16.msra.mxu0 0
    %1214 = vmatpush.bf16.msra.mxu0 0
    %1215 = vmatpush.bf16.msra.mxu0 0
    %1216 = vmatpush.bf16.msra.mxu0 %v990
    %1217 = vmatpush.bf16.msra.mxu0 %v974
    %1218 = vmatmul.bf16.gmra.mxu0 %v1026
    %v1219 = vpop.f32.mrf.mxu0
    %v1220 = vadd.f32 %v846, %v1219
    %v1221 = vpop.f32.mrf.mxu0
    %v1222 = vadd.f32 %v846, %v1221
    %1223 = vdwg.mxu0
    %1224 = vmatpush.bf16.msra.mxu0 0
    %1225 = vmatpush.bf16.msra.mxu0 0
    %1226 = vmatpush.bf16.msra.mxu0 0
    %1227 = vmatpush.bf16.msra.mxu0 0
    %1228 = vmatpush.bf16.msra.mxu0 0
    %1229 = vmatpush.bf16.msra.mxu0 0
    %1230 = vmatpush.bf16.msra.mxu0 %v991
    %1231 = vmatpush.bf16.msra.mxu0 %v975
    %1232 = vmatmul.bf16.gmra.mxu0 %v1026
    %v1233 = vpop.f32.mrf.mxu0
    %v1234 = vadd.f32 %v847, %v1233
    %v1235 = vpop.f32.mrf.mxu0
    %v1236 = vadd.f32 %v847, %v1235
    %1237 = vdwg.mxu0
    %1238 = vmatpush.bf16.msra.mxu0 0
    %1239 = vmatpush.bf16.msra.mxu0 0
    %1240 = vmatpush.bf16.msra.mxu0 0
    %1241 = vmatpush.bf16.msra.mxu0 0
    %1242 = vmatpush.bf16.msra.mxu0 0
    %1243 = vmatpush.bf16.msra.mxu0 0
    %1244 = vmatpush.bf16.msra.mxu0 %v992
    %1245 = vmatpush.bf16.msra.mxu0 %v976
    %1246 = vmatmul.bf16.gmra.mxu0 %v1026
    %v1247 = vpop.f32.mrf.mxu0
    %v1248 = vadd.f32 %v848, %v1247
    %v1249 = vpop.f32.mrf.mxu0
    %v1250 = vadd.f32 %v848, %v1249
    %1251 = vdwg.mxu0
    %v1252 = vmax.f32 %v1038, 0.0
    %v1253 = vmax.f32 %v1052, 0.0
    %v1254 = vmax.f32 %v1066, 0.0
    %v1255 = vmax.f32 %v1080, 0.0
    %v1256 = vmax.f32 %v1094, 0.0
    %v1257 = vmax.f32 %v1108, 0.0
    %v1258 = vmax.f32 %v1122, 0.0
    %v1259 = vmax.f32 %v1136, 0.0
    %v1260 = vmax.f32 %v1150, 0.0
    %v1261 = vmax.f32 %v1164, 0.0
    %v1262 = vmax.f32 %v1178, 0.0
    %v1263 = vmax.f32 %v1192, 0.0
    %v1264 = vmax.f32 %v1206, 0.0
    %v1265 = vmax.f32 %v1220, 0.0
    %v1266 = vmax.f32 %v1234, 0.0
    %v1267 = vmax.f32 %v1248, 0.0
    %v1268 = vmax.f32 %v1040, 0.0
    %v1269 = vmax.f32 %v1054, 0.0
    %v1270 = vmax.f32 %v1068, 0.0
    %v1271 = vmax.f32 %v1082, 0.0
    %v1272 = vmax.f32 %v1096, 0.0
    %v1273 = vmax.f32 %v1110, 0.0
    %v1274 = vmax.f32 %v1124, 0.0
    %v1275 = vmax.f32 %v1138, 0.0
    %v1276 = vmax.f32 %v1152, 0.0
    %v1277 = vmax.f32 %v1166, 0.0
    %v1278 = vmax.f32 %v1180, 0.0
    %v1279 = vmax.f32 %v1194, 0.0
    %v1280 = vmax.f32 %v1208, 0.0
    %v1281 = vmax.f32 %v1222, 0.0
    %v1282 = vmax.f32 %v1236, 0.0
    %v1283 = vmax.f32 %v1250, 0.0
    %v1284 = vpack.c.bf16 %v1268, %v1252
    %v1285 = vpack.c.bf16 %v1269, %v1253
    %v1286 = vpack.c.bf16 %v1270, %v1254
    %v1287 = vpack.c.bf16 %v1271, %v1255
    %v1288 = vpack.c.bf16 %v1272, %v1256
    %v1289 = vpack.c.bf16 %v1273, %v1257
    %v1290 = vpack.c.bf16 %v1274, %v1258
    %v1291 = vpack.c.bf16 %v1275, %v1259
    %v1292 = vpack.c.bf16 %v1276, %v1260
    %v1293 = vpack.c.bf16 %v1277, %v1261
    %v1294 = vpack.c.bf16 %v1278, %v1262
    %v1295 = vpack.c.bf16 %v1279, %v1263
    %v1296 = vpack.c.bf16 %v1280, %v1264
    %v1297 = vpack.c.bf16 %v1281, %v1265
    %v1298 = vpack.c.bf16 %v1282, %v1266
    %v1299 = vpack.c.bf16 %v1283, %v1267
    %v1301 = vperm.slane %v829, 0
    %v1559 = vunpack.c.l.b16 %v573
    %v1560 = vunpack.c.l.b16 %v574
    %v1561 = vunpack.c.l.b16 %v575
    %v1562 = vunpack.c.l.b16 %v576
    %v1563 = vunpack.c.l.b16 %v577
    %v1564 = vunpack.c.l.b16 %v578
    %v1565 = vunpack.c.l.b16 %v579
    %v1566 = vunpack.c.l.b16 %v580
    %v1567 = vunpack.c.l.b16 %v581
    %v1568 = vunpack.c.l.b16 %v582
    %v1569 = vunpack.c.l.b16 %v583
    %v1570 = vunpack.c.l.b16 %v584
    %v1571 = vunpack.c.l.b16 %v585
    %v1572 = vunpack.c.l.b16 %v586
    %v1573 = vunpack.c.l.b16 %v587
    %v1574 = vunpack.c.l.b16 %v588
    %v1575 = vunpack.c.l.b16 %v589
    %v1576 = vunpack.c.l.b16 %v590
    %v1577 = vunpack.c.l.b16 %v591
    %v1578 = vunpack.c.l.b16 %v592
    %v1579 = vunpack.c.l.b16 %v593
    %v1580 = vunpack.c.l.b16 %v594
    %v1581 = vunpack.c.l.b16 %v595
    %v1582 = vunpack.c.l.b16 %v596
    %v1583 = vunpack.c.l.b16 %v597
    %v1584 = vunpack.c.l.b16 %v598
    %v1585 = vunpack.c.l.b16 %v599
    %v1586 = vunpack.c.l.b16 %v600
    %v1587 = vunpack.c.l.b16 %v601
    %v1588 = vunpack.c.l.b16 %v602
    %v1589 = vunpack.c.l.b16 %v603
    %v1590 = vunpack.c.l.b16 %v604
    %v1591 = vunpack.c.l.b16 %v605
    %v1592 = vunpack.c.l.b16 %v606
    %v1593 = vunpack.c.l.b16 %v607
    %v1594 = vunpack.c.l.b16 %v608
    %v1595 = vunpack.c.l.b16 %v609
    %v1596 = vunpack.c.l.b16 %v610
    %v1597 = vunpack.c.l.b16 %v611
    %v1598 = vunpack.c.l.b16 %v612
    %v1599 = vunpack.c.l.b16 %v613
    %v1600 = vunpack.c.l.b16 %v614
    %v1601 = vunpack.c.l.b16 %v615
    %v1602 = vunpack.c.l.b16 %v616
    %v1603 = vunpack.c.l.b16 %v617
    %v1604 = vunpack.c.l.b16 %v618
    %v1605 = vunpack.c.l.b16 %v619
    %v1606 = vunpack.c.l.b16 %v620
    %v1607 = vunpack.c.l.b16 %v621
    %v1608 = vunpack.c.l.b16 %v622
    %v1609 = vunpack.c.l.b16 %v623
    %v1610 = vunpack.c.l.b16 %v624
    %v1611 = vunpack.c.l.b16 %v625
    %v1612 = vunpack.c.l.b16 %v626
    %v1613 = vunpack.c.l.b16 %v627
    %v1614 = vunpack.c.l.b16 %v628
    %v1615 = vunpack.c.l.b16 %v629
    %v1616 = vunpack.c.l.b16 %v630
    %v1617 = vunpack.c.l.b16 %v631
    %v1618 = vunpack.c.l.b16 %v632
    %v1619 = vunpack.c.l.b16 %v633
    %v1620 = vunpack.c.l.b16 %v634
    %v1621 = vunpack.c.l.b16 %v635
    %v1622 = vunpack.c.l.b16 %v636
    %v1623 = vunpack.c.l.b16 %v637
    %v1624 = vunpack.c.l.b16 %v638
    %v1625 = vunpack.c.l.b16 %v639
    %v1626 = vunpack.c.l.b16 %v640
    %v1627 = vunpack.c.l.b16 %v641
    %v1628 = vunpack.c.l.b16 %v642
    %v1629 = vunpack.c.l.b16 %v643
    %v1630 = vunpack.c.l.b16 %v644
    %v1631 = vunpack.c.l.b16 %v645
    %v1632 = vunpack.c.l.b16 %v646
    %v1633 = vunpack.c.l.b16 %v647
    %v1634 = vunpack.c.l.b16 %v648
    %v1635 = vunpack.c.l.b16 %v649
    %v1636 = vunpack.c.l.b16 %v650
    %v1637 = vunpack.c.l.b16 %v651
    %v1638 = vunpack.c.l.b16 %v652
    %v1639 = vunpack.c.l.b16 %v653
    %v1640 = vunpack.c.l.b16 %v654
    %v1641 = vunpack.c.l.b16 %v655
    %v1642 = vunpack.c.l.b16 %v656
    %v1643 = vunpack.c.l.b16 %v657
    %v1644 = vunpack.c.l.b16 %v658
    %v1645 = vunpack.c.l.b16 %v659
    %v1646 = vunpack.c.l.b16 %v660
    %v1647 = vunpack.c.l.b16 %v661
    %v1648 = vunpack.c.l.b16 %v662
    %v1649 = vunpack.c.l.b16 %v663
    %v1650 = vunpack.c.l.b16 %v664
    %v1651 = vunpack.c.l.b16 %v665
    %v1652 = vunpack.c.l.b16 %v666
    %v1653 = vunpack.c.l.b16 %v667
    %v1654 = vunpack.c.l.b16 %v668
    %v1655 = vunpack.c.l.b16 %v669
    %v1656 = vunpack.c.l.b16 %v670
    %v1657 = vunpack.c.l.b16 %v671
    %v1658 = vunpack.c.l.b16 %v672
    %v1659 = vunpack.c.l.b16 %v673
    %v1660 = vunpack.c.l.b16 %v674
    %v1661 = vunpack.c.l.b16 %v675
    %v1662 = vunpack.c.l.b16 %v676
    %v1663 = vunpack.c.l.b16 %v677
    %v1664 = vunpack.c.l.b16 %v678
    %v1665 = vunpack.c.l.b16 %v679
    %v1666 = vunpack.c.l.b16 %v680
    %v1667 = vunpack.c.l.b16 %v681
    %v1668 = vunpack.c.l.b16 %v682
    %v1669 = vunpack.c.l.b16 %v683
    %v1670 = vunpack.c.l.b16 %v684
    %v1671 = vunpack.c.l.b16 %v685
    %v1672 = vunpack.c.l.b16 %v686
    %v1673 = vunpack.c.l.b16 %v687
    %v1674 = vunpack.c.l.b16 %v688
    %v1675 = vunpack.c.l.b16 %v689
    %v1676 = vunpack.c.l.b16 %v690
    %v1677 = vunpack.c.l.b16 %v691
    %v1678 = vunpack.c.l.b16 %v692
    %v1679 = vunpack.c.l.b16 %v693
    %v1680 = vunpack.c.l.b16 %v694
    %v1681 = vunpack.c.l.b16 %v695
    %v1682 = vunpack.c.l.b16 %v696
    %v1683 = vunpack.c.l.b16 %v697
    %v1684 = vunpack.c.l.b16 %v698
    %v1685 = vunpack.c.l.b16 %v699
    %v1686 = vunpack.c.l.b16 %v700
    %v1687 = vunpack.c.l.b16 %v701
    %v1688 = vunpack.c.l.b16 %v702
    %v1689 = vunpack.c.l.b16 %v703
    %v1690 = vunpack.c.l.b16 %v704
    %v1691 = vunpack.c.l.b16 %v705
    %v1692 = vunpack.c.l.b16 %v706
    %v1693 = vunpack.c.l.b16 %v707
    %v1694 = vunpack.c.l.b16 %v708
    %v1695 = vunpack.c.l.b16 %v709
    %v1696 = vunpack.c.l.b16 %v710
    %v1697 = vunpack.c.l.b16 %v711
    %v1698 = vunpack.c.l.b16 %v712
    %v1699 = vunpack.c.l.b16 %v713
    %v1700 = vunpack.c.l.b16 %v714
    %v1701 = vunpack.c.l.b16 %v715
    %v1702 = vunpack.c.l.b16 %v716
    %v1703 = vunpack.c.l.b16 %v717
    %v1704 = vunpack.c.l.b16 %v718
    %v1705 = vunpack.c.l.b16 %v719
    %v1706 = vunpack.c.l.b16 %v720
    %v1707 = vunpack.c.l.b16 %v721
    %v1708 = vunpack.c.l.b16 %v722
    %v1709 = vunpack.c.l.b16 %v723
    %v1710 = vunpack.c.l.b16 %v724
    %v1711 = vunpack.c.l.b16 %v725
    %v1712 = vunpack.c.l.b16 %v726
    %v1713 = vunpack.c.l.b16 %v727
    %v1714 = vunpack.c.l.b16 %v728
    %v1715 = vunpack.c.l.b16 %v729
    %v1716 = vunpack.c.l.b16 %v730
    %v1717 = vunpack.c.l.b16 %v731
    %v1718 = vunpack.c.l.b16 %v732
    %v1719 = vunpack.c.l.b16 %v733
    %v1720 = vunpack.c.l.b16 %v734
    %v1721 = vunpack.c.l.b16 %v735
    %v1722 = vunpack.c.l.b16 %v736
    %v1723 = vunpack.c.l.b16 %v737
    %v1724 = vunpack.c.l.b16 %v738
    %v1725 = vunpack.c.l.b16 %v739
    %v1726 = vunpack.c.l.b16 %v740
    %v1727 = vunpack.c.l.b16 %v741
    %v1728 = vunpack.c.l.b16 %v742
    %v1729 = vunpack.c.l.b16 %v743
    %v1730 = vunpack.c.l.b16 %v744
    %v1731 = vunpack.c.l.b16 %v745
    %v1732 = vunpack.c.l.b16 %v746
    %v1733 = vunpack.c.l.b16 %v747
    %v1734 = vunpack.c.l.b16 %v748
    %v1735 = vunpack.c.l.b16 %v749
    %v1736 = vunpack.c.l.b16 %v750
    %v1737 = vunpack.c.l.b16 %v751
    %v1738 = vunpack.c.l.b16 %v752
    %v1739 = vunpack.c.l.b16 %v753
    %v1740 = vunpack.c.l.b16 %v754
    %v1741 = vunpack.c.l.b16 %v755
    %v1742 = vunpack.c.l.b16 %v756
    %v1743 = vunpack.c.l.b16 %v757
    %v1744 = vunpack.c.l.b16 %v758
    %v1745 = vunpack.c.l.b16 %v759
    %v1746 = vunpack.c.l.b16 %v760
    %v1747 = vunpack.c.l.b16 %v761
    %v1748 = vunpack.c.l.b16 %v762
    %v1749 = vunpack.c.l.b16 %v763
    %v1750 = vunpack.c.l.b16 %v764
    %v1751 = vunpack.c.l.b16 %v765
    %v1752 = vunpack.c.l.b16 %v766
    %v1753 = vunpack.c.l.b16 %v767
    %v1754 = vunpack.c.l.b16 %v768
    %v1755 = vunpack.c.l.b16 %v769
    %v1756 = vunpack.c.l.b16 %v770
    %v1757 = vunpack.c.l.b16 %v771
    %v1758 = vunpack.c.l.b16 %v772
    %v1759 = vunpack.c.l.b16 %v773
    %v1760 = vunpack.c.l.b16 %v774
    %v1761 = vunpack.c.l.b16 %v775
    %v1762 = vunpack.c.l.b16 %v776
    %v1763 = vunpack.c.l.b16 %v777
    %v1764 = vunpack.c.l.b16 %v778
    %v1765 = vunpack.c.l.b16 %v779
    %v1766 = vunpack.c.l.b16 %v780
    %v1767 = vunpack.c.l.b16 %v781
    %v1768 = vunpack.c.l.b16 %v782
    %v1769 = vunpack.c.l.b16 %v783
    %v1770 = vunpack.c.l.b16 %v784
    %v1771 = vunpack.c.l.b16 %v785
    %v1772 = vunpack.c.l.b16 %v786
    %v1773 = vunpack.c.l.b16 %v787
    %v1774 = vunpack.c.l.b16 %v788
    %v1775 = vunpack.c.l.b16 %v789
    %v1776 = vunpack.c.l.b16 %v790
    %v1777 = vunpack.c.l.b16 %v791
    %v1778 = vunpack.c.l.b16 %v792
    %v1779 = vunpack.c.l.b16 %v793
    %v1780 = vunpack.c.l.b16 %v794
    %v1781 = vunpack.c.l.b16 %v795
    %v1782 = vunpack.c.l.b16 %v796
    %v1783 = vunpack.c.l.b16 %v797
    %v1784 = vunpack.c.l.b16 %v798
    %v1785 = vunpack.c.l.b16 %v799
    %v1786 = vunpack.c.l.b16 %v800
    %v1787 = vunpack.c.l.b16 %v801
    %v1788 = vunpack.c.l.b16 %v802
    %v1789 = vunpack.c.l.b16 %v803
    %v1790 = vunpack.c.l.b16 %v804
    %v1791 = vunpack.c.l.b16 %v805
    %v1792 = vunpack.c.l.b16 %v806
    %v1793 = vunpack.c.l.b16 %v807
    %v1794 = vunpack.c.l.b16 %v808
    %v1795 = vunpack.c.l.b16 %v809
    %v1796 = vunpack.c.l.b16 %v810
    %v1797 = vunpack.c.l.b16 %v811
    %v1798 = vunpack.c.l.b16 %v812
    %v1799 = vunpack.c.l.b16 %v813
    %v1800 = vunpack.c.l.b16 %v814
    %v1801 = vunpack.c.l.b16 %v815
    %v1802 = vunpack.c.l.b16 %v816
    %v1803 = vunpack.c.l.b16 %v817
    %v1804 = vunpack.c.l.b16 %v818
    %v1805 = vunpack.c.l.b16 %v819
    %v1806 = vunpack.c.l.b16 %v820
    %v1807 = vunpack.c.l.b16 %v821
    %v1808 = vunpack.c.l.b16 %v822
    %v1809 = vunpack.c.l.b16 %v823
    %v1810 = vunpack.c.l.b16 %v824
    %v1811 = vunpack.c.l.b16 %v825
    %v1812 = vunpack.c.l.b16 %v826
    %v1813 = vunpack.c.l.b16 %v827
    %v1814 = vunpack.c.l.b16 %v828
    %v1815 = vpack.c.b16 %v1560, %v1559
    %v1816 = vpack.c.b16 %v1562, %v1561
    %v1817 = vpack.c.b16 %v1564, %v1563
    %v1818 = vpack.c.b16 %v1566, %v1565
    %v1819 = vpack.c.b16 %v1568, %v1567
    %v1820 = vpack.c.b16 %v1570, %v1569
    %v1821 = vpack.c.b16 %v1572, %v1571
    %v1822 = vpack.c.b16 %v1574, %v1573
    %v1823 = vpack.c.b16 %v1576, %v1575
    %v1824 = vpack.c.b16 %v1578, %v1577
    %v1825 = vpack.c.b16 %v1580, %v1579
    %v1826 = vpack.c.b16 %v1582, %v1581
    %v1827 = vpack.c.b16 %v1584, %v1583
    %v1828 = vpack.c.b16 %v1586, %v1585
    %v1829 = vpack.c.b16 %v1588, %v1587
    %v1830 = vpack.c.b16 %v1590, %v1589
    %v1831 = vpack.c.b16 %v1592, %v1591
    %v1832 = vpack.c.b16 %v1594, %v1593
    %v1833 = vpack.c.b16 %v1596, %v1595
    %v1834 = vpack.c.b16 %v1598, %v1597
    %v1835 = vpack.c.b16 %v1600, %v1599
    %v1836 = vpack.c.b16 %v1602, %v1601
    %v1837 = vpack.c.b16 %v1604, %v1603
    %v1838 = vpack.c.b16 %v1606, %v1605
    %v1839 = vpack.c.b16 %v1608, %v1607
    %v1840 = vpack.c.b16 %v1610, %v1609
    %v1841 = vpack.c.b16 %v1612, %v1611
    %v1842 = vpack.c.b16 %v1614, %v1613
    %v1843 = vpack.c.b16 %v1616, %v1615
    %v1844 = vpack.c.b16 %v1618, %v1617
    %v1845 = vpack.c.b16 %v1620, %v1619
    %v1846 = vpack.c.b16 %v1622, %v1621
    %v1847 = vpack.c.b16 %v1624, %v1623
    %v1848 = vpack.c.b16 %v1626, %v1625
    %v1849 = vpack.c.b16 %v1628, %v1627
    %v1850 = vpack.c.b16 %v1630, %v1629
    %v1851 = vpack.c.b16 %v1632, %v1631
    %v1852 = vpack.c.b16 %v1634, %v1633
    %v1853 = vpack.c.b16 %v1636, %v1635
    %v1854 = vpack.c.b16 %v1638, %v1637
    %v1855 = vpack.c.b16 %v1640, %v1639
    %v1856 = vpack.c.b16 %v1642, %v1641
    %v1857 = vpack.c.b16 %v1644, %v1643
    %v1858 = vpack.c.b16 %v1646, %v1645
    %v1859 = vpack.c.b16 %v1648, %v1647
    %v1860 = vpack.c.b16 %v1650, %v1649
    %v1861 = vpack.c.b16 %v1652, %v1651
    %v1862 = vpack.c.b16 %v1654, %v1653
    %v1863 = vpack.c.b16 %v1656, %v1655
    %v1864 = vpack.c.b16 %v1658, %v1657
    %v1865 = vpack.c.b16 %v1660, %v1659
    %v1866 = vpack.c.b16 %v1662, %v1661
    %v1867 = vpack.c.b16 %v1664, %v1663
    %v1868 = vpack.c.b16 %v1666, %v1665
    %v1869 = vpack.c.b16 %v1668, %v1667
    %v1870 = vpack.c.b16 %v1670, %v1669
    %v1871 = vpack.c.b16 %v1672, %v1671
    %v1872 = vpack.c.b16 %v1674, %v1673
    %v1873 = vpack.c.b16 %v1676, %v1675
    %v1874 = vpack.c.b16 %v1678, %v1677
    %v1875 = vpack.c.b16 %v1680, %v1679
    %v1876 = vpack.c.b16 %v1682, %v1681
    %v1877 = vpack.c.b16 %v1684, %v1683
    %v1878 = vpack.c.b16 %v1686, %v1685
    %v1879 = vpack.c.b16 %v1688, %v1687
    %v1880 = vpack.c.b16 %v1690, %v1689
    %v1881 = vpack.c.b16 %v1692, %v1691
    %v1882 = vpack.c.b16 %v1694, %v1693
    %v1883 = vpack.c.b16 %v1696, %v1695
    %v1884 = vpack.c.b16 %v1698, %v1697
    %v1885 = vpack.c.b16 %v1700, %v1699
    %v1886 = vpack.c.b16 %v1702, %v1701
    %v1887 = vpack.c.b16 %v1704, %v1703
    %v1888 = vpack.c.b16 %v1706, %v1705
    %v1889 = vpack.c.b16 %v1708, %v1707
    %v1890 = vpack.c.b16 %v1710, %v1709
    %v1891 = vpack.c.b16 %v1712, %v1711
    %v1892 = vpack.c.b16 %v1714, %v1713
    %v1893 = vpack.c.b16 %v1716, %v1715
    %v1894 = vpack.c.b16 %v1718, %v1717
    %v1895 = vpack.c.b16 %v1720, %v1719
    %v1896 = vpack.c.b16 %v1722, %v1721
    %v1897 = vpack.c.b16 %v1724, %v1723
    %v1898 = vpack.c.b16 %v1726, %v1725
    %v1899 = vpack.c.b16 %v1728, %v1727
    %v1900 = vpack.c.b16 %v1730, %v1729
    %v1901 = vpack.c.b16 %v1732, %v1731
    %v1902 = vpack.c.b16 %v1734, %v1733
    %v1903 = vpack.c.b16 %v1736, %v1735
    %v1904 = vpack.c.b16 %v1738, %v1737
    %v1905 = vpack.c.b16 %v1740, %v1739
    %v1906 = vpack.c.b16 %v1742, %v1741
    %v1907 = vpack.c.b16 %v1744, %v1743
    %v1908 = vpack.c.b16 %v1746, %v1745
    %v1909 = vpack.c.b16 %v1748, %v1747
    %v1910 = vpack.c.b16 %v1750, %v1749
    %v1911 = vpack.c.b16 %v1752, %v1751
    %v1912 = vpack.c.b16 %v1754, %v1753
    %v1913 = vpack.c.b16 %v1756, %v1755
    %v1914 = vpack.c.b16 %v1758, %v1757
    %v1915 = vpack.c.b16 %v1760, %v1759
    %v1916 = vpack.c.b16 %v1762, %v1761
    %v1917 = vpack.c.b16 %v1764, %v1763
    %v1918 = vpack.c.b16 %v1766, %v1765
    %v1919 = vpack.c.b16 %v1768, %v1767
    %v1920 = vpack.c.b16 %v1770, %v1769
    %v1921 = vpack.c.b16 %v1772, %v1771
    %v1922 = vpack.c.b16 %v1774, %v1773
    %v1923 = vpack.c.b16 %v1776, %v1775
    %v1924 = vpack.c.b16 %v1778, %v1777
    %v1925 = vpack.c.b16 %v1780, %v1779
    %v1926 = vpack.c.b16 %v1782, %v1781
    %v1927 = vpack.c.b16 %v1784, %v1783
    %v1928 = vpack.c.b16 %v1786, %v1785
    %v1929 = vpack.c.b16 %v1788, %v1787
    %v1930 = vpack.c.b16 %v1790, %v1789
    %v1931 = vpack.c.b16 %v1792, %v1791
    %v1932 = vpack.c.b16 %v1794, %v1793
    %v1933 = vpack.c.b16 %v1796, %v1795
    %v1934 = vpack.c.b16 %v1798, %v1797
    %v1935 = vpack.c.b16 %v1800, %v1799
    %v1936 = vpack.c.b16 %v1802, %v1801
    %v1937 = vpack.c.b16 %v1804, %v1803
    %v1938 = vpack.c.b16 %v1806, %v1805
    %v1939 = vpack.c.b16 %v1808, %v1807
    %v1940 = vpack.c.b16 %v1810, %v1809
    %v1941 = vpack.c.b16 %v1812, %v1811
    %v1942 = vpack.c.b16 %v1814, %v1813
    %2071 = vmatpush.bf16.msra.mxu0 %v1822
    %2072 = vmatpush.bf16.msra.mxu0 %v1821
    %2073 = vmatpush.bf16.msra.mxu0 %v1820
    %2074 = vmatpush.bf16.msra.mxu0 %v1819
    %2075 = vmatpush.bf16.msra.mxu0 %v1818
    %2076 = vmatpush.bf16.msra.mxu0 %v1817
    %2077 = vmatpush.bf16.msra.mxu0 %v1816
    %2078 = vmatpush.bf16.msra.mxu0 %v1815
    %2079 = vmatmul.bf16.gmra.mxu0 %v1284
    %v2080 = vpop.f32.mrf.mxu0
    %v2081 = vadd.f32 %v1301, %v2080
    %v2082 = vpop.f32.mrf.mxu0
    %v2083 = vadd.f32 %v1301, %v2082
    %2084 = vdwg.mxu0
    %2085 = vmatpush.bf16.msra.mxu0 %v1830
    %2086 = vmatpush.bf16.msra.mxu0 %v1829
    %2087 = vmatpush.bf16.msra.mxu0 %v1828
    %2088 = vmatpush.bf16.msra.mxu0 %v1827
    %2089 = vmatpush.bf16.msra.mxu0 %v1826
    %2090 = vmatpush.bf16.msra.mxu0 %v1825
    %2091 = vmatpush.bf16.msra.mxu0 %v1824
    %2092 = vmatpush.bf16.msra.mxu0 %v1823
    %2093 = vmatmul.bf16.gmra.mxu0 %v1285
    %v2094 = vpop.f32.mrf.mxu0
    %v2095 = vadd.f32 %v2081, %v2094
    %v2096 = vpop.f32.mrf.mxu0
    %v2097 = vadd.f32 %v2083, %v2096
    %2098 = vdwg.mxu0
    %2099 = vmatpush.bf16.msra.mxu0 %v1838
    %2100 = vmatpush.bf16.msra.mxu0 %v1837
    %2101 = vmatpush.bf16.msra.mxu0 %v1836
    %2102 = vmatpush.bf16.msra.mxu0 %v1835
    %2103 = vmatpush.bf16.msra.mxu0 %v1834
    %2104 = vmatpush.bf16.msra.mxu0 %v1833
    %2105 = vmatpush.bf16.msra.mxu0 %v1832
    %2106 = vmatpush.bf16.msra.mxu0 %v1831
    %2107 = vmatmul.bf16.gmra.mxu0 %v1286
    %v2108 = vpop.f32.mrf.mxu0
    %v2109 = vadd.f32 %v2095, %v2108
    %v2110 = vpop.f32.mrf.mxu0
    %v2111 = vadd.f32 %v2097, %v2110
    %2112 = vdwg.mxu0
    %2113 = vmatpush.bf16.msra.mxu0 %v1846
    %2114 = vmatpush.bf16.msra.mxu0 %v1845
    %2115 = vmatpush.bf16.msra.mxu0 %v1844
    %2116 = vmatpush.bf16.msra.mxu0 %v1843
    %2117 = vmatpush.bf16.msra.mxu0 %v1842
    %2118 = vmatpush.bf16.msra.mxu0 %v1841
    %2119 = vmatpush.bf16.msra.mxu0 %v1840
    %2120 = vmatpush.bf16.msra.mxu0 %v1839
    %2121 = vmatmul.bf16.gmra.mxu0 %v1287
    %v2122 = vpop.f32.mrf.mxu0
    %v2123 = vadd.f32 %v2109, %v2122
    %v2124 = vpop.f32.mrf.mxu0
    %v2125 = vadd.f32 %v2111, %v2124
    %2126 = vdwg.mxu0
    %2127 = vmatpush.bf16.msra.mxu0 %v1854
    %2128 = vmatpush.bf16.msra.mxu0 %v1853
    %2129 = vmatpush.bf16.msra.mxu0 %v1852
    %2130 = vmatpush.bf16.msra.mxu0 %v1851
    %2131 = vmatpush.bf16.msra.mxu0 %v1850
    %2132 = vmatpush.bf16.msra.mxu0 %v1849
    %2133 = vmatpush.bf16.msra.mxu0 %v1848
    %2134 = vmatpush.bf16.msra.mxu0 %v1847
    %2135 = vmatmul.bf16.gmra.mxu0 %v1288
    %v2136 = vpop.f32.mrf.mxu0
    %v2137 = vadd.f32 %v2123, %v2136
    %v2138 = vpop.f32.mrf.mxu0
    %v2139 = vadd.f32 %v2125, %v2138
    %2140 = vdwg.mxu0
    %2141 = vmatpush.bf16.msra.mxu0 %v1862
    %2142 = vmatpush.bf16.msra.mxu0 %v1861
    %2143 = vmatpush.bf16.msra.mxu0 %v1860
    %2144 = vmatpush.bf16.msra.mxu0 %v1859
    %2145 = vmatpush.bf16.msra.mxu0 %v1858
    %2146 = vmatpush.bf16.msra.mxu0 %v1857
    %2147 = vmatpush.bf16.msra.mxu0 %v1856
    %2148 = vmatpush.bf16.msra.mxu0 %v1855
    %2149 = vmatmul.bf16.gmra.mxu0 %v1289
    %v2150 = vpop.f32.mrf.mxu0
    %v2151 = vadd.f32 %v2137, %v2150
    %v2152 = vpop.f32.mrf.mxu0
    %v2153 = vadd.f32 %v2139, %v2152
    %2154 = vdwg.mxu0
    %2155 = vmatpush.bf16.msra.mxu0 %v1870
    %2156 = vmatpush.bf16.msra.mxu0 %v1869
    %2157 = vmatpush.bf16.msra.mxu0 %v1868
    %2158 = vmatpush.bf16.msra.mxu0 %v1867
    %2159 = vmatpush.bf16.msra.mxu0 %v1866
    %2160 = vmatpush.bf16.msra.mxu0 %v1865
    %2161 = vmatpush.bf16.msra.mxu0 %v1864
    %2162 = vmatpush.bf16.msra.mxu0 %v1863
    %2163 = vmatmul.bf16.gmra.mxu0 %v1290
    %v2164 = vpop.f32.mrf.mxu0
    %v2165 = vadd.f32 %v2151, %v2164
    %v2166 = vpop.f32.mrf.mxu0
    %v2167 = vadd.f32 %v2153, %v2166
    %2168 = vdwg.mxu0
    %2169 = vmatpush.bf16.msra.mxu0 %v1878
    %2170 = vmatpush.bf16.msra.mxu0 %v1877
    %2171 = vmatpush.bf16.msra.mxu0 %v1876
    %2172 = vmatpush.bf16.msra.mxu0 %v1875
    %2173 = vmatpush.bf16.msra.mxu0 %v1874
    %2174 = vmatpush.bf16.msra.mxu0 %v1873
    %2175 = vmatpush.bf16.msra.mxu0 %v1872
    %2176 = vmatpush.bf16.msra.mxu0 %v1871
    %2177 = vmatmul.bf16.gmra.mxu0 %v1291
    %v2178 = vpop.f32.mrf.mxu0
    %v2179 = vadd.f32 %v2165, %v2178
    %v2180 = vpop.f32.mrf.mxu0
    %v2181 = vadd.f32 %v2167, %v2180
    %2182 = vdwg.mxu0
    %2183 = vmatpush.bf16.msra.mxu0 %v1886
    %2184 = vmatpush.bf16.msra.mxu0 %v1885
    %2185 = vmatpush.bf16.msra.mxu0 %v1884
    %2186 = vmatpush.bf16.msra.mxu0 %v1883
    %2187 = vmatpush.bf16.msra.mxu0 %v1882
    %2188 = vmatpush.bf16.msra.mxu0 %v1881
    %2189 = vmatpush.bf16.msra.mxu0 %v1880
    %2190 = vmatpush.bf16.msra.mxu0 %v1879
    %2191 = vmatmul.bf16.gmra.mxu0 %v1292
    %v2192 = vpop.f32.mrf.mxu0
    %v2193 = vadd.f32 %v2179, %v2192
    %v2194 = vpop.f32.mrf.mxu0
    %v2195 = vadd.f32 %v2181, %v2194
    %2196 = vdwg.mxu0
    %2197 = vmatpush.bf16.msra.mxu0 %v1894
    %2198 = vmatpush.bf16.msra.mxu0 %v1893
    %2199 = vmatpush.bf16.msra.mxu0 %v1892
    %2200 = vmatpush.bf16.msra.mxu0 %v1891
    %2201 = vmatpush.bf16.msra.mxu0 %v1890
    %2202 = vmatpush.bf16.msra.mxu0 %v1889
    %2203 = vmatpush.bf16.msra.mxu0 %v1888
    %2204 = vmatpush.bf16.msra.mxu0 %v1887
    %2205 = vmatmul.bf16.gmra.mxu0 %v1293
    %v2206 = vpop.f32.mrf.mxu0
    %v2207 = vadd.f32 %v2193, %v2206
    %v2208 = vpop.f32.mrf.mxu0
    %v2209 = vadd.f32 %v2195, %v2208
    %2210 = vdwg.mxu0
    %2211 = vmatpush.bf16.msra.mxu0 %v1902
    %2212 = vmatpush.bf16.msra.mxu0 %v1901
    %2213 = vmatpush.bf16.msra.mxu0 %v1900
    %2214 = vmatpush.bf16.msra.mxu0 %v1899
    %2215 = vmatpush.bf16.msra.mxu0 %v1898
    %2216 = vmatpush.bf16.msra.mxu0 %v1897
    %2217 = vmatpush.bf16.msra.mxu0 %v1896
    %2218 = vmatpush.bf16.msra.mxu0 %v1895
    %2219 = vmatmul.bf16.gmra.mxu0 %v1294
    %v2220 = vpop.f32.mrf.mxu0
    %v2221 = vadd.f32 %v2207, %v2220
    %v2222 = vpop.f32.mrf.mxu0
    %v2223 = vadd.f32 %v2209, %v2222
    %2224 = vdwg.mxu0
    %2225 = vmatpush.bf16.msra.mxu0 %v1910
    %2226 = vmatpush.bf16.msra.mxu0 %v1909
    %2227 = vmatpush.bf16.msra.mxu0 %v1908
    %2228 = vmatpush.bf16.msra.mxu0 %v1907
    %2229 = vmatpush.bf16.msra.mxu0 %v1906
    %2230 = vmatpush.bf16.msra.mxu0 %v1905
    %2231 = vmatpush.bf16.msra.mxu0 %v1904
    %2232 = vmatpush.bf16.msra.mxu0 %v1903
    %2233 = vmatmul.bf16.gmra.mxu0 %v1295
    %v2234 = vpop.f32.mrf.mxu0
    %v2235 = vadd.f32 %v2221, %v2234
    %v2236 = vpop.f32.mrf.mxu0
    %v2237 = vadd.f32 %v2223, %v2236
    %2238 = vdwg.mxu0
    %2239 = vmatpush.bf16.msra.mxu0 %v1918
    %2240 = vmatpush.bf16.msra.mxu0 %v1917
    %2241 = vmatpush.bf16.msra.mxu0 %v1916
    %2242 = vmatpush.bf16.msra.mxu0 %v1915
    %2243 = vmatpush.bf16.msra.mxu0 %v1914
    %2244 = vmatpush.bf16.msra.mxu0 %v1913
    %2245 = vmatpush.bf16.msra.mxu0 %v1912
    %2246 = vmatpush.bf16.msra.mxu0 %v1911
    %2247 = vmatmul.bf16.gmra.mxu0 %v1296
    %v2248 = vpop.f32.mrf.mxu0
    %v2249 = vadd.f32 %v2235, %v2248
    %v2250 = vpop.f32.mrf.mxu0
    %v2251 = vadd.f32 %v2237, %v2250
    %2252 = vdwg.mxu0
    %2253 = vmatpush.bf16.msra.mxu0 %v1926
    %2254 = vmatpush.bf16.msra.mxu0 %v1925
    %2255 = vmatpush.bf16.msra.mxu0 %v1924
    %2256 = vmatpush.bf16.msra.mxu0 %v1923
    %2257 = vmatpush.bf16.msra.mxu0 %v1922
    %2258 = vmatpush.bf16.msra.mxu0 %v1921
    %2259 = vmatpush.bf16.msra.mxu0 %v1920
    %2260 = vmatpush.bf16.msra.mxu0 %v1919
    %2261 = vmatmul.bf16.gmra.mxu0 %v1297
    %v2262 = vpop.f32.mrf.mxu0
    %v2263 = vadd.f32 %v2249, %v2262
    %v2264 = vpop.f32.mrf.mxu0
    %v2265 = vadd.f32 %v2251, %v2264
    %2266 = vdwg.mxu0
    %2267 = vmatpush.bf16.msra.mxu0 %v1934
    %2268 = vmatpush.bf16.msra.mxu0 %v1933
    %2269 = vmatpush.bf16.msra.mxu0 %v1932
    %2270 = vmatpush.bf16.msra.mxu0 %v1931
    %2271 = vmatpush.bf16.msra.mxu0 %v1930
    %2272 = vmatpush.bf16.msra.mxu0 %v1929
    %2273 = vmatpush.bf16.msra.mxu0 %v1928
    %2274 = vmatpush.bf16.msra.mxu0 %v1927
    %2275 = vmatmul.bf16.gmra.mxu0 %v1298
    %v2276 = vpop.f32.mrf.mxu0
    %v2277 = vadd.f32 %v2263, %v2276
    %v2278 = vpop.f32.mrf.mxu0
    %v2279 = vadd.f32 %v2265, %v2278
    %2280 = vdwg.mxu0
    %2281 = vmatpush.bf16.msra.mxu0 %v1942
    %2282 = vmatpush.bf16.msra.mxu0 %v1941
    %2283 = vmatpush.bf16.msra.mxu0 %v1940
    %2284 = vmatpush.bf16.msra.mxu0 %v1939
    %2285 = vmatpush.bf16.msra.mxu0 %v1938
    %2286 = vmatpush.bf16.msra.mxu0 %v1937
    %2287 = vmatpush.bf16.msra.mxu0 %v1936
    %2288 = vmatpush.bf16.msra.mxu0 %v1935
    %2289 = vmatmul.bf16.gmra.mxu0 %v1299
    %v2290 = vpop.f32.mrf.mxu0
    %v2291 = vadd.f32 %v2277, %v2290
    %v2292 = vpop.f32.mrf.mxu0
    %v2293 = vadd.f32 %v2279, %v2292
    %2294 = vdwg.mxu0
    %v2295 = vadd.f32 %v537, %v2291
    %v2296 = vadd.f32 %v538, %v2293
    %v2297 = vld [vmem:[%s25] sm:$0x1]
    %v2298 = vld [vmem:[%s27] sm:$0x1]
    %v2299 = vsel %vm204, %v2295, 0.0
    %2300 = vadd.xlane.f32.xlu0 %v2299
    %v2301 = vpop.xlane.xlu0 %2300
    %v2302 = vsel %vm204, %v2296, 0.0
    %2303 = vadd.xlane.f32.xlu0 %v2302
    %v2304 = vpop.xlane.xlu0 %2303
    %v2305 = vmul.f32 %v2301, %v490
    %v2306 = vmul.f32 %v2304, %v490
    %v2307 = vsub.f32 %v2295, %v2305
    %v2308 = vsub.f32 %v2296, %v2306
    %v2309 = vmul.f32 %v2307, %v2307
    %v2310 = vmul.f32 %v2308, %v2308
    %v2311 = vsel %vm204, %v2309, 0.0
    %2312 = vadd.xlane.f32.xlu0 %v2311
    %v2313 = vpop.xlane.xlu0 %2312
    %v2314 = vsel %vm204, %v2310, 0.0
    %2315 = vadd.xlane.f32.xlu0 %v2314
    %v2316 = vpop.xlane.xlu0 %2315
    %v2317 = vmul.f32 %v2313, %v490
    %v2318 = vmul.f32 %v2316, %v490
    %v2319 = vadd.f32 %v2317, 1e-05
    %v2320 = vadd.f32 %v2318, 1e-05
    %v2321 = vrsqrt.pop %v2319
    %v2322 = vmul.f32 %v2321, %v2319
    %v2323 = vmul.f32 %v2322, %v2321
    %v2324 = vmul.f32 0.5, %v2323
    %v2325 = vsub.f32 1.5, %v2324
    %v2326 = vmul.f32 %v2321, %v2325
    %vm2327 = vweird.f32 %v2319
    %vm2328 = vweird.f32 %v2321
    %vm2329 = vmor %vm2327, %vm2328
    %v2330 = vsel %vm2329, %v2321, %v2326
    %v2331 = vrsqrt.pop %v2320
    %v2332 = vmul.f32 %v2331, %v2320
    %v2333 = vmul.f32 %v2332, %v2331
    %v2334 = vmul.f32 0.5, %v2333
    %v2335 = vsub.f32 1.5, %v2334
    %v2336 = vmul.f32 %v2331, %v2335
    %vm2337 = vweird.f32 %v2320
    %vm2338 = vweird.f32 %v2331
    %vm2339 = vmor %vm2337, %vm2338
    %v2340 = vsel %vm2339, %v2331, %v2336
    %v2341 = vmul.f32 %v2307, %v2330
    %v2342 = vmul.f32 %v2308, %v2340
    %v2344 = vperm.slane %v2297, 0
    %v2346 = vmul.f32 %v2341, %v2344
    %v2347 = vmul.f32 %v2342, %v2344
    %v2349 = vperm.slane %v2298, 0
    %v2351 = vadd.f32 %v2346, %v2349
    %v2352 = vadd.f32 %v2347, %v2349
    %2353 = vst.msk [vmem:[#allocation4] sm:$0xff] %vm204, %v2351
    %2354 = vst.msk [vmem:[#allocation4 + $0x8] sm:$0xff] %vm204, %v2352
    %v2355 = vld [vmem:[%s29] sm:$0xff]
    %v2356 = vld [vmem:[%s29 + $0x8] sm:$0xff]
    %v2357 = vld [vmem:[%s31] sm:$0xff]
    %v2358 = vld [vmem:[%s31 + $0x8] sm:$0xff]
    %v2359 = vld [vmem:[%s33] sm:$0xff]
    %v2360 = vld [vmem:[%s33 + $0x8] sm:$0xff]
    %v2361 = vld [vmem:[%s35] sm:$0xf]
    %v2362 = vld [vmem:[%s35 + $0x4] sm:$0xf]
    %v2363 = vld [vmem:[%s35 + $0x8] sm:$0xf]
    %v2364 = vld [vmem:[%s35 + $0xc] sm:$0xf]
    %v2365 = vld [vmem:[%s37] sm:$0x1]
    %v2366 = vld [vmem:[%s39] sm:$0xf]
    %v2367 = vld [vmem:[%s39 + $0x4] sm:$0xf]
    %v2368 = vld [vmem:[%s39 + $0x8] sm:$0xf]
    %v2369 = vld [vmem:[%s39 + $0xc] sm:$0xf]
    %v2370 = vld [vmem:[%s41] sm:$0x1]
    %v2371 = vpack.c.bf16 %v2356, %v2355
    %v2373 = vperm.slane %v2365, 0
    %v2379 = vunpack.c.l.b16 %v2361
    %v2380 = vunpack.c.l.b16 %v2362
    %v2381 = vunpack.c.l.b16 %v2363
    %v2382 = vunpack.c.l.b16 %v2364
    %v2383 = vpack.c.b16 %v2380, %v2379
    %v2384 = vpack.c.b16 %v2382, %v2381
    %v2388 = vsel %vm204, %v2371, 0
    %2390 = vmatpush.bf16.msra.mxu0 0
    %2391 = vmatpush.bf16.msra.mxu0 0
    %2392 = vmatpush.bf16.msra.mxu0 0
    %2393 = vmatpush.bf16.msra.mxu0 0
    %2394 = vmatpush.bf16.msra.mxu0 0
    %2395 = vmatpush.bf16.msra.mxu0 0
    %2396 = vmatpush.bf16.msra.mxu0 %v2384
    %2397 = vmatpush.bf16.msra.mxu0 %v2383
    %2398 = vmatmul.bf16.gmra.mxu0 %v2388
    %v2399 = vpop.f32.mrf.mxu0
    %v2400 = vadd.f32 %v2373, %v2399
    %v2401 = vpop.f32.mrf.mxu0
    %v2402 = vadd.f32 %v2373, %v2401
    %2403 = vdwg.mxu0
    %2406 = vrot.lane.b32.xlu0 %v2400, 96
    %v2407 = vpop.permute.xlu0 %2406
    %2408 = vrot.lane.b32.xlu0 %v2402, 96
    %v2409 = vpop.permute.xlu0 %2408
    %v2410 = vsel %vm228, %v2400, 0
    %v2412 = vsel %vm228, %v2402, 0
    %v2414 = vsel %vm228, %v2407, 0
    %v2416 = vsel %vm228, %v2409, 0
    %2418 = vmatpush.xpose.msra.mxu0 0.0
    %2419 = vmatpush.xpose.msra.mxu0 0.0
    %2420 = vmatpush.xpose.msra.mxu0 0.0
    %2421 = vmatpush.xpose.msra.mxu0 0.0
    %2422 = vmatpush.xpose.msra.mxu0 0.0
    %2423 = vmatpush.xpose.msra.mxu0 0.0
    %2424 = vmatpush.xpose.msra.mxu0 0.0
    %2425 = vmatpush.xpose.msra.mxu0 0.0
    %2426 = vmatpush.xpose.msra.mxu0 0.0
    %2427 = vmatpush.xpose.msra.mxu0 0.0
    %2428 = vmatpush.xpose.msra.mxu0 0.0
    %2429 = vmatpush.xpose.msra.mxu0 0.0
    %2430 = vmatpush.xpose.msra.mxu0 0.0
    %2431 = vmatpush.xpose.msra.mxu0 0.0
    %2432 = vmatpush.xpose.msra.mxu0 %v2416
    %2433 = vmatpush.xpose.msra.mxu0 %v2414
    %2434 = vmatmul.f32.gmra.mxu0 %v2410
    %v2435 = vpop.f32.mrf.mxu0
    %v2436 = vadd.f32 0.0, %v2435
    %2437 = vmatmul.f32.gmra.mxu0 %v2412
    %v2438 = vpop.f32.mrf.mxu0
    %v2439 = vadd.f32 0.0, %v2438
    %2440 = vdwg.mxu0
    %v2441 = vmul.f32 %v2436, 0.25
    %v2442 = vmul.f32 %v2439, 0.25
    %v2443 = vadd.f32 %v2441, %v2357
    %v2444 = vadd.f32 %v2442, %v2358
    %v2445 = vsel %vm228, %v2443, -inf
    %2446 = vmax.xlane.f32.xlu0 %v2445
    %v2447 = vpop.xlane.xlu0 %2446
    %v2448 = vsel %vm228, %v2444, -inf
    %2449 = vmax.xlane.f32.xlu0 %v2448
    %v2450 = vpop.xlane.xlu0 %2449
    %v2451 = vsub.f32 %v2443, %v2447
    %v2452 = vsub.f32 %v2444, %v2450
    %v2453 = vmul.f32 %v2451, 1.442695
    %v2454 = vpow.pop %v2453
    %v2455 = vmul.f32 %v2452, 1.442695
    %v2456 = vpow.pop %v2455
    %v2457 = vsel %vm228, %v2454, 0.0
    %2458 = vadd.xlane.f32.xlu0 %v2457
    %v2459 = vpop.xlane.xlu0 %2458
    %v2460 = vsel %vm228, %v2456, 0.0
    %2461 = vadd.xlane.f32.xlu0 %v2460
    %v2462 = vpop.xlane.xlu0 %2461
    %v2463 = vrcp.pop %v2459
    %v2464 = vrcp.pop %v2462
    %v2465 = vmul.f32 %v2454, %v2463
    %v2466 = vmul.f32 %v2456, %v2464
    %2467 = vrot.lane.b32.xlu0 %v2400, 64
    %v2468 = vpop.permute.xlu0 %2467
    %2469 = vrot.lane.b32.xlu0 %v2402, 64
    %v2470 = vpop.permute.xlu0 %2469
    %v2474 = vsel %vm228, %v2465, 0
    %v2477 = vsel %vm228, %v2466, 0
    %2479 = vmatpush.msra.mxu0 0.0
    %2480 = vmatpush.msra.mxu0 0.0
    %2481 = vmatpush.msra.mxu0 0.0
    %2482 = vmatpush.msra.mxu0 0.0
    %2483 = vmatpush.msra.mxu0 0.0
    %2484 = vmatpush.msra.mxu0 0.0
    %2485 = vmatpush.msra.mxu0 0.0
    %2486 = vmatpush.msra.mxu0 0.0
    %2487 = vmatpush.msra.mxu0 0.0
    %2488 = vmatpush.msra.mxu0 0.0
    %2489 = vmatpush.msra.mxu0 0.0
    %2490 = vmatpush.msra.mxu0 0.0
    %2491 = vmatpush.msra.mxu0 0.0
    %2492 = vmatpush.msra.mxu0 0.0
    %2493 = vmatpush.msra.mxu0 %v2470
    %2494 = vmatpush.msra.mxu0 %v2468
    %2495 = vmatmul.f32.gmra.mxu0 %v2474
    %v2496 = vpop.f32.mrf.mxu0
    %v2497 = vadd.f32 0.0, %v2496
    %2498 = vmatmul.f32.gmra.mxu0 %v2477
    %v2499 = vpop.f32.mrf.mxu0
    %v2500 = vadd.f32 0.0, %v2499
    %2501 = vdwg.mxu0
    %v2502 = vpack.c.bf16 %v2500, %v2497
    %2503 = vrot.lane.b32.xlu0 %v2400, 112
    %v2504 = vpop.permute.xlu0 %2503
    %2505 = vrot.lane.b32.xlu0 %v2402, 112
    %v2506 = vpop.permute.xlu0 %2505
    %2507 = vrot.lane.b32.xlu0 %v2400, 80
    %v2508 = vpop.permute.xlu0 %2507
    %2509 = vrot.lane.b32.xlu0 %v2402, 80
    %v2510 = vpop.permute.xlu0 %2509
    %v2511 = vsel %vm228, %v2504, 0
    %v2513 = vsel %vm228, %v2506, 0
    %v2515 = vsel %vm228, %v2508, 0
    %v2517 = vsel %vm228, %v2510, 0
    %2519 = vmatpush.xpose.msra.mxu0 0.0
    %2520 = vmatpush.xpose.msra.mxu0 0.0
    %2521 = vmatpush.xpose.msra.mxu0 0.0
    %2522 = vmatpush.xpose.msra.mxu0 0.0
    %2523 = vmatpush.xpose.msra.mxu0 0.0
    %2524 = vmatpush.xpose.msra.mxu0 0.0
    %2525 = vmatpush.xpose.msra.mxu0 0.0
    %2526 = vmatpush.xpose.msra.mxu0 0.0
    %2527 = vmatpush.xpose.msra.mxu0 0.0
    %2528 = vmatpush.xpose.msra.mxu0 0.0
    %2529 = vmatpush.xpose.msra.mxu0 0.0
    %2530 = vmatpush.xpose.msra.mxu0 0.0
    %2531 = vmatpush.xpose.msra.mxu0 0.0
    %2532 = vmatpush.xpose.msra.mxu0 0.0
    %2533 = vmatpush.xpose.msra.mxu0 %v2517
    %2534 = vmatpush.xpose.msra.mxu0 %v2515
    %2535 = vmatmul.f32.gmra.mxu0 %v2511
    %v2536 = vpop.f32.mrf.mxu0
    %v2537 = vadd.f32 0.0, %v2536
    %2538 = vmatmul.f32.gmra.mxu0 %v2513
    %v2539 = vpop.f32.mrf.mxu0
    %v2540 = vadd.f32 0.0, %v2539
    %2541 = vdwg.mxu0
    %v2542 = vmul.f32 %v2537, 0.25
    %v2543 = vmul.f32 %v2540, 0.25
    %v2544 = vadd.f32 %v2542, %v2357
    %v2545 = vadd.f32 %v2543, %v2358
    %v2546 = vsel %vm228, %v2544, -inf
    %2547 = vmax.xlane.f32.xlu0 %v2546
    %v2548 = vpop.xlane.xlu0 %2547
    %v2549 = vsel %vm228, %v2545, -inf
    %2550 = vmax.xlane.f32.xlu0 %v2549
    %v2551 = vpop.xlane.xlu0 %2550
    %v2552 = vsub.f32 %v2544, %v2548
    %v2553 = vsub.f32 %v2545, %v2551
    %v2554 = vmul.f32 %v2552, 1.442695
    %v2555 = vpow.pop %v2554
    %v2556 = vmul.f32 %v2553, 1.442695
    %v2557 = vpow.pop %v2556
    %v2558 = vsel %vm228, %v2555, 0.0
    %2559 = vadd.xlane.f32.xlu0 %v2558
    %v2560 = vpop.xlane.xlu0 %2559
    %v2561 = vsel %vm228, %v2557, 0.0
    %2562 = vadd.xlane.f32.xlu0 %v2561
    %v2563 = vpop.xlane.xlu0 %2562
    %v2564 = vrcp.pop %v2560
    %v2565 = vrcp.pop %v2563
    %v2566 = vmul.f32 %v2555, %v2564
    %v2567 = vmul.f32 %v2557, %v2565
    %2568 = vrot.lane.b32.xlu0 %v2400, 48
    %v2569 = vpop.permute.xlu0 %2568
    %2570 = vrot.lane.b32.xlu0 %v2402, 48
    %v2571 = vpop.permute.xlu0 %2570
    %v2575 = vsel %vm228, %v2566, 0
    %v2578 = vsel %vm228, %v2567, 0
    %2580 = vmatpush.msra.mxu0 0.0
    %2581 = vmatpush.msra.mxu0 0.0
    %2582 = vmatpush.msra.mxu0 0.0
    %2583 = vmatpush.msra.mxu0 0.0
    %2584 = vmatpush.msra.mxu0 0.0
    %2585 = vmatpush.msra.mxu0 0.0
    %2586 = vmatpush.msra.mxu0 0.0
    %2587 = vmatpush.msra.mxu0 0.0
    %2588 = vmatpush.msra.mxu0 0.0
    %2589 = vmatpush.msra.mxu0 0.0
    %2590 = vmatpush.msra.mxu0 0.0
    %2591 = vmatpush.msra.mxu0 0.0
    %2592 = vmatpush.msra.mxu0 0.0
    %2593 = vmatpush.msra.mxu0 0.0
    %2594 = vmatpush.msra.mxu0 %v2571
    %2595 = vmatpush.msra.mxu0 %v2569
    %2596 = vmatmul.f32.gmra.mxu0 %v2575
    %v2597 = vpop.f32.mrf.mxu0
    %v2598 = vadd.f32 0.0, %v2597
    %2599 = vmatmul.f32.gmra.mxu0 %v2578
    %v2600 = vpop.f32.mrf.mxu0
    %v2601 = vadd.f32 0.0, %v2600
    %2602 = vdwg.mxu0
    %v2603 = vpack.c.bf16 %v2601, %v2598
    %v2606 = vunpack.c.l.b16 %v2368
    %v2607 = vunpack.c.l.b16 %v2369
    %v2608 = vpack.c.b16 %v2607, %v2606
    %v2611 = vsel %vm228, %v2603, 0
    %2613 = vmatpush.bf16.msra.mxu0 0
    %2614 = vmatpush.bf16.msra.mxu0 0
    %2615 = vmatpush.bf16.msra.mxu0 0
    %2616 = vmatpush.bf16.msra.mxu0 0
    %2617 = vmatpush.bf16.msra.mxu0 0
    %2618 = vmatpush.bf16.msra.mxu0 0
    %2619 = vmatpush.bf16.msra.mxu0 0
    %2620 = vmatpush.bf16.msra.mxu0 %v2608
    %2621 = vmatmul.bf16.gmra.mxu0 %v2611
    %v2622 = vpop.f32.mrf.mxu0
    %v2623 = vadd.f32 0.0, %v2622
    %v2624 = vpop.f32.mrf.mxu0
    %v2625 = vadd.f32 0.0, %v2624
    %2626 = vdwg.mxu0
    %v2629 = vunpack.c.l.b16 %v2366
    %v2630 = vunpack.c.l.b16 %v2367
    %v2631 = vpack.c.b16 %v2630, %v2629
    %v2634 = vsel %vm228, %v2502, 0
    %2636 = vmatpush.bf16.msra.mxu0 0
    %2637 = vmatpush.bf16.msra.mxu0 0
    %2638 = vmatpush.bf16.msra.mxu0 0
    %2639 = vmatpush.bf16.msra.mxu0 0
    %2640 = vmatpush.bf16.msra.mxu0 0
    %2641 = vmatpush.bf16.msra.mxu0 0
    %2642 = vmatpush.bf16.msra.mxu0 0
    %2643 = vmatpush.bf16.msra.mxu0 %v2631
    %2644 = vmatmul.bf16.gmra.mxu0 %v2634
    %v2645 = vpop.f32.mrf.mxu0
    %v2646 = vadd.f32 %v2623, %v2645
    %v2647 = vpop.f32.mrf.mxu0
    %v2648 = vadd.f32 %v2625, %v2647
    %2649 = vdwg.mxu0
    %v2651 = vperm.slane %v2370, 0
    %v2653 = vadd.f32 %v2646, %v2651
    %v2654 = vadd.f32 %v2648, %v2651
    %v2655 = vadd.f32 %v2355, %v2653
    %v2656 = vadd.f32 %v2356, %v2654
    %v2657 = vld [vmem:[%s43] sm:$0x1]
    %v2658 = vld [vmem:[%s45] sm:$0x1]
    %v2659 = vsel %vm204, %v2655, 0.0
    %2660 = vadd.xlane.f32.xlu0 %v2659
    %v2661 = vpop.xlane.xlu0 %2660
    %v2662 = vsel %vm204, %v2656, 0.0
    %2663 = vadd.xlane.f32.xlu0 %v2662
    %v2664 = vpop.xlane.xlu0 %2663
    %v2665 = vmul.f32 %v2661, %v490
    %v2666 = vmul.f32 %v2664, %v490
    %v2667 = vsub.f32 %v2655, %v2665
    %v2668 = vsub.f32 %v2656, %v2666
    %v2669 = vmul.f32 %v2667, %v2667
    %v2670 = vmul.f32 %v2668, %v2668
    %v2671 = vsel %vm204, %v2669, 0.0
    %2672 = vadd.xlane.f32.xlu0 %v2671
    %v2673 = vpop.xlane.xlu0 %2672
    %v2674 = vsel %vm204, %v2670, 0.0
    %2675 = vadd.xlane.f32.xlu0 %v2674
    %v2676 = vpop.xlane.xlu0 %2675
    %v2677 = vmul.f32 %v2673, %v490
    %v2678 = vmul.f32 %v2676, %v490
    %v2679 = vadd.f32 %v2677, 1e-05
    %v2680 = vadd.f32 %v2678, 1e-05
    %v2681 = vrsqrt.pop %v2679
    %v2682 = vmul.f32 %v2681, %v2679
    %v2683 = vmul.f32 %v2682, %v2681
    %v2684 = vmul.f32 0.5, %v2683
    %v2685 = vsub.f32 1.5, %v2684
    %v2686 = vmul.f32 %v2681, %v2685
    %vm2687 = vweird.f32 %v2679
    %vm2688 = vweird.f32 %v2681
    %vm2689 = vmor %vm2687, %vm2688
    %v2690 = vsel %vm2689, %v2681, %v2686
    %v2691 = vrsqrt.pop %v2680
    %v2692 = vmul.f32 %v2691, %v2680
    %v2693 = vmul.f32 %v2692, %v2691
    %v2694 = vmul.f32 0.5, %v2693
    %v2695 = vsub.f32 1.5, %v2694
    %v2696 = vmul.f32 %v2691, %v2695
    %vm2697 = vweird.f32 %v2680
    %vm2698 = vweird.f32 %v2691
    %vm2699 = vmor %vm2697, %vm2698
    %v2700 = vsel %vm2699, %v2691, %v2696
    %v2701 = vmul.f32 %v2667, %v2690
    %v2702 = vmul.f32 %v2668, %v2700
    %v2704 = vperm.slane %v2657, 0
    %v2706 = vmul.f32 %v2701, %v2704
    %v2707 = vmul.f32 %v2702, %v2704
    %v2709 = vperm.slane %v2658, 0
    %v2711 = vadd.f32 %v2706, %v2709
    %v2712 = vadd.f32 %v2707, %v2709
    %v2713 = vld [vmem:[%s47] sm:$0xf]
    %v2714 = vld [vmem:[%s47 + $0x4] sm:$0xf]
    %v2715 = vld [vmem:[%s47 + $0x8] sm:$0xf]
    %v2716 = vld [vmem:[%s47 + $0xc] sm:$0xf]
    %v2717 = vld [vmem:[%s49] sm:$0x1]
    %v2718 = vld [vmem:[%s51] sm:$0xf]
    %v2719 = vld [vmem:[%s51 + $0x4] sm:$0xf]
    %v2720 = vld [vmem:[%s51 + $0x8] sm:$0xf]
    %v2721 = vld [vmem:[%s51 + $0xc] sm:$0xf]
    %v2722 = vld [vmem:[%s53] sm:$0x1]
    %v2723 = vld [vmem:[%s55] sm:$0xf]
    %v2724 = vld [vmem:[%s55 + $0x4] sm:$0xf]
    %v2725 = vld [vmem:[%s55 + $0x8] sm:$0xf]
    %v2726 = vld [vmem:[%s55 + $0xc] sm:$0xf]
    %v2727 = vld [vmem:[%s57] sm:$0x1]
    %v2728 = vpack.c.bf16 %v2712, %v2711
    %v2730 = vperm.slane %v2717, 0
    %v2736 = vunpack.c.l.b16 %v2713
    %v2737 = vunpack.c.l.b16 %v2714
    %v2738 = vunpack.c.l.b16 %v2715
    %v2739 = vunpack.c.l.b16 %v2716
    %v2740 = vpack.c.b16 %v2737, %v2736
    %v2741 = vpack.c.b16 %v2739, %v2738
    %v2745 = vsel %vm204, %v2728, 0
    %2747 = vmatpush.bf16.msra.mxu0 0
    %2748 = vmatpush.bf16.msra.mxu0 0
    %2749 = vmatpush.bf16.msra.mxu0 0
    %2750 = vmatpush.bf16.msra.mxu0 0
    %2751 = vmatpush.bf16.msra.mxu0 0
    %2752 = vmatpush.bf16.msra.mxu0 0
    %2753 = vmatpush.bf16.msra.mxu0 %v2741
    %2754 = vmatpush.bf16.msra.mxu0 %v2740
    %2755 = vmatmul.bf16.gmra.mxu0 %v2745
    %v2756 = vpop.f32.mrf.mxu0
    %v2757 = vadd.f32 %v2730, %v2756
    %v2758 = vpop.f32.mrf.mxu0
    %v2759 = vadd.f32 %v2730, %v2758
    %2760 = vdwg.mxu0
    %v2761 = vpack.c.bf16 %v2352, %v2351
    %v2763 = vperm.slane %v2722, 0
    %v2769 = vunpack.c.l.b16 %v2718
    %v2770 = vunpack.c.l.b16 %v2719
    %v2771 = vunpack.c.l.b16 %v2720
    %v2772 = vunpack.c.l.b16 %v2721
    %v2773 = vpack.c.b16 %v2770, %v2769
    %v2774 = vpack.c.b16 %v2772, %v2771
    %v2778 = vsel %vm204, %v2761, 0
    %2780 = vmatpush.bf16.msra.mxu0 0
    %2781 = vmatpush.bf16.msra.mxu0 0
    %2782 = vmatpush.bf16.msra.mxu0 0
    %2783 = vmatpush.bf16.msra.mxu0 0
    %2784 = vmatpush.bf16.msra.mxu0 0
    %2785 = vmatpush.bf16.msra.mxu0 0
    %2786 = vmatpush.bf16.msra.mxu0 %v2774
    %2787 = vmatpush.bf16.msra.mxu0 %v2773
    %2788 = vmatmul.bf16.gmra.mxu0 %v2778
    %v2789 = vpop.f32.mrf.mxu0
    %v2790 = vadd.f32 %v2763, %v2789
    %v2791 = vpop.f32.mrf.mxu0
    %v2792 = vadd.f32 %v2763, %v2791
    %2793 = vdwg.mxu0
    %v2795 = vsel %vm228, %v2757, 0
    %v2798 = vsel %vm228, %v2759, 0
    %v2801 = vsel %vm228, %v2790, 0
    %v2804 = vsel %vm228, %v2792, 0
    %2806 = vmatpush.xpose.msra.mxu0 0.0
    %2807 = vmatpush.xpose.msra.mxu0 0.0
    %2808 = vmatpush.xpose.msra.mxu0 0.0
    %2809 = vmatpush.xpose.msra.mxu0 0.0
    %2810 = vmatpush.xpose.msra.mxu0 0.0
    %2811 = vmatpush.xpose.msra.mxu0 0.0
    %2812 = vmatpush.xpose.msra.mxu0 0.0
    %2813 = vmatpush.xpose.msra.mxu0 0.0
    %2814 = vmatpush.xpose.msra.mxu0 0.0
    %2815 = vmatpush.xpose.msra.mxu0 0.0
    %2816 = vmatpush.xpose.msra.mxu0 0.0
    %2817 = vmatpush.xpose.msra.mxu0 0.0
    %2818 = vmatpush.xpose.msra.mxu0 0.0
    %2819 = vmatpush.xpose.msra.mxu0 0.0
    %2820 = vmatpush.xpose.msra.mxu0 %v2804
    %2821 = vmatpush.xpose.msra.mxu0 %v2801
    %2822 = vmatmul.f32.gmra.mxu0 %v2795
    %v2823 = vpop.f32.mrf.mxu0
    %v2824 = vadd.f32 0.0, %v2823
    %2825 = vmatmul.f32.gmra.mxu0 %v2798
    %v2826 = vpop.f32.mrf.mxu0
    %v2827 = vadd.f32 0.0, %v2826
    %2828 = vdwg.mxu0
    %v2829 = vmul.f32 %v2824, 0.25
    %v2830 = vmul.f32 %v2827, 0.25
    %v2831 = vadd.f32 %v2829, %v2359
    %v2832 = vadd.f32 %v2830, %v2360
    %v2833 = vsel %vm228, %v2831, -inf
    %2834 = vmax.xlane.f32.xlu0 %v2833
    %v2835 = vpop.xlane.xlu0 %2834
    %v2836 = vsel %vm228, %v2832, -inf
    %2837 = vmax.xlane.f32.xlu0 %v2836
    %v2838 = vpop.xlane.xlu0 %2837
    %v2839 = vsub.f32 %v2831, %v2835
    %v2840 = vsub.f32 %v2832, %v2838
    %v2841 = vmul.f32 %v2839, 1.442695
    %v2842 = vpow.pop %v2841
    %v2843 = vmul.f32 %v2840, 1.442695
    %v2844 = vpow.pop %v2843
    %v2845 = vsel %vm228, %v2842, 0.0
    %2846 = vadd.xlane.f32.xlu0 %v2845
    %v2847 = vpop.xlane.xlu0 %2846
    %v2848 = vsel %vm228, %v2844, 0.0
    %2849 = vadd.xlane.f32.xlu0 %v2848
    %v2850 = vpop.xlane.xlu0 %2849
    %v2851 = vrcp.pop %v2847
    %v2852 = vrcp.pop %v2850
    %v2853 = vmul.f32 %v2842, %v2851
    %v2854 = vmul.f32 %v2844, %v2852
    %2855 = vrot.lane.b32.xlu0 %v2790, 96
    %v2856 = vpop.permute.xlu0 %2855
    %2857 = vrot.lane.b32.xlu0 %v2792, 96
    %v2858 = vpop.permute.xlu0 %2857
    %v2862 = vsel %vm228, %v2853, 0
    %v2865 = vsel %vm228, %v2854, 0
    %2867 = vmatpush.msra.mxu0 0.0
    %2868 = vmatpush.msra.mxu0 0.0
    %2869 = vmatpush.msra.mxu0 0.0
    %2870 = vmatpush.msra.mxu0 0.0
    %2871 = vmatpush.msra.mxu0 0.0
    %2872 = vmatpush.msra.mxu0 0.0
    %2873 = vmatpush.msra.mxu0 0.0
    %2874 = vmatpush.msra.mxu0 0.0
    %2875 = vmatpush.msra.mxu0 0.0
    %2876 = vmatpush.msra.mxu0 0.0
    %2877 = vmatpush.msra.mxu0 0.0
    %2878 = vmatpush.msra.mxu0 0.0
    %2879 = vmatpush.msra.mxu0 0.0
    %2880 = vmatpush.msra.mxu0 0.0
    %2881 = vmatpush.msra.mxu0 %v2858
    %2882 = vmatpush.msra.mxu0 %v2856
    %2883 = vmatmul.f32.gmra.mxu0 %v2862
    %v2884 = vpop.f32.mrf.mxu0
    %v2885 = vadd.f32 0.0, %v2884
    %2886 = vmatmul.f32.gmra.mxu0 %v2865
    %v2887 = vpop.f32.mrf.mxu0
    %v2888 = vadd.f32 0.0, %v2887
    %2889 = vdwg.mxu0
    %v2890 = vpack.c.bf16 %v2888, %v2885
    %2891 = vrot.lane.b32.xlu0 %v2757, 112
    %v2892 = vpop.permute.xlu0 %2891
    %2893 = vrot.lane.b32.xlu0 %v2759, 112
    %v2894 = vpop.permute.xlu0 %2893
    %2895 = vrot.lane.b32.xlu0 %v2790, 112
    %v2896 = vpop.permute.xlu0 %2895
    %2897 = vrot.lane.b32.xlu0 %v2792, 112
    %v2898 = vpop.permute.xlu0 %2897
    %v2899 = vsel %vm228, %v2892, 0
    %v2901 = vsel %vm228, %v2894, 0
    %v2903 = vsel %vm228, %v2896, 0
    %v2905 = vsel %vm228, %v2898, 0
    %2907 = vmatpush.xpose.msra.mxu0 0.0
    %2908 = vmatpush.xpose.msra.mxu0 0.0
    %2909 = vmatpush.xpose.msra.mxu0 0.0
    %2910 = vmatpush.xpose.msra.mxu0 0.0
    %2911 = vmatpush.xpose.msra.mxu0 0.0
    %2912 = vmatpush.xpose.msra.mxu0 0.0
    %2913 = vmatpush.xpose.msra.mxu0 0.0
    %2914 = vmatpush.xpose.msra.mxu0 0.0
    %2915 = vmatpush.xpose.msra.mxu0 0.0
    %2916 = vmatpush.xpose.msra.mxu0 0.0
    %2917 = vmatpush.xpose.msra.mxu0 0.0
    %2918 = vmatpush.xpose.msra.mxu0 0.0
    %2919 = vmatpush.xpose.msra.mxu0 0.0
    %2920 = vmatpush.xpose.msra.mxu0 0.0
    %2921 = vmatpush.xpose.msra.mxu0 %v2905
    %2922 = vmatpush.xpose.msra.mxu0 %v2903
    %2923 = vmatmul.f32.gmra.mxu0 %v2899
    %v2924 = vpop.f32.mrf.mxu0
    %v2925 = vadd.f32 0.0, %v2924
    %2926 = vmatmul.f32.gmra.mxu0 %v2901
    %v2927 = vpop.f32.mrf.mxu0
    %v2928 = vadd.f32 0.0, %v2927
    %2929 = vdwg.mxu0
    %v2930 = vmul.f32 %v2925, 0.25
    %v2931 = vmul.f32 %v2928, 0.25
    %v2932 = vadd.f32 %v2930, %v2359
    %v2933 = vadd.f32 %v2931, %v2360
    %v2934 = vsel %vm228, %v2932, -inf
    %2935 = vmax.xlane.f32.xlu0 %v2934
    %v2936 = vpop.xlane.xlu0 %2935
    %v2937 = vsel %vm228, %v2933, -inf
    %2938 = vmax.xlane.f32.xlu0 %v2937
    %v2939 = vpop.xlane.xlu0 %2938
    %v2940 = vsub.f32 %v2932, %v2936
    %v2941 = vsub.f32 %v2933, %v2939
    %v2942 = vmul.f32 %v2940, 1.442695
    %v2943 = vpow.pop %v2942
    %v2944 = vmul.f32 %v2941, 1.442695
    %v2945 = vpow.pop %v2944
    %v2946 = vsel %vm228, %v2943, 0.0
    %2947 = vadd.xlane.f32.xlu0 %v2946
    %v2948 = vpop.xlane.xlu0 %2947
    %v2949 = vsel %vm228, %v2945, 0.0
    %2950 = vadd.xlane.f32.xlu0 %v2949
    %v2951 = vpop.xlane.xlu0 %2950
    %v2952 = vrcp.pop %v2948
    %v2953 = vrcp.pop %v2951
    %v2954 = vmul.f32 %v2943, %v2952
    %v2955 = vmul.f32 %v2945, %v2953
    %2956 = vrot.lane.b32.xlu0 %v2790, 80
    %v2957 = vpop.permute.xlu0 %2956
    %2958 = vrot.lane.b32.xlu0 %v2792, 80
    %v2959 = vpop.permute.xlu0 %2958
    %v2963 = vsel %vm228, %v2954, 0
    %v2966 = vsel %vm228, %v2955, 0
    %2968 = vmatpush.msra.mxu0 0.0
    %2969 = vmatpush.msra.mxu0 0.0
    %2970 = vmatpush.msra.mxu0 0.0
    %2971 = vmatpush.msra.mxu0 0.0
    %2972 = vmatpush.msra.mxu0 0.0
    %2973 = vmatpush.msra.mxu0 0.0
    %2974 = vmatpush.msra.mxu0 0.0
    %2975 = vmatpush.msra.mxu0 0.0
    %2976 = vmatpush.msra.mxu0 0.0
    %2977 = vmatpush.msra.mxu0 0.0
    %2978 = vmatpush.msra.mxu0 0.0
    %2979 = vmatpush.msra.mxu0 0.0
    %2980 = vmatpush.msra.mxu0 0.0
    %2981 = vmatpush.msra.mxu0 0.0
    %2982 = vmatpush.msra.mxu0 %v2959
    %2983 = vmatpush.msra.mxu0 %v2957
    %2984 = vmatmul.f32.gmra.mxu0 %v2963
    %v2985 = vpop.f32.mrf.mxu0
    %v2986 = vadd.f32 0.0, %v2985
    %2987 = vmatmul.f32.gmra.mxu0 %v2966
    %v2988 = vpop.f32.mrf.mxu0
    %v2989 = vadd.f32 0.0, %v2988
    %2990 = vdwg.mxu0
    %v2991 = vpack.c.bf16 %v2989, %v2986
    %v2994 = vunpack.c.l.b16 %v2725
    %v2995 = vunpack.c.l.b16 %v2726
    %v2996 = vpack.c.b16 %v2995, %v2994
    %v2999 = vsel %vm228, %v2991, 0
    %3001 = vmatpush.bf16.msra.mxu0 0
    %3002 = vmatpush.bf16.msra.mxu0 0
    %3003 = vmatpush.bf16.msra.mxu0 0
    %3004 = vmatpush.bf16.msra.mxu0 0
    %3005 = vmatpush.bf16.msra.mxu0 0
    %3006 = vmatpush.bf16.msra.mxu0 0
    %3007 = vmatpush.bf16.msra.mxu0 0
    %3008 = vmatpush.bf16.msra.mxu0 %v2996
    %3009 = vmatmul.bf16.gmra.mxu0 %v2999
    %v3010 = vpop.f32.mrf.mxu0
    %v3011 = vadd.f32 0.0, %v3010
    %v3012 = vpop.f32.mrf.mxu0
    %v3013 = vadd.f32 0.0, %v3012
    %3014 = vdwg.mxu0
    %v3017 = vunpack.c.l.b16 %v2723
    %v3018 = vunpack.c.l.b16 %v2724
    %v3019 = vpack.c.b16 %v3018, %v3017
    %v3022 = vsel %vm228, %v2890, 0
    %3024 = vmatpush.bf16.msra.mxu0 0
    %3025 = vmatpush.bf16.msra.mxu0 0
    %3026 = vmatpush.bf16.msra.mxu0 0
    %3027 = vmatpush.bf16.msra.mxu0 0
    %3028 = vmatpush.bf16.msra.mxu0 0
    %3029 = vmatpush.bf16.msra.mxu0 0
    %3030 = vmatpush.bf16.msra.mxu0 0
    %3031 = vmatpush.bf16.msra.mxu0 %v3019
    %3032 = vmatmul.bf16.gmra.mxu0 %v3022
    %v3033 = vpop.f32.mrf.mxu0
    %v3034 = vadd.f32 %v3011, %v3033
    %v3035 = vpop.f32.mrf.mxu0
    %v3036 = vadd.f32 %v3013, %v3035
    %3037 = vdwg.mxu0
    %v3039 = vperm.slane %v2727, 0
    %v3041 = vadd.f32 %v3034, %v3039
    %v3042 = vadd.f32 %v3036, %v3039
    %v3043 = vadd.f32 %v2711, %v3041
    %v3044 = vadd.f32 %v2712, %v3042
    %v3045 = vld [vmem:[%s59] sm:$0x1]
    %v3046 = vld [vmem:[%s61] sm:$0x1]
    %v3047 = vsel %vm204, %v3043, 0.0
    %3048 = vadd.xlane.f32.xlu0 %v3047
    %v3049 = vpop.xlane.xlu0 %3048
    %v3050 = vsel %vm204, %v3044, 0.0
    %3051 = vadd.xlane.f32.xlu0 %v3050
    %v3052 = vpop.xlane.xlu0 %3051
    %v3053 = vmul.f32 %v3049, %v490
    %v3054 = vmul.f32 %v3052, %v490
    %v3055 = vsub.f32 %v3043, %v3053
    %v3056 = vsub.f32 %v3044, %v3054
    %v3057 = vmul.f32 %v3055, %v3055
    %v3058 = vmul.f32 %v3056, %v3056
    %v3059 = vsel %vm204, %v3057, 0.0
    %3060 = vadd.xlane.f32.xlu0 %v3059
    %v3061 = vpop.xlane.xlu0 %3060
    %v3062 = vsel %vm204, %v3058, 0.0
    %3063 = vadd.xlane.f32.xlu0 %v3062
    %v3064 = vpop.xlane.xlu0 %3063
    %v3065 = vmul.f32 %v3061, %v490
    %v3066 = vmul.f32 %v3064, %v490
    %v3067 = vadd.f32 %v3065, 1e-05
    %v3068 = vadd.f32 %v3066, 1e-05
    %v3069 = vrsqrt.pop %v3067
    %v3070 = vmul.f32 %v3069, %v3067
    %v3071 = vmul.f32 %v3070, %v3069
    %v3072 = vmul.f32 0.5, %v3071
    %v3073 = vsub.f32 1.5, %v3072
    %v3074 = vmul.f32 %v3069, %v3073
    %vm3075 = vweird.f32 %v3067
    %vm3076 = vweird.f32 %v3069
    %vm3077 = vmor %vm3075, %vm3076
    %v3078 = vsel %vm3077, %v3069, %v3074
    %v3079 = vrsqrt.pop %v3068
    %v3080 = vmul.f32 %v3079, %v3068
    %v3081 = vmul.f32 %v3080, %v3079
    %v3082 = vmul.f32 0.5, %v3081
    %v3083 = vsub.f32 1.5, %v3082
    %v3084 = vmul.f32 %v3079, %v3083
    %vm3085 = vweird.f32 %v3068
    %vm3086 = vweird.f32 %v3079
    %vm3087 = vmor %vm3085, %vm3086
    %v3088 = vsel %vm3087, %v3079, %v3084
    %v3089 = vmul.f32 %v3055, %v3078
    %v3090 = vmul.f32 %v3056, %v3088
    %v3092 = vperm.slane %v3045, 0
    %v3094 = vmul.f32 %v3089, %v3092
    %v3095 = vmul.f32 %v3090, %v3092
    %v3097 = vperm.slane %v3046, 0
    %v3099 = vadd.f32 %v3094, %v3097
    %v3100 = vadd.f32 %v3095, %v3097
    %v3101 = vld [vmem:[%s63] sm:$0xff]
    %v3102 = vld [vmem:[%s63 + $0x8] sm:$0xff]
    %v3103 = vld [vmem:[%s63 + $0x10] sm:$0xff]
    %v3104 = vld [vmem:[%s63 + $0x18] sm:$0xff]
    %v3105 = vld [vmem:[%s63 + $0x20] sm:$0xff]
    %v3106 = vld [vmem:[%s63 + $0x28] sm:$0xff]
    %v3107 = vld [vmem:[%s63 + $0x30] sm:$0xff]
    %v3108 = vld [vmem:[%s63 + $0x38] sm:$0xff]
    %v3109 = vld [vmem:[%s63 + $0x40] sm:$0xff]
    %v3110 = vld [vmem:[%s63 + $0x48] sm:$0xff]
    %v3111 = vld [vmem:[%s63 + $0x50] sm:$0xff]
    %v3112 = vld [vmem:[%s63 + $0x58] sm:$0xff]
    %v3113 = vld [vmem:[%s63 + $0x60] sm:$0xff]
    %v3114 = vld [vmem:[%s63 + $0x68] sm:$0xff]
    %v3115 = vld [vmem:[%s63 + $0x70] sm:$0xff]
    %v3116 = vld [vmem:[%s63 + $0x78] sm:$0xff]
    %v3117 = vld [vmem:[%s63 + $0x80] sm:$0xff]
    %v3118 = vld [vmem:[%s63 + $0x88] sm:$0xff]
    %v3119 = vld [vmem:[%s63 + $0x90] sm:$0xff]
    %v3120 = vld [vmem:[%s63 + $0x98] sm:$0xff]
    %v3121 = vld [vmem:[%s63 + $0xa0] sm:$0xff]
    %v3122 = vld [vmem:[%s63 + $0xa8] sm:$0xff]
    %v3123 = vld [vmem:[%s63 + $0xb0] sm:$0xff]
    %v3124 = vld [vmem:[%s63 + $0xb8] sm:$0xff]
    %v3125 = vld [vmem:[%s63 + $0xc0] sm:$0xff]
    %v3126 = vld [vmem:[%s63 + $0xc8] sm:$0xff]
    %v3127 = vld [vmem:[%s63 + $0xd0] sm:$0xff]
    %v3128 = vld [vmem:[%s63 + $0xd8] sm:$0xff]
    %v3129 = vld [vmem:[%s63 + $0xe0] sm:$0xff]
    %v3130 = vld [vmem:[%s63 + $0xe8] sm:$0xff]
    %v3131 = vld [vmem:[%s63 + $0xf0] sm:$0xff]
    %v3132 = vld [vmem:[%s63 + $0xf8] sm:$0xff]
    %v3133 = vld [vmem:[%s65] sm:$0xff]
    %v3134 = vld [vmem:[%s65 + $0x8] sm:$0xff]
    %v3135 = vld [vmem:[%s67] sm:$0xf]
    %v3136 = vld [vmem:[%s67 + $0x4] sm:$0xf]
    %v3137 = vld [vmem:[%s67 + $0x8] sm:$0xf]
    %v3138 = vld [vmem:[%s67 + $0xc] sm:$0xf]
    %v3139 = vld [vmem:[%s67 + $0x10] sm:$0xf]
    %v3140 = vld [vmem:[%s67 + $0x14] sm:$0xf]
    %v3141 = vld [vmem:[%s67 + $0x18] sm:$0xf]
    %v3142 = vld [vmem:[%s67 + $0x1c] sm:$0xf]
    %v3143 = vld [vmem:[%s67 + $0x20] sm:$0xf]
    %v3144 = vld [vmem:[%s67 + $0x24] sm:$0xf]
    %v3145 = vld [vmem:[%s67 + $0x28] sm:$0xf]
    %v3146 = vld [vmem:[%s67 + $0x2c] sm:$0xf]
    %v3147 = vld [vmem:[%s67 + $0x30] sm:$0xf]
    %v3148 = vld [vmem:[%s67 + $0x34] sm:$0xf]
    %v3149 = vld [vmem:[%s67 + $0x38] sm:$0xf]
    %v3150 = vld [vmem:[%s67 + $0x3c] sm:$0xf]
    %v3151 = vld [vmem:[%s67 + $0x40] sm:$0xf]
    %v3152 = vld [vmem:[%s67 + $0x44] sm:$0xf]
    %v3153 = vld [vmem:[%s67 + $0x48] sm:$0xf]
    %v3154 = vld [vmem:[%s67 + $0x4c] sm:$0xf]
    %v3155 = vld [vmem:[%s67 + $0x50] sm:$0xf]
    %v3156 = vld [vmem:[%s67 + $0x54] sm:$0xf]
    %v3157 = vld [vmem:[%s67 + $0x58] sm:$0xf]
    %v3158 = vld [vmem:[%s67 + $0x5c] sm:$0xf]
    %v3159 = vld [vmem:[%s67 + $0x60] sm:$0xf]
    %v3160 = vld [vmem:[%s67 + $0x64] sm:$0xf]
    %v3161 = vld [vmem:[%s67 + $0x68] sm:$0xf]
    %v3162 = vld [vmem:[%s67 + $0x6c] sm:$0xf]
    %v3163 = vld [vmem:[%s67 + $0x70] sm:$0xf]
    %v3164 = vld [vmem:[%s67 + $0x74] sm:$0xf]
    %v3165 = vld [vmem:[%s67 + $0x78] sm:$0xf]
    %v3166 = vld [vmem:[%s67 + $0x7c] sm:$0xf]
    %v3167 = vld [vmem:[%s67 + $0x80] sm:$0xf]
    %v3168 = vld [vmem:[%s67 + $0x84] sm:$0xf]
    %v3169 = vld [vmem:[%s67 + $0x88] sm:$0xf]
    %v3170 = vld [vmem:[%s67 + $0x8c] sm:$0xf]
    %v3171 = vld [vmem:[%s67 + $0x90] sm:$0xf]
    %v3172 = vld [vmem:[%s67 + $0x94] sm:$0xf]
    %v3173 = vld [vmem:[%s67 + $0x98] sm:$0xf]
    %v3174 = vld [vmem:[%s67 + $0x9c] sm:$0xf]
    %v3175 = vld [vmem:[%s67 + $0xa0] sm:$0xf]
    %v3176 = vld [vmem:[%s67 + $0xa4] sm:$0xf]
    %v3177 = vld [vmem:[%s67 + $0xa8] sm:$0xf]
    %v3178 = vld [vmem:[%s67 + $0xac] sm:$0xf]
    %v3179 = vld [vmem:[%s67 + $0xb0] sm:$0xf]
    %v3180 = vld [vmem:[%s67 + $0xb4] sm:$0xf]
    %v3181 = vld [vmem:[%s67 + $0xb8] sm:$0xf]
    %v3182 = vld [vmem:[%s67 + $0xbc] sm:$0xf]
    %v3183 = vld [vmem:[%s67 + $0xc0] sm:$0xf]
    %v3184 = vld [vmem:[%s67 + $0xc4] sm:$0xf]
    %v3185 = vld [vmem:[%s67 + $0xc8] sm:$0xf]
    %v3186 = vld [vmem:[%s67 + $0xcc] sm:$0xf]
    %v3187 = vld [vmem:[%s67 + $0xd0] sm:$0xf]
    %v3188 = vld [vmem:[%s67 + $0xd4] sm:$0xf]
    %v3189 = vld [vmem:[%s67 + $0xd8] sm:$0xf]
    %v3190 = vld [vmem:[%s67 + $0xdc] sm:$0xf]
    %v3191 = vld [vmem:[%s67 + $0xe0] sm:$0xf]
    %v3192 = vld [vmem:[%s67 + $0xe4] sm:$0xf]
    %v3193 = vld [vmem:[%s67 + $0xe8] sm:$0xf]
    %v3194 = vld [vmem:[%s67 + $0xec] sm:$0xf]
    %v3195 = vld [vmem:[%s67 + $0xf0] sm:$0xf]
    %v3196 = vld [vmem:[%s67 + $0xf4] sm:$0xf]
    %v3197 = vld [vmem:[%s67 + $0xf8] sm:$0xf]
    %v3198 = vld [vmem:[%s67 + $0xfc] sm:$0xf]
    %v3199 = vld [vmem:[%s67 + $0x100] sm:$0xf]
    %v3200 = vld [vmem:[%s67 + $0x104] sm:$0xf]
    %v3201 = vld [vmem:[%s67 + $0x108] sm:$0xf]
    %v3202 = vld [vmem:[%s67 + $0x10c] sm:$0xf]
    %v3203 = vld [vmem:[%s67 + $0x110] sm:$0xf]
    %v3204 = vld [vmem:[%s67 + $0x114] sm:$0xf]
    %v3205 = vld [vmem:[%s67 + $0x118] sm:$0xf]
    %v3206 = vld [vmem:[%s67 + $0x11c] sm:$0xf]
    %v3207 = vld [vmem:[%s67 + $0x120] sm:$0xf]
    %v3208 = vld [vmem:[%s67 + $0x124] sm:$0xf]
    %v3209 = vld [vmem:[%s67 + $0x128] sm:$0xf]
    %v3210 = vld [vmem:[%s67 + $0x12c] sm:$0xf]
    %v3211 = vld [vmem:[%s67 + $0x130] sm:$0xf]
    %v3212 = vld [vmem:[%s67 + $0x134] sm:$0xf]
    %v3213 = vld [vmem:[%s67 + $0x138] sm:$0xf]
    %v3214 = vld [vmem:[%s67 + $0x13c] sm:$0xf]
    %v3215 = vld [vmem:[%s67 + $0x140] sm:$0xf]
    %v3216 = vld [vmem:[%s67 + $0x144] sm:$0xf]
    %v3217 = vld [vmem:[%s67 + $0x148] sm:$0xf]
    %v3218 = vld [vmem:[%s67 + $0x14c] sm:$0xf]
    %v3219 = vld [vmem:[%s67 + $0x150] sm:$0xf]
    %v3220 = vld [vmem:[%s67 + $0x154] sm:$0xf]
    %v3221 = vld [vmem:[%s67 + $0x158] sm:$0xf]
    %v3222 = vld [vmem:[%s67 + $0x15c] sm:$0xf]
    %v3223 = vld [vmem:[%s67 + $0x160] sm:$0xf]
    %v3224 = vld [vmem:[%s67 + $0x164] sm:$0xf]
    %v3225 = vld [vmem:[%s67 + $0x168] sm:$0xf]
    %v3226 = vld [vmem:[%s67 + $0x16c] sm:$0xf]
    %v3227 = vld [vmem:[%s67 + $0x170] sm:$0xf]
    %v3228 = vld [vmem:[%s67 + $0x174] sm:$0xf]
    %v3229 = vld [vmem:[%s67 + $0x178] sm:$0xf]
    %v3230 = vld [vmem:[%s67 + $0x17c] sm:$0xf]
    %v3231 = vld [vmem:[%s67 + $0x180] sm:$0xf]
    %v3232 = vld [vmem:[%s67 + $0x184] sm:$0xf]
    %v3233 = vld [vmem:[%s67 + $0x188] sm:$0xf]
    %v3234 = vld [vmem:[%s67 + $0x18c] sm:$0xf]
    %v3235 = vld [vmem:[%s67 + $0x190] sm:$0xf]
    %v3236 = vld [vmem:[%s67 + $0x194] sm:$0xf]
    %v3237 = vld [vmem:[%s67 + $0x198] sm:$0xf]
    %v3238 = vld [vmem:[%s67 + $0x19c] sm:$0xf]
    %v3239 = vld [vmem:[%s67 + $0x1a0] sm:$0xf]
    %v3240 = vld [vmem:[%s67 + $0x1a4] sm:$0xf]
    %v3241 = vld [vmem:[%s67 + $0x1a8] sm:$0xf]
    %v3242 = vld [vmem:[%s67 + $0x1ac] sm:$0xf]
    %v3243 = vld [vmem:[%s67 + $0x1b0] sm:$0xf]
    %v3244 = vld [vmem:[%s67 + $0x1b4] sm:$0xf]
    %v3245 = vld [vmem:[%s67 + $0x1b8] sm:$0xf]
    %v3246 = vld [vmem:[%s67 + $0x1bc] sm:$0xf]
    %v3247 = vld [vmem:[%s67 + $0x1c0] sm:$0xf]
    %v3248 = vld [vmem:[%s67 + $0x1c4] sm:$0xf]
    %v3249 = vld [vmem:[%s67 + $0x1c8] sm:$0xf]
    %v3250 = vld [vmem:[%s67 + $0x1cc] sm:$0xf]
    %v3251 = vld [vmem:[%s67 + $0x1d0] sm:$0xf]
    %v3252 = vld [vmem:[%s67 + $0x1d4] sm:$0xf]
    %v3253 = vld [vmem:[%s67 + $0x1d8] sm:$0xf]
    %v3254 = vld [vmem:[%s67 + $0x1dc] sm:$0xf]
    %v3255 = vld [vmem:[%s67 + $0x1e0] sm:$0xf]
    %v3256 = vld [vmem:[%s67 + $0x1e4] sm:$0xf]
    %v3257 = vld [vmem:[%s67 + $0x1e8] sm:$0xf]
    %v3258 = vld [vmem:[%s67 + $0x1ec] sm:$0xf]
    %v3259 = vld [vmem:[%s67 + $0x1f0] sm:$0xf]
    %v3260 = vld [vmem:[%s67 + $0x1f4] sm:$0xf]
    %v3261 = vld [vmem:[%s67 + $0x1f8] sm:$0xf]
    %v3262 = vld [vmem:[%s67 + $0x1fc] sm:$0xf]
    %v3263 = vld [vmem:[%s67 + $0x200] sm:$0xf]
    %v3264 = vld [vmem:[%s67 + $0x204] sm:$0xf]
    %v3265 = vld [vmem:[%s67 + $0x208] sm:$0xf]
    %v3266 = vld [vmem:[%s67 + $0x20c] sm:$0xf]
    %v3267 = vld [vmem:[%s67 + $0x210] sm:$0xf]
    %v3268 = vld [vmem:[%s67 + $0x214] sm:$0xf]
    %v3269 = vld [vmem:[%s67 + $0x218] sm:$0xf]
    %v3270 = vld [vmem:[%s67 + $0x21c] sm:$0xf]
    %v3271 = vld [vmem:[%s67 + $0x220] sm:$0xf]
    %v3272 = vld [vmem:[%s67 + $0x224] sm:$0xf]
    %v3273 = vld [vmem:[%s67 + $0x228] sm:$0xf]
    %v3274 = vld [vmem:[%s67 + $0x22c] sm:$0xf]
    %v3275 = vld [vmem:[%s67 + $0x230] sm:$0xf]
    %v3276 = vld [vmem:[%s67 + $0x234] sm:$0xf]
    %v3277 = vld [vmem:[%s67 + $0x238] sm:$0xf]
    %v3278 = vld [vmem:[%s67 + $0x23c] sm:$0xf]
    %v3279 = vld [vmem:[%s67 + $0x240] sm:$0xf]
    %v3280 = vld [vmem:[%s67 + $0x244] sm:$0xf]
    %v3281 = vld [vmem:[%s67 + $0x248] sm:$0xf]
    %v3282 = vld [vmem:[%s67 + $0x24c] sm:$0xf]
    %v3283 = vld [vmem:[%s67 + $0x250] sm:$0xf]
    %v3284 = vld [vmem:[%s67 + $0x254] sm:$0xf]
    %v3285 = vld [vmem:[%s67 + $0x258] sm:$0xf]
    %v3286 = vld [vmem:[%s67 + $0x25c] sm:$0xf]
    %v3287 = vld [vmem:[%s67 + $0x260] sm:$0xf]
    %v3288 = vld [vmem:[%s67 + $0x264] sm:$0xf]
    %v3289 = vld [vmem:[%s67 + $0x268] sm:$0xf]
    %v3290 = vld [vmem:[%s67 + $0x26c] sm:$0xf]
    %v3291 = vld [vmem:[%s67 + $0x270] sm:$0xf]
    %v3292 = vld [vmem:[%s67 + $0x274] sm:$0xf]
    %v3293 = vld [vmem:[%s67 + $0x278] sm:$0xf]
    %v3294 = vld [vmem:[%s67 + $0x27c] sm:$0xf]
    %v3295 = vld [vmem:[%s67 + $0x280] sm:$0xf]
    %v3296 = vld [vmem:[%s67 + $0x284] sm:$0xf]
    %v3297 = vld [vmem:[%s67 + $0x288] sm:$0xf]
    %v3298 = vld [vmem:[%s67 + $0x28c] sm:$0xf]
    %v3299 = vld [vmem:[%s67 + $0x290] sm:$0xf]
    %v3300 = vld [vmem:[%s67 + $0x294] sm:$0xf]
    %v3301 = vld [vmem:[%s67 + $0x298] sm:$0xf]
    %v3302 = vld [vmem:[%s67 + $0x29c] sm:$0xf]
    %v3303 = vld [vmem:[%s67 + $0x2a0] sm:$0xf]
    %v3304 = vld [vmem:[%s67 + $0x2a4] sm:$0xf]
    %v3305 = vld [vmem:[%s67 + $0x2a8] sm:$0xf]
    %v3306 = vld [vmem:[%s67 + $0x2ac] sm:$0xf]
    %v3307 = vld [vmem:[%s67 + $0x2b0] sm:$0xf]
    %v3308 = vld [vmem:[%s67 + $0x2b4] sm:$0xf]
    %v3309 = vld [vmem:[%s67 + $0x2b8] sm:$0xf]
    %v3310 = vld [vmem:[%s67 + $0x2bc] sm:$0xf]
    %v3311 = vld [vmem:[%s67 + $0x2c0] sm:$0xf]
    %v3312 = vld [vmem:[%s67 + $0x2c4] sm:$0xf]
    %v3313 = vld [vmem:[%s67 + $0x2c8] sm:$0xf]
    %v3314 = vld [vmem:[%s67 + $0x2cc] sm:$0xf]
    %v3315 = vld [vmem:[%s67 + $0x2d0] sm:$0xf]
    %v3316 = vld [vmem:[%s67 + $0x2d4] sm:$0xf]
    %v3317 = vld [vmem:[%s67 + $0x2d8] sm:$0xf]
    %v3318 = vld [vmem:[%s67 + $0x2dc] sm:$0xf]
    %v3319 = vld [vmem:[%s67 + $0x2e0] sm:$0xf]
    %v3320 = vld [vmem:[%s67 + $0x2e4] sm:$0xf]
    %v3321 = vld [vmem:[%s67 + $0x2e8] sm:$0xf]
    %v3322 = vld [vmem:[%s67 + $0x2ec] sm:$0xf]
    %v3323 = vld [vmem:[%s67 + $0x2f0] sm:$0xf]
    %v3324 = vld [vmem:[%s67 + $0x2f4] sm:$0xf]
    %v3325 = vld [vmem:[%s67 + $0x2f8] sm:$0xf]
    %v3326 = vld [vmem:[%s67 + $0x2fc] sm:$0xf]
    %v3327 = vld [vmem:[%s67 + $0x300] sm:$0xf]
    %v3328 = vld [vmem:[%s67 + $0x304] sm:$0xf]
    %v3329 = vld [vmem:[%s67 + $0x308] sm:$0xf]
    %v3330 = vld [vmem:[%s67 + $0x30c] sm:$0xf]
    %v3331 = vld [vmem:[%s67 + $0x310] sm:$0xf]
    %v3332 = vld [vmem:[%s67 + $0x314] sm:$0xf]
    %v3333 = vld [vmem:[%s67 + $0x318] sm:$0xf]
    %v3334 = vld [vmem:[%s67 + $0x31c] sm:$0xf]
    %v3335 = vld [vmem:[%s67 + $0x320] sm:$0xf]
    %v3336 = vld [vmem:[%s67 + $0x324] sm:$0xf]
    %v3337 = vld [vmem:[%s67 + $0x328] sm:$0xf]
    %v3338 = vld [vmem:[%s67 + $0x32c] sm:$0xf]
    %v3339 = vld [vmem:[%s67 + $0x330] sm:$0xf]
    %v3340 = vld [vmem:[%s67 + $0x334] sm:$0xf]
    %v3341 = vld [vmem:[%s67 + $0x338] sm:$0xf]
    %v3342 = vld [vmem:[%s67 + $0x33c] sm:$0xf]
    %v3343 = vld [vmem:[%s67 + $0x340] sm:$0xf]
    %v3344 = vld [vmem:[%s67 + $0x344] sm:$0xf]
    %v3345 = vld [vmem:[%s67 + $0x348] sm:$0xf]
    %v3346 = vld [vmem:[%s67 + $0x34c] sm:$0xf]
    %v3347 = vld [vmem:[%s67 + $0x350] sm:$0xf]
    %v3348 = vld [vmem:[%s67 + $0x354] sm:$0xf]
    %v3349 = vld [vmem:[%s67 + $0x358] sm:$0xf]
    %v3350 = vld [vmem:[%s67 + $0x35c] sm:$0xf]
    %v3351 = vld [vmem:[%s67 + $0x360] sm:$0xf]
    %v3352 = vld [vmem:[%s67 + $0x364] sm:$0xf]
    %v3353 = vld [vmem:[%s67 + $0x368] sm:$0xf]
    %v3354 = vld [vmem:[%s67 + $0x36c] sm:$0xf]
    %v3355 = vld [vmem:[%s67 + $0x370] sm:$0xf]
    %v3356 = vld [vmem:[%s67 + $0x374] sm:$0xf]
    %v3357 = vld [vmem:[%s67 + $0x378] sm:$0xf]
    %v3358 = vld [vmem:[%s67 + $0x37c] sm:$0xf]
    %v3359 = vld [vmem:[%s67 + $0x380] sm:$0xf]
    %v3360 = vld [vmem:[%s67 + $0x384] sm:$0xf]
    %v3361 = vld [vmem:[%s67 + $0x388] sm:$0xf]
    %v3362 = vld [vmem:[%s67 + $0x38c] sm:$0xf]
    %v3363 = vld [vmem:[%s67 + $0x390] sm:$0xf]
    %v3364 = vld [vmem:[%s67 + $0x394] sm:$0xf]
    %v3365 = vld [vmem:[%s67 + $0x398] sm:$0xf]
    %v3366 = vld [vmem:[%s67 + $0x39c] sm:$0xf]
    %v3367 = vld [vmem:[%s67 + $0x3a0] sm:$0xf]
    %v3368 = vld [vmem:[%s67 + $0x3a4] sm:$0xf]
    %v3369 = vld [vmem:[%s67 + $0x3a8] sm:$0xf]
    %v3370 = vld [vmem:[%s67 + $0x3ac] sm:$0xf]
    %v3371 = vld [vmem:[%s67 + $0x3b0] sm:$0xf]
    %v3372 = vld [vmem:[%s67 + $0x3b4] sm:$0xf]
    %v3373 = vld [vmem:[%s67 + $0x3b8] sm:$0xf]
    %v3374 = vld [vmem:[%s67 + $0x3bc] sm:$0xf]
    %v3375 = vld [vmem:[%s67 + $0x3c0] sm:$0xf]
    %v3376 = vld [vmem:[%s67 + $0x3c4] sm:$0xf]
    %v3377 = vld [vmem:[%s67 + $0x3c8] sm:$0xf]
    %v3378 = vld [vmem:[%s67 + $0x3cc] sm:$0xf]
    %v3379 = vld [vmem:[%s67 + $0x3d0] sm:$0xf]
    %v3380 = vld [vmem:[%s67 + $0x3d4] sm:$0xf]
    %v3381 = vld [vmem:[%s67 + $0x3d8] sm:$0xf]
    %v3382 = vld [vmem:[%s67 + $0x3dc] sm:$0xf]
    %v3383 = vld [vmem:[%s67 + $0x3e0] sm:$0xf]
    %v3384 = vld [vmem:[%s67 + $0x3e4] sm:$0xf]
    %v3385 = vld [vmem:[%s67 + $0x3e8] sm:$0xf]
    %v3386 = vld [vmem:[%s67 + $0x3ec] sm:$0xf]
    %v3387 = vld [vmem:[%s67 + $0x3f0] sm:$0xf]
    %v3388 = vld [vmem:[%s67 + $0x3f4] sm:$0xf]
    %v3389 = vld [vmem:[%s67 + $0x3f8] sm:$0xf]
    %v3390 = vld [vmem:[%s67 + $0x3fc] sm:$0xf]
    %v3391 = vld [vmem:[%s69] sm:$0x1]
    %v3392 = vpack.c.bf16 %v3100, %v3099
    %v3395 = vperm.slane %v3133, 0
    %v3396 = vperm.slane %v3133, 1
    %v3397 = vperm.slane %v3133, 2
    %v3398 = vperm.slane %v3133, 3
    %v3399 = vperm.slane %v3133, 4
    %v3400 = vperm.slane %v3133, 5
    %v3401 = vperm.slane %v3133, 6
    %v3402 = vperm.slane %v3133, 7
    %v3403 = vperm.slane %v3134, 0
    %v3404 = vperm.slane %v3134, 1
    %v3405 = vperm.slane %v3134, 2
    %v3406 = vperm.slane %v3134, 3
    %v3407 = vperm.slane %v3134, 4
    %v3408 = vperm.slane %v3134, 5
    %v3409 = vperm.slane %v3134, 6
    %v3410 = vperm.slane %v3134, 7
    %v3459 = vunpack.c.l.b16 %v3101
    %v3460 = vunpack.c.h.b16 %v3101
    %v3461 = vunpack.c.l.b16 %v3102
    %v3462 = vunpack.c.h.b16 %v3102
    %v3463 = vunpack.c.l.b16 %v3103
    %v3464 = vunpack.c.h.b16 %v3103
    %v3465 = vunpack.c.l.b16 %v3104
    %v3466 = vunpack.c.h.b16 %v3104
    %v3467 = vunpack.c.l.b16 %v3105
    %v3468 = vunpack.c.h.b16 %v3105
    %v3469 = vunpack.c.l.b16 %v3106
    %v3470 = vunpack.c.h.b16 %v3106
    %v3471 = vunpack.c.l.b16 %v3107
    %v3472 = vunpack.c.h.b16 %v3107
    %v3473 = vunpack.c.l.b16 %v3108
    %v3474 = vunpack.c.h.b16 %v3108
    %v3475 = vunpack.c.l.b16 %v3109
    %v3476 = vunpack.c.h.b16 %v3109
    %v3477 = vunpack.c.l.b16 %v3110
    %v3478 = vunpack.c.h.b16 %v3110
    %v3479 = vunpack.c.l.b16 %v3111
    %v3480 = vunpack.c.h.b16 %v3111
    %v3481 = vunpack.c.l.b16 %v3112
    %v3482 = vunpack.c.h.b16 %v3112
    %v3483 = vunpack.c.l.b16 %v3113
    %v3484 = vunpack.c.h.b16 %v3113
    %v3485 = vunpack.c.l.b16 %v3114
    %v3486 = vunpack.c.h.b16 %v3114
    %v3487 = vunpack.c.l.b16 %v3115
    %v3488 = vunpack.c.h.b16 %v3115
    %v3489 = vunpack.c.l.b16 %v3116
    %v3490 = vunpack.c.h.b16 %v3116
    %v3491 = vunpack.c.l.b16 %v3117
    %v3492 = vunpack.c.h.b16 %v3117
    %v3493 = vunpack.c.l.b16 %v3118
    %v3494 = vunpack.c.h.b16 %v3118
    %v3495 = vunpack.c.l.b16 %v3119
    %v3496 = vunpack.c.h.b16 %v3119
    %v3497 = vunpack.c.l.b16 %v3120
    %v3498 = vunpack.c.h.b16 %v3120
    %v3499 = vunpack.c.l.b16 %v3121
    %v3500 = vunpack.c.h.b16 %v3121
    %v3501 = vunpack.c.l.b16 %v3122
    %v3502 = vunpack.c.h.b16 %v3122
    %v3503 = vunpack.c.l.b16 %v3123
    %v3504 = vunpack.c.h.b16 %v3123
    %v3505 = vunpack.c.l.b16 %v3124
    %v3506 = vunpack.c.h.b16 %v3124
    %v3507 = vunpack.c.l.b16 %v3125
    %v3508 = vunpack.c.h.b16 %v3125
    %v3509 = vunpack.c.l.b16 %v3126
    %v3510 = vunpack.c.h.b16 %v3126
    %v3511 = vunpack.c.l.b16 %v3127
    %v3512 = vunpack.c.h.b16 %v3127
    %v3513 = vunpack.c.l.b16 %v3128
    %v3514 = vunpack.c.h.b16 %v3128
    %v3515 = vunpack.c.l.b16 %v3129
    %v3516 = vunpack.c.h.b16 %v3129
    %v3517 = vunpack.c.l.b16 %v3130
    %v3518 = vunpack.c.h.b16 %v3130
    %v3519 = vunpack.c.l.b16 %v3131
    %v3520 = vunpack.c.h.b16 %v3131
    %v3521 = vunpack.c.l.b16 %v3132
    %v3522 = vunpack.c.h.b16 %v3132
    %v3523 = vpack.c.b16 %v3475, %v3459
    %v3524 = vpack.c.b16 %v3476, %v3460
    %v3525 = vpack.c.b16 %v3477, %v3461
    %v3526 = vpack.c.b16 %v3478, %v3462
    %v3527 = vpack.c.b16 %v3479, %v3463
    %v3528 = vpack.c.b16 %v3480, %v3464
    %v3529 = vpack.c.b16 %v3481, %v3465
    %v3530 = vpack.c.b16 %v3482, %v3466
    %v3531 = vpack.c.b16 %v3483, %v3467
    %v3532 = vpack.c.b16 %v3484, %v3468
    %v3533 = vpack.c.b16 %v3485, %v3469
    %v3534 = vpack.c.b16 %v3486, %v3470
    %v3535 = vpack.c.b16 %v3487, %v3471
    %v3536 = vpack.c.b16 %v3488, %v3472
    %v3537 = vpack.c.b16 %v3489, %v3473
    %v3538 = vpack.c.b16 %v3490, %v3474
    %v3539 = vpack.c.b16 %v3507, %v3491
    %v3540 = vpack.c.b16 %v3508, %v3492
    %v3541 = vpack.c.b16 %v3509, %v3493
    %v3542 = vpack.c.b16 %v3510, %v3494
    %v3543 = vpack.c.b16 %v3511, %v3495
    %v3544 = vpack.c.b16 %v3512, %v3496
    %v3545 = vpack.c.b16 %v3513, %v3497
    %v3546 = vpack.c.b16 %v3514, %v3498
    %v3547 = vpack.c.b16 %v3515, %v3499
    %v3548 = vpack.c.b16 %v3516, %v3500
    %v3549 = vpack.c.b16 %v3517, %v3501
    %v3550 = vpack.c.b16 %v3518, %v3502
    %v3551 = vpack.c.b16 %v3519, %v3503
    %v3552 = vpack.c.b16 %v3520, %v3504
    %v3553 = vpack.c.b16 %v3521, %v3505
    %v3554 = vpack.c.b16 %v3522, %v3506
    %v3588 = vsel %vm204, %v3392, 0
    %3590 = vmatpush.bf16.msra.mxu0 0
    %3591 = vmatpush.bf16.msra.mxu0 0
    %3592 = vmatpush.bf16.msra.mxu0 0
    %3593 = vmatpush.bf16.msra.mxu0 0
    %3594 = vmatpush.bf16.msra.mxu0 0
    %3595 = vmatpush.bf16.msra.mxu0 0
    %3596 = vmatpush.bf16.msra.mxu0 %v3539
    %3597 = vmatpush.bf16.msra.mxu0 %v3523
    %3598 = vmatmul.bf16.gmra.mxu0 %v3588
    %v3599 = vpop.f32.mrf.mxu0
    %v3600 = vadd.f32 %v3395, %v3599
    %v3601 = vpop.f32.mrf.mxu0
    %v3602 = vadd.f32 %v3395, %v3601
    %3603 = vdwg.mxu0
    %3604 = vmatpush.bf16.msra.mxu0 0
    %3605 = vmatpush.bf16.msra.mxu0 0
    %3606 = vmatpush.bf16.msra.mxu0 0
    %3607 = vmatpush.bf16.msra.mxu0 0
    %3608 = vmatpush.bf16.msra.mxu0 0
    %3609 = vmatpush.bf16.msra.mxu0 0
    %3610 = vmatpush.bf16.msra.mxu0 %v3540
    %3611 = vmatpush.bf16.msra.mxu0 %v3524
    %3612 = vmatmul.bf16.gmra.mxu0 %v3588
    %v3613 = vpop.f32.mrf.mxu0
    %v3614 = vadd.f32 %v3396, %v3613
    %v3615 = vpop.f32.mrf.mxu0
    %v3616 = vadd.f32 %v3396, %v3615
    %3617 = vdwg.mxu0
    %3618 = vmatpush.bf16.msra.mxu0 0
    %3619 = vmatpush.bf16.msra.mxu0 0
    %3620 = vmatpush.bf16.msra.mxu0 0
    %3621 = vmatpush.bf16.msra.mxu0 0
    %3622 = vmatpush.bf16.msra.mxu0 0
    %3623 = vmatpush.bf16.msra.mxu0 0
    %3624 = vmatpush.bf16.msra.mxu0 %v3541
    %3625 = vmatpush.bf16.msra.mxu0 %v3525
    %3626 = vmatmul.bf16.gmra.mxu0 %v3588
    %v3627 = vpop.f32.mrf.mxu0
    %v3628 = vadd.f32 %v3397, %v3627
    %v3629 = vpop.f32.mrf.mxu0
    %v3630 = vadd.f32 %v3397, %v3629
    %3631 = vdwg.mxu0
    %3632 = vmatpush.bf16.msra.mxu0 0
    %3633 = vmatpush.bf16.msra.mxu0 0
    %3634 = vmatpush.bf16.msra.mxu0 0
    %3635 = vmatpush.bf16.msra.mxu0 0
    %3636 = vmatpush.bf16.msra.mxu0 0
    %3637 = vmatpush.bf16.msra.mxu0 0
    %3638 = vmatpush.bf16.msra.mxu0 %v3542
    %3639 = vmatpush.bf16.msra.mxu0 %v3526
    %3640 = vmatmul.bf16.gmra.mxu0 %v3588
    %v3641 = vpop.f32.mrf.mxu0
    %v3642 = vadd.f32 %v3398, %v3641
    %v3643 = vpop.f32.mrf.mxu0
    %v3644 = vadd.f32 %v3398, %v3643
    %3645 = vdwg.mxu0
    %3646 = vmatpush.bf16.msra.mxu0 0
    %3647 = vmatpush.bf16.msra.mxu0 0
    %3648 = vmatpush.bf16.msra.mxu0 0
    %3649 = vmatpush.bf16.msra.mxu0 0
    %3650 = vmatpush.bf16.msra.mxu0 0
    %3651 = vmatpush.bf16.msra.mxu0 0
    %3652 = vmatpush.bf16.msra.mxu0 %v3543
    %3653 = vmatpush.bf16.msra.mxu0 %v3527
    %3654 = vmatmul.bf16.gmra.mxu0 %v3588
    %v3655 = vpop.f32.mrf.mxu0
    %v3656 = vadd.f32 %v3399, %v3655
    %v3657 = vpop.f32.mrf.mxu0
    %v3658 = vadd.f32 %v3399, %v3657
    %3659 = vdwg.mxu0
    %3660 = vmatpush.bf16.msra.mxu0 0
    %3661 = vmatpush.bf16.msra.mxu0 0
    %3662 = vmatpush.bf16.msra.mxu0 0
    %3663 = vmatpush.bf16.msra.mxu0 0
    %3664 = vmatpush.bf16.msra.mxu0 0
    %3665 = vmatpush.bf16.msra.mxu0 0
    %3666 = vmatpush.bf16.msra.mxu0 %v3544
    %3667 = vmatpush.bf16.msra.mxu0 %v3528
    %3668 = vmatmul.bf16.gmra.mxu0 %v3588
    %v3669 = vpop.f32.mrf.mxu0
    %v3670 = vadd.f32 %v3400, %v3669
    %v3671 = vpop.f32.mrf.mxu0
    %v3672 = vadd.f32 %v3400, %v3671
    %3673 = vdwg.mxu0
    %3674 = vmatpush.bf16.msra.mxu0 0
    %3675 = vmatpush.bf16.msra.mxu0 0
    %3676 = vmatpush.bf16.msra.mxu0 0
    %3677 = vmatpush.bf16.msra.mxu0 0
    %3678 = vmatpush.bf16.msra.mxu0 0
    %3679 = vmatpush.bf16.msra.mxu0 0
    %3680 = vmatpush.bf16.msra.mxu0 %v3545
    %3681 = vmatpush.bf16.msra.mxu0 %v3529
    %3682 = vmatmul.bf16.gmra.mxu0 %v3588
    %v3683 = vpop.f32.mrf.mxu0
    %v3684 = vadd.f32 %v3401, %v3683
    %v3685 = vpop.f32.mrf.mxu0
    %v3686 = vadd.f32 %v3401, %v3685
    %3687 = vdwg.mxu0
    %3688 = vmatpush.bf16.msra.mxu0 0
    %3689 = vmatpush.bf16.msra.mxu0 0
    %3690 = vmatpush.bf16.msra.mxu0 0
    %3691 = vmatpush.bf16.msra.mxu0 0
    %3692 = vmatpush.bf16.msra.mxu0 0
    %3693 = vmatpush.bf16.msra.mxu0 0
    %3694 = vmatpush.bf16.msra.mxu0 %v3546
    %3695 = vmatpush.bf16.msra.mxu0 %v3530
    %3696 = vmatmul.bf16.gmra.mxu0 %v3588
    %v3697 = vpop.f32.mrf.mxu0
    %v3698 = vadd.f32 %v3402, %v3697
    %v3699 = vpop.f32.mrf.mxu0
    %v3700 = vadd.f32 %v3402, %v3699
    %3701 = vdwg.mxu0
    %3702 = vmatpush.bf16.msra.mxu0 0
    %3703 = vmatpush.bf16.msra.mxu0 0
    %3704 = vmatpush.bf16.msra.mxu0 0
    %3705 = vmatpush.bf16.msra.mxu0 0
    %3706 = vmatpush.bf16.msra.mxu0 0
    %3707 = vmatpush.bf16.msra.mxu0 0
    %3708 = vmatpush.bf16.msra.mxu0 %v3547
    %3709 = vmatpush.bf16.msra.mxu0 %v3531
    %3710 = vmatmul.bf16.gmra.mxu0 %v3588
    %v3711 = vpop.f32.mrf.mxu0
    %v3712 = vadd.f32 %v3403, %v3711
    %v3713 = vpop.f32.mrf.mxu0
    %v3714 = vadd.f32 %v3403, %v3713
    %3715 = vdwg.mxu0
    %3716 = vmatpush.bf16.msra.mxu0 0
    %3717 = vmatpush.bf16.msra.mxu0 0
    %3718 = vmatpush.bf16.msra.mxu0 0
    %3719 = vmatpush.bf16.msra.mxu0 0
    %3720 = vmatpush.bf16.msra.mxu0 0
    %3721 = vmatpush.bf16.msra.mxu0 0
    %3722 = vmatpush.bf16.msra.mxu0 %v3548
    %3723 = vmatpush.bf16.msra.mxu0 %v3532
    %3724 = vmatmul.bf16.gmra.mxu0 %v3588
    %v3725 = vpop.f32.mrf.mxu0
    %v3726 = vadd.f32 %v3404, %v3725
    %v3727 = vpop.f32.mrf.mxu0
    %v3728 = vadd.f32 %v3404, %v3727
    %3729 = vdwg.mxu0
    %3730 = vmatpush.bf16.msra.mxu0 0
    %3731 = vmatpush.bf16.msra.mxu0 0
    %3732 = vmatpush.bf16.msra.mxu0 0
    %3733 = vmatpush.bf16.msra.mxu0 0
    %3734 = vmatpush.bf16.msra.mxu0 0
    %3735 = vmatpush.bf16.msra.mxu0 0
    %3736 = vmatpush.bf16.msra.mxu0 %v3549
    %3737 = vmatpush.bf16.msra.mxu0 %v3533
    %3738 = vmatmul.bf16.gmra.mxu0 %v3588
    %v3739 = vpop.f32.mrf.mxu0
    %v3740 = vadd.f32 %v3405, %v3739
    %v3741 = vpop.f32.mrf.mxu0
    %v3742 = vadd.f32 %v3405, %v3741
    %3743 = vdwg.mxu0
    %3744 = vmatpush.bf16.msra.mxu0 0
    %3745 = vmatpush.bf16.msra.mxu0 0
    %3746 = vmatpush.bf16.msra.mxu0 0
    %3747 = vmatpush.bf16.msra.mxu0 0
    %3748 = vmatpush.bf16.msra.mxu0 0
    %3749 = vmatpush.bf16.msra.mxu0 0
    %3750 = vmatpush.bf16.msra.mxu0 %v3550
    %3751 = vmatpush.bf16.msra.mxu0 %v3534
    %3752 = vmatmul.bf16.gmra.mxu0 %v3588
    %v3753 = vpop.f32.mrf.mxu0
    %v3754 = vadd.f32 %v3406, %v3753
    %v3755 = vpop.f32.mrf.mxu0
    %v3756 = vadd.f32 %v3406, %v3755
    %3757 = vdwg.mxu0
    %3758 = vmatpush.bf16.msra.mxu0 0
    %3759 = vmatpush.bf16.msra.mxu0 0
    %3760 = vmatpush.bf16.msra.mxu0 0
    %3761 = vmatpush.bf16.msra.mxu0 0
    %3762 = vmatpush.bf16.msra.mxu0 0
    %3763 = vmatpush.bf16.msra.mxu0 0
    %3764 = vmatpush.bf16.msra.mxu0 %v3551
    %3765 = vmatpush.bf16.msra.mxu0 %v3535
    %3766 = vmatmul.bf16.gmra.mxu0 %v3588
    %v3767 = vpop.f32.mrf.mxu0
    %v3768 = vadd.f32 %v3407, %v3767
    %v3769 = vpop.f32.mrf.mxu0
    %v3770 = vadd.f32 %v3407, %v3769
    %3771 = vdwg.mxu0
    %3772 = vmatpush.bf16.msra.mxu0 0
    %3773 = vmatpush.bf16.msra.mxu0 0
    %3774 = vmatpush.bf16.msra.mxu0 0
    %3775 = vmatpush.bf16.msra.mxu0 0
    %3776 = vmatpush.bf16.msra.mxu0 0
    %3777 = vmatpush.bf16.msra.mxu0 0
    %3778 = vmatpush.bf16.msra.mxu0 %v3552
    %3779 = vmatpush.bf16.msra.mxu0 %v3536
    %3780 = vmatmul.bf16.gmra.mxu0 %v3588
    %v3781 = vpop.f32.mrf.mxu0
    %v3782 = vadd.f32 %v3408, %v3781
    %v3783 = vpop.f32.mrf.mxu0
    %v3784 = vadd.f32 %v3408, %v3783
    %3785 = vdwg.mxu0
    %3786 = vmatpush.bf16.msra.mxu0 0
    %3787 = vmatpush.bf16.msra.mxu0 0
    %3788 = vmatpush.bf16.msra.mxu0 0
    %3789 = vmatpush.bf16.msra.mxu0 0
    %3790 = vmatpush.bf16.msra.mxu0 0
    %3791 = vmatpush.bf16.msra.mxu0 0
    %3792 = vmatpush.bf16.msra.mxu0 %v3553
    %3793 = vmatpush.bf16.msra.mxu0 %v3537
    %3794 = vmatmul.bf16.gmra.mxu0 %v3588
    %v3795 = vpop.f32.mrf.mxu0
    %v3796 = vadd.f32 %v3409, %v3795
    %v3797 = vpop.f32.mrf.mxu0
    %v3798 = vadd.f32 %v3409, %v3797
    %3799 = vdwg.mxu0
    %3800 = vmatpush.bf16.msra.mxu0 0
    %3801 = vmatpush.bf16.msra.mxu0 0
    %3802 = vmatpush.bf16.msra.mxu0 0
    %3803 = vmatpush.bf16.msra.mxu0 0
    %3804 = vmatpush.bf16.msra.mxu0 0
    %3805 = vmatpush.bf16.msra.mxu0 0
    %3806 = vmatpush.bf16.msra.mxu0 %v3554
    %3807 = vmatpush.bf16.msra.mxu0 %v3538
    %3808 = vmatmul.bf16.gmra.mxu0 %v3588
    %v3809 = vpop.f32.mrf.mxu0
    %v3810 = vadd.f32 %v3410, %v3809
    %v3811 = vpop.f32.mrf.mxu0
    %v3812 = vadd.f32 %v3410, %v3811
    %3813 = vdwg.mxu0
    %v3814 = vmax.f32 %v3600, 0.0
    %v3815 = vmax.f32 %v3614, 0.0
    %v3816 = vmax.f32 %v3628, 0.0
    %v3817 = vmax.f32 %v3642, 0.0
    %v3818 = vmax.f32 %v3656, 0.0
    %v3819 = vmax.f32 %v3670, 0.0
    %v3820 = vmax.f32 %v3684, 0.0
    %v3821 = vmax.f32 %v3698, 0.0
    %v3822 = vmax.f32 %v3712, 0.0
    %v3823 = vmax.f32 %v3726, 0.0
    %v3824 = vmax.f32 %v3740, 0.0
    %v3825 = vmax.f32 %v3754, 0.0
    %v3826 = vmax.f32 %v3768, 0.0
    %v3827 = vmax.f32 %v3782, 0.0
    %v3828 = vmax.f32 %v3796, 0.0
    %v3829 = vmax.f32 %v3810, 0.0
    %v3830 = vmax.f32 %v3602, 0.0
    %v3831 = vmax.f32 %v3616, 0.0
    %v3832 = vmax.f32 %v3630, 0.0
    %v3833 = vmax.f32 %v3644, 0.0
    %v3834 = vmax.f32 %v3658, 0.0
    %v3835 = vmax.f32 %v3672, 0.0
    %v3836 = vmax.f32 %v3686, 0.0
    %v3837 = vmax.f32 %v3700, 0.0
    %v3838 = vmax.f32 %v3714, 0.0
    %v3839 = vmax.f32 %v3728, 0.0
    %v3840 = vmax.f32 %v3742, 0.0
    %v3841 = vmax.f32 %v3756, 0.0
    %v3842 = vmax.f32 %v3770, 0.0
    %v3843 = vmax.f32 %v3784, 0.0
    %v3844 = vmax.f32 %v3798, 0.0
    %v3845 = vmax.f32 %v3812, 0.0
    %v3846 = vpack.c.bf16 %v3830, %v3814
    %v3847 = vpack.c.bf16 %v3831, %v3815
    %v3848 = vpack.c.bf16 %v3832, %v3816
    %v3849 = vpack.c.bf16 %v3833, %v3817
    %v3850 = vpack.c.bf16 %v3834, %v3818
    %v3851 = vpack.c.bf16 %v3835, %v3819
    %v3852 = vpack.c.bf16 %v3836, %v3820
    %v3853 = vpack.c.bf16 %v3837, %v3821
    %v3854 = vpack.c.bf16 %v3838, %v3822
    %v3855 = vpack.c.bf16 %v3839, %v3823
    %v3856 = vpack.c.bf16 %v3840, %v3824
    %v3857 = vpack.c.bf16 %v3841, %v3825
    %v3858 = vpack.c.bf16 %v3842, %v3826
    %v3859 = vpack.c.bf16 %v3843, %v3827
    %v3860 = vpack.c.bf16 %v3844, %v3828
    %v3861 = vpack.c.bf16 %v3845, %v3829
    %v3863 = vperm.slane %v3391, 0
    %v4121 = vunpack.c.l.b16 %v3135
    %v4122 = vunpack.c.l.b16 %v3136
    %v4123 = vunpack.c.l.b16 %v3137
    %v4124 = vunpack.c.l.b16 %v3138
    %v4125 = vunpack.c.l.b16 %v3139
    %v4126 = vunpack.c.l.b16 %v3140
    %v4127 = vunpack.c.l.b16 %v3141
    %v4128 = vunpack.c.l.b16 %v3142
    %v4129 = vunpack.c.l.b16 %v3143
    %v4130 = vunpack.c.l.b16 %v3144
    %v4131 = vunpack.c.l.b16 %v3145
    %v4132 = vunpack.c.l.b16 %v3146
    %v4133 = vunpack.c.l.b16 %v3147
    %v4134 = vunpack.c.l.b16 %v3148
    %v4135 = vunpack.c.l.b16 %v3149
    %v4136 = vunpack.c.l.b16 %v3150
    %v4137 = vunpack.c.l.b16 %v3151
    %v4138 = vunpack.c.l.b16 %v3152
    %v4139 = vunpack.c.l.b16 %v3153
    %v4140 = vunpack.c.l.b16 %v3154
    %v4141 = vunpack.c.l.b16 %v3155
    %v4142 = vunpack.c.l.b16 %v3156
    %v4143 = vunpack.c.l.b16 %v3157
    %v4144 = vunpack.c.l.b16 %v3158
    %v4145 = vunpack.c.l.b16 %v3159
    %v4146 = vunpack.c.l.b16 %v3160
    %v4147 = vunpack.c.l.b16 %v3161
    %v4148 = vunpack.c.l.b16 %v3162
    %v4149 = vunpack.c.l.b16 %v3163
    %v4150 = vunpack.c.l.b16 %v3164
    %v4151 = vunpack.c.l.b16 %v3165
    %v4152 = vunpack.c.l.b16 %v3166
    %v4153 = vunpack.c.l.b16 %v3167
    %v4154 = vunpack.c.l.b16 %v3168
    %v4155 = vunpack.c.l.b16 %v3169
    %v4156 = vunpack.c.l.b16 %v3170
    %v4157 = vunpack.c.l.b16 %v3171
    %v4158 = vunpack.c.l.b16 %v3172
    %v4159 = vunpack.c.l.b16 %v3173
    %v4160 = vunpack.c.l.b16 %v3174
    %v4161 = vunpack.c.l.b16 %v3175
    %v4162 = vunpack.c.l.b16 %v3176
    %v4163 = vunpack.c.l.b16 %v3177
    %v4164 = vunpack.c.l.b16 %v3178
    %v4165 = vunpack.c.l.b16 %v3179
    %v4166 = vunpack.c.l.b16 %v3180
    %v4167 = vunpack.c.l.b16 %v3181
    %v4168 = vunpack.c.l.b16 %v3182
    %v4169 = vunpack.c.l.b16 %v3183
    %v4170 = vunpack.c.l.b16 %v3184
    %v4171 = vunpack.c.l.b16 %v3185
    %v4172 = vunpack.c.l.b16 %v3186
    %v4173 = vunpack.c.l.b16 %v3187
    %v4174 = vunpack.c.l.b16 %v3188
    %v4175 = vunpack.c.l.b16 %v3189
    %v4176 = vunpack.c.l.b16 %v3190
    %v4177 = vunpack.c.l.b16 %v3191
    %v4178 = vunpack.c.l.b16 %v3192
    %v4179 = vunpack.c.l.b16 %v3193
    %v4180 = vunpack.c.l.b16 %v3194
    %v4181 = vunpack.c.l.b16 %v3195
    %v4182 = vunpack.c.l.b16 %v3196
    %v4183 = vunpack.c.l.b16 %v3197
    %v4184 = vunpack.c.l.b16 %v3198
    %v4185 = vunpack.c.l.b16 %v3199
    %v4186 = vunpack.c.l.b16 %v3200
    %v4187 = vunpack.c.l.b16 %v3201
    %v4188 = vunpack.c.l.b16 %v3202
    %v4189 = vunpack.c.l.b16 %v3203
    %v4190 = vunpack.c.l.b16 %v3204
    %v4191 = vunpack.c.l.b16 %v3205
    %v4192 = vunpack.c.l.b16 %v3206
    %v4193 = vunpack.c.l.b16 %v3207
    %v4194 = vunpack.c.l.b16 %v3208
    %v4195 = vunpack.c.l.b16 %v3209
    %v4196 = vunpack.c.l.b16 %v3210
    %v4197 = vunpack.c.l.b16 %v3211
    %v4198 = vunpack.c.l.b16 %v3212
    %v4199 = vunpack.c.l.b16 %v3213
    %v4200 = vunpack.c.l.b16 %v3214
    %v4201 = vunpack.c.l.b16 %v3215
    %v4202 = vunpack.c.l.b16 %v3216
    %v4203 = vunpack.c.l.b16 %v3217
    %v4204 = vunpack.c.l.b16 %v3218
    %v4205 = vunpack.c.l.b16 %v3219
    %v4206 = vunpack.c.l.b16 %v3220
    %v4207 = vunpack.c.l.b16 %v3221
    %v4208 = vunpack.c.l.b16 %v3222
    %v4209 = vunpack.c.l.b16 %v3223
    %v4210 = vunpack.c.l.b16 %v3224
    %v4211 = vunpack.c.l.b16 %v3225
    %v4212 = vunpack.c.l.b16 %v3226
    %v4213 = vunpack.c.l.b16 %v3227
    %v4214 = vunpack.c.l.b16 %v3228
    %v4215 = vunpack.c.l.b16 %v3229
    %v4216 = vunpack.c.l.b16 %v3230
    %v4217 = vunpack.c.l.b16 %v3231
    %v4218 = vunpack.c.l.b16 %v3232
    %v4219 = vunpack.c.l.b16 %v3233
    %v4220 = vunpack.c.l.b16 %v3234
    %v4221 = vunpack.c.l.b16 %v3235
    %v4222 = vunpack.c.l.b16 %v3236
    %v4223 = vunpack.c.l.b16 %v3237
    %v4224 = vunpack.c.l.b16 %v3238
    %v4225 = vunpack.c.l.b16 %v3239
    %v4226 = vunpack.c.l.b16 %v3240
    %v4227 = vunpack.c.l.b16 %v3241
    %v4228 = vunpack.c.l.b16 %v3242
    %v4229 = vunpack.c.l.b16 %v3243
    %v4230 = vunpack.c.l.b16 %v3244
    %v4231 = vunpack.c.l.b16 %v3245
    %v4232 = vunpack.c.l.b16 %v3246
    %v4233 = vunpack.c.l.b16 %v3247
    %v4234 = vunpack.c.l.b16 %v3248
    %v4235 = vunpack.c.l.b16 %v3249
    %v4236 = vunpack.c.l.b16 %v3250
    %v4237 = vunpack.c.l.b16 %v3251
    %v4238 = vunpack.c.l.b16 %v3252
    %v4239 = vunpack.c.l.b16 %v3253
    %v4240 = vunpack.c.l.b16 %v3254
    %v4241 = vunpack.c.l.b16 %v3255
    %v4242 = vunpack.c.l.b16 %v3256
    %v4243 = vunpack.c.l.b16 %v3257
    %v4244 = vunpack.c.l.b16 %v3258
    %v4245 = vunpack.c.l.b16 %v3259
    %v4246 = vunpack.c.l.b16 %v3260
    %v4247 = vunpack.c.l.b16 %v3261
    %v4248 = vunpack.c.l.b16 %v3262
    %v4249 = vunpack.c.l.b16 %v3263
    %v4250 = vunpack.c.l.b16 %v3264
    %v4251 = vunpack.c.l.b16 %v3265
    %v4252 = vunpack.c.l.b16 %v3266
    %v4253 = vunpack.c.l.b16 %v3267
    %v4254 = vunpack.c.l.b16 %v3268
    %v4255 = vunpack.c.l.b16 %v3269
    %v4256 = vunpack.c.l.b16 %v3270
    %v4257 = vunpack.c.l.b16 %v3271
    %v4258 = vunpack.c.l.b16 %v3272
    %v4259 = vunpack.c.l.b16 %v3273
    %v4260 = vunpack.c.l.b16 %v3274
    %v4261 = vunpack.c.l.b16 %v3275
    %v4262 = vunpack.c.l.b16 %v3276
    %v4263 = vunpack.c.l.b16 %v3277
    %v4264 = vunpack.c.l.b16 %v3278
    %v4265 = vunpack.c.l.b16 %v3279
    %v4266 = vunpack.c.l.b16 %v3280
    %v4267 = vunpack.c.l.b16 %v3281
    %v4268 = vunpack.c.l.b16 %v3282
    %v4269 = vunpack.c.l.b16 %v3283
    %v4270 = vunpack.c.l.b16 %v3284
    %v4271 = vunpack.c.l.b16 %v3285
    %v4272 = vunpack.c.l.b16 %v3286
    %v4273 = vunpack.c.l.b16 %v3287
    %v4274 = vunpack.c.l.b16 %v3288
    %v4275 = vunpack.c.l.b16 %v3289
    %v4276 = vunpack.c.l.b16 %v3290
    %v4277 = vunpack.c.l.b16 %v3291
    %v4278 = vunpack.c.l.b16 %v3292
    %v4279 = vunpack.c.l.b16 %v3293
    %v4280 = vunpack.c.l.b16 %v3294
    %v4281 = vunpack.c.l.b16 %v3295
    %v4282 = vunpack.c.l.b16 %v3296
    %v4283 = vunpack.c.l.b16 %v3297
    %v4284 = vunpack.c.l.b16 %v3298
    %v4285 = vunpack.c.l.b16 %v3299
    %v4286 = vunpack.c.l.b16 %v3300
    %v4287 = vunpack.c.l.b16 %v3301
    %v4288 = vunpack.c.l.b16 %v3302
    %v4289 = vunpack.c.l.b16 %v3303
    %v4290 = vunpack.c.l.b16 %v3304
    %v4291 = vunpack.c.l.b16 %v3305
    %v4292 = vunpack.c.l.b16 %v3306
    %v4293 = vunpack.c.l.b16 %v3307
    %v4294 = vunpack.c.l.b16 %v3308
    %v4295 = vunpack.c.l.b16 %v3309
    %v4296 = vunpack.c.l.b16 %v3310
    %v4297 = vunpack.c.l.b16 %v3311
    %v4298 = vunpack.c.l.b16 %v3312
    %v4299 = vunpack.c.l.b16 %v3313
    %v4300 = vunpack.c.l.b16 %v3314
    %v4301 = vunpack.c.l.b16 %v3315
    %v4302 = vunpack.c.l.b16 %v3316
    %v4303 = vunpack.c.l.b16 %v3317
    %v4304 = vunpack.c.l.b16 %v3318
    %v4305 = vunpack.c.l.b16 %v3319
    %v4306 = vunpack.c.l.b16 %v3320
    %v4307 = vunpack.c.l.b16 %v3321
    %v4308 = vunpack.c.l.b16 %v3322
    %v4309 = vunpack.c.l.b16 %v3323
    %v4310 = vunpack.c.l.b16 %v3324
    %v4311 = vunpack.c.l.b16 %v3325
    %v4312 = vunpack.c.l.b16 %v3326
    %v4313 = vunpack.c.l.b16 %v3327
    %v4314 = vunpack.c.l.b16 %v3328
    %v4315 = vunpack.c.l.b16 %v3329
    %v4316 = vunpack.c.l.b16 %v3330
    %v4317 = vunpack.c.l.b16 %v3331
    %v4318 = vunpack.c.l.b16 %v3332
    %v4319 = vunpack.c.l.b16 %v3333
    %v4320 = vunpack.c.l.b16 %v3334
    %v4321 = vunpack.c.l.b16 %v3335
    %v4322 = vunpack.c.l.b16 %v3336
    %v4323 = vunpack.c.l.b16 %v3337
    %v4324 = vunpack.c.l.b16 %v3338
    %v4325 = vunpack.c.l.b16 %v3339
    %v4326 = vunpack.c.l.b16 %v3340
    %v4327 = vunpack.c.l.b16 %v3341
    %v4328 = vunpack.c.l.b16 %v3342
    %v4329 = vunpack.c.l.b16 %v3343
    %v4330 = vunpack.c.l.b16 %v3344
    %v4331 = vunpack.c.l.b16 %v3345
    %v4332 = vunpack.c.l.b16 %v3346
    %v4333 = vunpack.c.l.b16 %v3347
    %v4334 = vunpack.c.l.b16 %v3348
    %v4335 = vunpack.c.l.b16 %v3349
    %v4336 = vunpack.c.l.b16 %v3350
    %v4337 = vunpack.c.l.b16 %v3351
    %v4338 = vunpack.c.l.b16 %v3352
    %v4339 = vunpack.c.l.b16 %v3353
    %v4340 = vunpack.c.l.b16 %v3354
    %v4341 = vunpack.c.l.b16 %v3355
    %v4342 = vunpack.c.l.b16 %v3356
    %v4343 = vunpack.c.l.b16 %v3357
    %v4344 = vunpack.c.l.b16 %v3358
    %v4345 = vunpack.c.l.b16 %v3359
    %v4346 = vunpack.c.l.b16 %v3360
    %v4347 = vunpack.c.l.b16 %v3361
    %v4348 = vunpack.c.l.b16 %v3362
    %v4349 = vunpack.c.l.b16 %v3363
    %v4350 = vunpack.c.l.b16 %v3364
    %v4351 = vunpack.c.l.b16 %v3365
    %v4352 = vunpack.c.l.b16 %v3366
    %v4353 = vunpack.c.l.b16 %v3367
    %v4354 = vunpack.c.l.b16 %v3368
    %v4355 = vunpack.c.l.b16 %v3369
    %v4356 = vunpack.c.l.b16 %v3370
    %v4357 = vunpack.c.l.b16 %v3371
    %v4358 = vunpack.c.l.b16 %v3372
    %v4359 = vunpack.c.l.b16 %v3373
    %v4360 = vunpack.c.l.b16 %v3374
    %v4361 = vunpack.c.l.b16 %v3375
    %v4362 = vunpack.c.l.b16 %v3376
    %v4363 = vunpack.c.l.b16 %v3377
    %v4364 = vunpack.c.l.b16 %v3378
    %v4365 = vunpack.c.l.b16 %v3379
    %v4366 = vunpack.c.l.b16 %v3380
    %v4367 = vunpack.c.l.b16 %v3381
    %v4368 = vunpack.c.l.b16 %v3382
    %v4369 = vunpack.c.l.b16 %v3383
    %v4370 = vunpack.c.l.b16 %v3384
    %v4371 = vunpack.c.l.b16 %v3385
    %v4372 = vunpack.c.l.b16 %v3386
    %v4373 = vunpack.c.l.b16 %v3387
    %v4374 = vunpack.c.l.b16 %v3388
    %v4375 = vunpack.c.l.b16 %v3389
    %v4376 = vunpack.c.l.b16 %v3390
    %v4377 = vpack.c.b16 %v4122, %v4121
    %v4378 = vpack.c.b16 %v4124, %v4123
    %v4379 = vpack.c.b16 %v4126, %v4125
    %v4380 = vpack.c.b16 %v4128, %v4127
    %v4381 = vpack.c.b16 %v4130, %v4129
    %v4382 = vpack.c.b16 %v4132, %v4131
    %v4383 = vpack.c.b16 %v4134, %v4133
    %v4384 = vpack.c.b16 %v4136, %v4135
    %v4385 = vpack.c.b16 %v4138, %v4137
    %v4386 = vpack.c.b16 %v4140, %v4139
    %v4387 = vpack.c.b16 %v4142, %v4141
    %v4388 = vpack.c.b16 %v4144, %v4143
    %v4389 = vpack.c.b16 %v4146, %v4145
    %v4390 = vpack.c.b16 %v4148, %v4147
    %v4391 = vpack.c.b16 %v4150, %v4149
    %v4392 = vpack.c.b16 %v4152, %v4151
    %v4393 = vpack.c.b16 %v4154, %v4153
    %v4394 = vpack.c.b16 %v4156, %v4155
    %v4395 = vpack.c.b16 %v4158, %v4157
    %v4396 = vpack.c.b16 %v4160, %v4159
    %v4397 = vpack.c.b16 %v4162, %v4161
    %v4398 = vpack.c.b16 %v4164, %v4163
    %v4399 = vpack.c.b16 %v4166, %v4165
    %v4400 = vpack.c.b16 %v4168, %v4167
    %v4401 = vpack.c.b16 %v4170, %v4169
    %v4402 = vpack.c.b16 %v4172, %v4171
    %v4403 = vpack.c.b16 %v4174, %v4173
    %v4404 = vpack.c.b16 %v4176, %v4175
    %v4405 = vpack.c.b16 %v4178, %v4177
    %v4406 = vpack.c.b16 %v4180, %v4179
    %v4407 = vpack.c.b16 %v4182, %v4181
    %v4408 = vpack.c.b16 %v4184, %v4183
    %v4409 = vpack.c.b16 %v4186, %v4185
    %v4410 = vpack.c.b16 %v4188, %v4187
    %v4411 = vpack.c.b16 %v4190, %v4189
    %v4412 = vpack.c.b16 %v4192, %v4191
    %v4413 = vpack.c.b16 %v4194, %v4193
    %v4414 = vpack.c.b16 %v4196, %v4195
    %v4415 = vpack.c.b16 %v4198, %v4197
    %v4416 = vpack.c.b16 %v4200, %v4199
    %v4417 = vpack.c.b16 %v4202, %v4201
    %v4418 = vpack.c.b16 %v4204, %v4203
    %v4419 = vpack.c.b16 %v4206, %v4205
    %v4420 = vpack.c.b16 %v4208, %v4207
    %v4421 = vpack.c.b16 %v4210, %v4209
    %v4422 = vpack.c.b16 %v4212, %v4211
    %v4423 = vpack.c.b16 %v4214, %v4213
    %v4424 = vpack.c.b16 %v4216, %v4215
    %v4425 = vpack.c.b16 %v4218, %v4217
    %v4426 = vpack.c.b16 %v4220, %v4219
    %v4427 = vpack.c.b16 %v4222, %v4221
    %v4428 = vpack.c.b16 %v4224, %v4223
    %v4429 = vpack.c.b16 %v4226, %v4225
    %v4430 = vpack.c.b16 %v4228, %v4227
    %v4431 = vpack.c.b16 %v4230, %v4229
    %v4432 = vpack.c.b16 %v4232, %v4231
    %v4433 = vpack.c.b16 %v4234, %v4233
    %v4434 = vpack.c.b16 %v4236, %v4235
    %v4435 = vpack.c.b16 %v4238, %v4237
    %v4436 = vpack.c.b16 %v4240, %v4239
    %v4437 = vpack.c.b16 %v4242, %v4241
    %v4438 = vpack.c.b16 %v4244, %v4243
    %v4439 = vpack.c.b16 %v4246, %v4245
    %v4440 = vpack.c.b16 %v4248, %v4247
    %v4441 = vpack.c.b16 %v4250, %v4249
    %v4442 = vpack.c.b16 %v4252, %v4251
    %v4443 = vpack.c.b16 %v4254, %v4253
    %v4444 = vpack.c.b16 %v4256, %v4255
    %v4445 = vpack.c.b16 %v4258, %v4257
    %v4446 = vpack.c.b16 %v4260, %v4259
    %v4447 = vpack.c.b16 %v4262, %v4261
    %v4448 = vpack.c.b16 %v4264, %v4263
    %v4449 = vpack.c.b16 %v4266, %v4265
    %v4450 = vpack.c.b16 %v4268, %v4267
    %v4451 = vpack.c.b16 %v4270, %v4269
    %v4452 = vpack.c.b16 %v4272, %v4271
    %v4453 = vpack.c.b16 %v4274, %v4273
    %v4454 = vpack.c.b16 %v4276, %v4275
    %v4455 = vpack.c.b16 %v4278, %v4277
    %v4456 = vpack.c.b16 %v4280, %v4279
    %v4457 = vpack.c.b16 %v4282, %v4281
    %v4458 = vpack.c.b16 %v4284, %v4283
    %v4459 = vpack.c.b16 %v4286, %v4285
    %v4460 = vpack.c.b16 %v4288, %v4287
    %v4461 = vpack.c.b16 %v4290, %v4289
    %v4462 = vpack.c.b16 %v4292, %v4291
    %v4463 = vpack.c.b16 %v4294, %v4293
    %v4464 = vpack.c.b16 %v4296, %v4295
    %v4465 = vpack.c.b16 %v4298, %v4297
    %v4466 = vpack.c.b16 %v4300, %v4299
    %v4467 = vpack.c.b16 %v4302, %v4301
    %v4468 = vpack.c.b16 %v4304, %v4303
    %v4469 = vpack.c.b16 %v4306, %v4305
    %v4470 = vpack.c.b16 %v4308, %v4307
    %v4471 = vpack.c.b16 %v4310, %v4309
    %v4472 = vpack.c.b16 %v4312, %v4311
    %v4473 = vpack.c.b16 %v4314, %v4313
    %v4474 = vpack.c.b16 %v4316, %v4315
    %v4475 = vpack.c.b16 %v4318, %v4317
    %v4476 = vpack.c.b16 %v4320, %v4319
    %v4477 = vpack.c.b16 %v4322, %v4321
    %v4478 = vpack.c.b16 %v4324, %v4323
    %v4479 = vpack.c.b16 %v4326, %v4325
    %v4480 = vpack.c.b16 %v4328, %v4327
    %v4481 = vpack.c.b16 %v4330, %v4329
    %v4482 = vpack.c.b16 %v4332, %v4331
    %v4483 = vpack.c.b16 %v4334, %v4333
    %v4484 = vpack.c.b16 %v4336, %v4335
    %v4485 = vpack.c.b16 %v4338, %v4337
    %v4486 = vpack.c.b16 %v4340, %v4339
    %v4487 = vpack.c.b16 %v4342, %v4341
    %v4488 = vpack.c.b16 %v4344, %v4343
    %v4489 = vpack.c.b16 %v4346, %v4345
    %v4490 = vpack.c.b16 %v4348, %v4347
    %v4491 = vpack.c.b16 %v4350, %v4349
    %v4492 = vpack.c.b16 %v4352, %v4351
    %v4493 = vpack.c.b16 %v4354, %v4353
    %v4494 = vpack.c.b16 %v4356, %v4355
    %v4495 = vpack.c.b16 %v4358, %v4357
    %v4496 = vpack.c.b16 %v4360, %v4359
    %v4497 = vpack.c.b16 %v4362, %v4361
    %v4498 = vpack.c.b16 %v4364, %v4363
    %v4499 = vpack.c.b16 %v4366, %v4365
    %v4500 = vpack.c.b16 %v4368, %v4367
    %v4501 = vpack.c.b16 %v4370, %v4369
    %v4502 = vpack.c.b16 %v4372, %v4371
    %v4503 = vpack.c.b16 %v4374, %v4373
    %v4504 = vpack.c.b16 %v4376, %v4375
    %4633 = vmatpush.bf16.msra.mxu0 %v4384
    %4634 = vmatpush.bf16.msra.mxu0 %v4383
    %4635 = vmatpush.bf16.msra.mxu0 %v4382
    %4636 = vmatpush.bf16.msra.mxu0 %v4381
    %4637 = vmatpush.bf16.msra.mxu0 %v4380
    %4638 = vmatpush.bf16.msra.mxu0 %v4379
    %4639 = vmatpush.bf16.msra.mxu0 %v4378
    %4640 = vmatpush.bf16.msra.mxu0 %v4377
    %4641 = vmatmul.bf16.gmra.mxu0 %v3846
    %v4642 = vpop.f32.mrf.mxu0
    %v4643 = vadd.f32 %v3863, %v4642
    %v4644 = vpop.f32.mrf.mxu0
    %v4645 = vadd.f32 %v3863, %v4644
    %4646 = vdwg.mxu0
    %4647 = vmatpush.bf16.msra.mxu0 %v4392
    %4648 = vmatpush.bf16.msra.mxu0 %v4391
    %4649 = vmatpush.bf16.msra.mxu0 %v4390
    %4650 = vmatpush.bf16.msra.mxu0 %v4389
    %4651 = vmatpush.bf16.msra.mxu0 %v4388
    %4652 = vmatpush.bf16.msra.mxu0 %v4387
    %4653 = vmatpush.bf16.msra.mxu0 %v4386
    %4654 = vmatpush.bf16.msra.mxu0 %v4385
    %4655 = vmatmul.bf16.gmra.mxu0 %v3847
    %v4656 = vpop.f32.mrf.mxu0
    %v4657 = vadd.f32 %v4643, %v4656
    %v4658 = vpop.f32.mrf.mxu0
    %v4659 = vadd.f32 %v4645, %v4658
    %4660 = vdwg.mxu0
    %4661 = vmatpush.bf16.msra.mxu0 %v4400
    %4662 = vmatpush.bf16.msra.mxu0 %v4399
    %4663 = vmatpush.bf16.msra.mxu0 %v4398
    %4664 = vmatpush.bf16.msra.mxu0 %v4397
    %4665 = vmatpush.bf16.msra.mxu0 %v4396
    %4666 = vmatpush.bf16.msra.mxu0 %v4395
    %4667 = vmatpush.bf16.msra.mxu0 %v4394
    %4668 = vmatpush.bf16.msra.mxu0 %v4393
    %4669 = vmatmul.bf16.gmra.mxu0 %v3848
    %v4670 = vpop.f32.mrf.mxu0
    %v4671 = vadd.f32 %v4657, %v4670
    %v4672 = vpop.f32.mrf.mxu0
    %v4673 = vadd.f32 %v4659, %v4672
    %4674 = vdwg.mxu0
    %4675 = vmatpush.bf16.msra.mxu0 %v4408
    %4676 = vmatpush.bf16.msra.mxu0 %v4407
    %4677 = vmatpush.bf16.msra.mxu0 %v4406
    %4678 = vmatpush.bf16.msra.mxu0 %v4405
    %4679 = vmatpush.bf16.msra.mxu0 %v4404
    %4680 = vmatpush.bf16.msra.mxu0 %v4403
    %4681 = vmatpush.bf16.msra.mxu0 %v4402
    %4682 = vmatpush.bf16.msra.mxu0 %v4401
    %4683 = vmatmul.bf16.gmra.mxu0 %v3849
    %v4684 = vpop.f32.mrf.mxu0
    %v4685 = vadd.f32 %v4671, %v4684
    %v4686 = vpop.f32.mrf.mxu0
    %v4687 = vadd.f32 %v4673, %v4686
    %4688 = vdwg.mxu0
    %4689 = vmatpush.bf16.msra.mxu0 %v4416
    %4690 = vmatpush.bf16.msra.mxu0 %v4415
    %4691 = vmatpush.bf16.msra.mxu0 %v4414
    %4692 = vmatpush.bf16.msra.mxu0 %v4413
    %4693 = vmatpush.bf16.msra.mxu0 %v4412
    %4694 = vmatpush.bf16.msra.mxu0 %v4411
    %4695 = vmatpush.bf16.msra.mxu0 %v4410
    %4696 = vmatpush.bf16.msra.mxu0 %v4409
    %4697 = vmatmul.bf16.gmra.mxu0 %v3850
    %v4698 = vpop.f32.mrf.mxu0
    %v4699 = vadd.f32 %v4685, %v4698
    %v4700 = vpop.f32.mrf.mxu0
    %v4701 = vadd.f32 %v4687, %v4700
    %4702 = vdwg.mxu0
    %4703 = vmatpush.bf16.msra.mxu0 %v4424
    %4704 = vmatpush.bf16.msra.mxu0 %v4423
    %4705 = vmatpush.bf16.msra.mxu0 %v4422
    %4706 = vmatpush.bf16.msra.mxu0 %v4421
    %4707 = vmatpush.bf16.msra.mxu0 %v4420
    %4708 = vmatpush.bf16.msra.mxu0 %v4419
    %4709 = vmatpush.bf16.msra.mxu0 %v4418
    %4710 = vmatpush.bf16.msra.mxu0 %v4417
    %4711 = vmatmul.bf16.gmra.mxu0 %v3851
    %v4712 = vpop.f32.mrf.mxu0
    %v4713 = vadd.f32 %v4699, %v4712
    %v4714 = vpop.f32.mrf.mxu0
    %v4715 = vadd.f32 %v4701, %v4714
    %4716 = vdwg.mxu0
    %4717 = vmatpush.bf16.msra.mxu0 %v4432
    %4718 = vmatpush.bf16.msra.mxu0 %v4431
    %4719 = vmatpush.bf16.msra.mxu0 %v4430
    %4720 = vmatpush.bf16.msra.mxu0 %v4429
    %4721 = vmatpush.bf16.msra.mxu0 %v4428
    %4722 = vmatpush.bf16.msra.mxu0 %v4427
    %4723 = vmatpush.bf16.msra.mxu0 %v4426
    %4724 = vmatpush.bf16.msra.mxu0 %v4425
    %4725 = vmatmul.bf16.gmra.mxu0 %v3852
    %v4726 = vpop.f32.mrf.mxu0
    %v4727 = vadd.f32 %v4713, %v4726
    %v4728 = vpop.f32.mrf.mxu0
    %v4729 = vadd.f32 %v4715, %v4728
    %4730 = vdwg.mxu0
    %4731 = vmatpush.bf16.msra.mxu0 %v4440
    %4732 = vmatpush.bf16.msra.mxu0 %v4439
    %4733 = vmatpush.bf16.msra.mxu0 %v4438
    %4734 = vmatpush.bf16.msra.mxu0 %v4437
    %4735 = vmatpush.bf16.msra.mxu0 %v4436
    %4736 = vmatpush.bf16.msra.mxu0 %v4435
    %4737 = vmatpush.bf16.msra.mxu0 %v4434
    %4738 = vmatpush.bf16.msra.mxu0 %v4433
    %4739 = vmatmul.bf16.gmra.mxu0 %v3853
    %v4740 = vpop.f32.mrf.mxu0
    %v4741 = vadd.f32 %v4727, %v4740
    %v4742 = vpop.f32.mrf.mxu0
    %v4743 = vadd.f32 %v4729, %v4742
    %4744 = vdwg.mxu0
    %4745 = vmatpush.bf16.msra.mxu0 %v4448
    %4746 = vmatpush.bf16.msra.mxu0 %v4447
    %4747 = vmatpush.bf16.msra.mxu0 %v4446
    %4748 = vmatpush.bf16.msra.mxu0 %v4445
    %4749 = vmatpush.bf16.msra.mxu0 %v4444
    %4750 = vmatpush.bf16.msra.mxu0 %v4443
    %4751 = vmatpush.bf16.msra.mxu0 %v4442
    %4752 = vmatpush.bf16.msra.mxu0 %v4441
    %4753 = vmatmul.bf16.gmra.mxu0 %v3854
    %v4754 = vpop.f32.mrf.mxu0
    %v4755 = vadd.f32 %v4741, %v4754
    %v4756 = vpop.f32.mrf.mxu0
    %v4757 = vadd.f32 %v4743, %v4756
    %4758 = vdwg.mxu0
    %4759 = vmatpush.bf16.msra.mxu0 %v4456
    %4760 = vmatpush.bf16.msra.mxu0 %v4455
    %4761 = vmatpush.bf16.msra.mxu0 %v4454
    %4762 = vmatpush.bf16.msra.mxu0 %v4453
    %4763 = vmatpush.bf16.msra.mxu0 %v4452
    %4764 = vmatpush.bf16.msra.mxu0 %v4451
    %4765 = vmatpush.bf16.msra.mxu0 %v4450
    %4766 = vmatpush.bf16.msra.mxu0 %v4449
    %4767 = vmatmul.bf16.gmra.mxu0 %v3855
    %v4768 = vpop.f32.mrf.mxu0
    %v4769 = vadd.f32 %v4755, %v4768
    %v4770 = vpop.f32.mrf.mxu0
    %v4771 = vadd.f32 %v4757, %v4770
    %4772 = vdwg.mxu0
    %4773 = vmatpush.bf16.msra.mxu0 %v4464
    %4774 = vmatpush.bf16.msra.mxu0 %v4463
    %4775 = vmatpush.bf16.msra.mxu0 %v4462
    %4776 = vmatpush.bf16.msra.mxu0 %v4461
    %4777 = vmatpush.bf16.msra.mxu0 %v4460
    %4778 = vmatpush.bf16.msra.mxu0 %v4459
    %4779 = vmatpush.bf16.msra.mxu0 %v4458
    %4780 = vmatpush.bf16.msra.mxu0 %v4457
    %4781 = vmatmul.bf16.gmra.mxu0 %v3856
    %v4782 = vpop.f32.mrf.mxu0
    %v4783 = vadd.f32 %v4769, %v4782
    %v4784 = vpop.f32.mrf.mxu0
    %v4785 = vadd.f32 %v4771, %v4784
    %4786 = vdwg.mxu0
    %4787 = vmatpush.bf16.msra.mxu0 %v4472
    %4788 = vmatpush.bf16.msra.mxu0 %v4471
    %4789 = vmatpush.bf16.msra.mxu0 %v4470
    %4790 = vmatpush.bf16.msra.mxu0 %v4469
    %4791 = vmatpush.bf16.msra.mxu0 %v4468
    %4792 = vmatpush.bf16.msra.mxu0 %v4467
    %4793 = vmatpush.bf16.msra.mxu0 %v4466
    %4794 = vmatpush.bf16.msra.mxu0 %v4465
    %4795 = vmatmul.bf16.gmra.mxu0 %v3857
    %v4796 = vpop.f32.mrf.mxu0
    %v4797 = vadd.f32 %v4783, %v4796
    %v4798 = vpop.f32.mrf.mxu0
    %v4799 = vadd.f32 %v4785, %v4798
    %4800 = vdwg.mxu0
    %4801 = vmatpush.bf16.msra.mxu0 %v4480
    %4802 = vmatpush.bf16.msra.mxu0 %v4479
    %4803 = vmatpush.bf16.msra.mxu0 %v4478
    %4804 = vmatpush.bf16.msra.mxu0 %v4477
    %4805 = vmatpush.bf16.msra.mxu0 %v4476
    %4806 = vmatpush.bf16.msra.mxu0 %v4475
    %4807 = vmatpush.bf16.msra.mxu0 %v4474
    %4808 = vmatpush.bf16.msra.mxu0 %v4473
    %4809 = vmatmul.bf16.gmra.mxu0 %v3858
    %v4810 = vpop.f32.mrf.mxu0
    %v4811 = vadd.f32 %v4797, %v4810
    %v4812 = vpop.f32.mrf.mxu0
    %v4813 = vadd.f32 %v4799, %v4812
    %4814 = vdwg.mxu0
    %4815 = vmatpush.bf16.msra.mxu0 %v4488
    %4816 = vmatpush.bf16.msra.mxu0 %v4487
    %4817 = vmatpush.bf16.msra.mxu0 %v4486
    %4818 = vmatpush.bf16.msra.mxu0 %v4485
    %4819 = vmatpush.bf16.msra.mxu0 %v4484
    %4820 = vmatpush.bf16.msra.mxu0 %v4483
    %4821 = vmatpush.bf16.msra.mxu0 %v4482
    %4822 = vmatpush.bf16.msra.mxu0 %v4481
    %4823 = vmatmul.bf16.gmra.mxu0 %v3859
    %v4824 = vpop.f32.mrf.mxu0
    %v4825 = vadd.f32 %v4811, %v4824
    %v4826 = vpop.f32.mrf.mxu0
    %v4827 = vadd.f32 %v4813, %v4826
    %4828 = vdwg.mxu0
    %4829 = vmatpush.bf16.msra.mxu0 %v4496
    %4830 = vmatpush.bf16.msra.mxu0 %v4495
    %4831 = vmatpush.bf16.msra.mxu0 %v4494
    %4832 = vmatpush.bf16.msra.mxu0 %v4493
    %4833 = vmatpush.bf16.msra.mxu0 %v4492
    %4834 = vmatpush.bf16.msra.mxu0 %v4491
    %4835 = vmatpush.bf16.msra.mxu0 %v4490
    %4836 = vmatpush.bf16.msra.mxu0 %v4489
    %4837 = vmatmul.bf16.gmra.mxu0 %v3860
    %v4838 = vpop.f32.mrf.mxu0
    %v4839 = vadd.f32 %v4825, %v4838
    %v4840 = vpop.f32.mrf.mxu0
    %v4841 = vadd.f32 %v4827, %v4840
    %4842 = vdwg.mxu0
    %4843 = vmatpush.bf16.msra.mxu0 %v4504
    %4844 = vmatpush.bf16.msra.mxu0 %v4503
    %4845 = vmatpush.bf16.msra.mxu0 %v4502
    %4846 = vmatpush.bf16.msra.mxu0 %v4501
    %4847 = vmatpush.bf16.msra.mxu0 %v4500
    %4848 = vmatpush.bf16.msra.mxu0 %v4499
    %4849 = vmatpush.bf16.msra.mxu0 %v4498
    %4850 = vmatpush.bf16.msra.mxu0 %v4497
    %4851 = vmatmul.bf16.gmra.mxu0 %v3861
    %v4852 = vpop.f32.mrf.mxu0
    %v4853 = vadd.f32 %v4839, %v4852
    %v4854 = vpop.f32.mrf.mxu0
    %v4855 = vadd.f32 %v4841, %v4854
    %4856 = vdwg.mxu0
    %v4857 = vadd.f32 %v3099, %v4853
    %v4858 = vadd.f32 %v3100, %v4855
    %v4859 = vld [vmem:[%s71] sm:$0x1]
    %v4860 = vld [vmem:[%s73] sm:$0x1]
    %v4861 = vsel %vm204, %v4857, 0.0
    %4862 = vadd.xlane.f32.xlu0 %v4861
    %v4863 = vpop.xlane.xlu0 %4862
    %v4864 = vsel %vm204, %v4858, 0.0
    %4865 = vadd.xlane.f32.xlu0 %v4864
    %v4866 = vpop.xlane.xlu0 %4865
    %v4867 = vmul.f32 %v4863, %v490
    %v4868 = vmul.f32 %v4866, %v490
    %v4869 = vsub.f32 %v4857, %v4867
    %v4870 = vsub.f32 %v4858, %v4868
    %v4871 = vmul.f32 %v4869, %v4869
    %v4872 = vmul.f32 %v4870, %v4870
    %v4873 = vsel %vm204, %v4871, 0.0
    %4874 = vadd.xlane.f32.xlu0 %v4873
    %v4875 = vpop.xlane.xlu0 %4874
    %v4876 = vsel %vm204, %v4872, 0.0
    %4877 = vadd.xlane.f32.xlu0 %v4876
    %v4878 = vpop.xlane.xlu0 %4877
    %v4879 = vmul.f32 %v4875, %v490
    %v4880 = vmul.f32 %v4878, %v490
    %v4881 = vadd.f32 %v4879, 1e-05
    %v4882 = vadd.f32 %v4880, 1e-05
    %v4883 = vrsqrt.pop %v4881
    %v4884 = vmul.f32 %v4883, %v4881
    %v4885 = vmul.f32 %v4884, %v4883
    %v4886 = vmul.f32 0.5, %v4885
    %v4887 = vsub.f32 1.5, %v4886
    %v4888 = vmul.f32 %v4883, %v4887
    %vm4889 = vweird.f32 %v4881
    %vm4890 = vweird.f32 %v4883
    %vm4891 = vmor %vm4889, %vm4890
    %v4892 = vsel %vm4891, %v4883, %v4888
    %v4893 = vrsqrt.pop %v4882
    %v4894 = vmul.f32 %v4893, %v4882
    %v4895 = vmul.f32 %v4894, %v4893
    %v4896 = vmul.f32 0.5, %v4895
    %v4897 = vsub.f32 1.5, %v4896
    %v4898 = vmul.f32 %v4893, %v4897
    %vm4899 = vweird.f32 %v4882
    %vm4900 = vweird.f32 %v4893
    %vm4901 = vmor %vm4899, %vm4900
    %v4902 = vsel %vm4901, %v4893, %v4898
    %v4903 = vmul.f32 %v4869, %v4892
    %v4904 = vmul.f32 %v4870, %v4902
    %v4906 = vperm.slane %v4859, 0
    %v4908 = vmul.f32 %v4903, %v4906
    %v4909 = vmul.f32 %v4904, %v4906
    %v4911 = vperm.slane %v4860, 0
    %v4913 = vadd.f32 %v4908, %v4911
    %v4914 = vadd.f32 %v4909, %v4911
    %v4915 = vpack.c.bf16 %v4914, %v4913
    %v4916 = vld [vmem:[%s75] sm:$0xf]
    %v4917 = vld [vmem:[%s75 + $0x4] sm:$0xf]
    %v4918 = vld [vmem:[%s75 + $0x8] sm:$0xf]
    %v4919 = vld [vmem:[%s75 + $0xc] sm:$0xf]
    %v4920 = vld [vmem:[%s77] sm:$0x1]
    %v4922 = vperm.slane %v4920, 0
    %v4928 = vunpack.c.l.b16 %v4916
    %v4929 = vunpack.c.l.b16 %v4917
    %v4930 = vunpack.c.l.b16 %v4918
    %v4931 = vunpack.c.l.b16 %v4919
    %v4932 = vpack.c.b16 %v4929, %v4928
    %v4933 = vpack.c.b16 %v4931, %v4930
    %v4937 = vsel %vm204, %v4915, 0
    %4939 = vmatpush.bf16.msra.mxu0 0
    %4940 = vmatpush.bf16.msra.mxu0 0
    %4941 = vmatpush.bf16.msra.mxu0 0
    %4942 = vmatpush.bf16.msra.mxu0 0
    %4943 = vmatpush.bf16.msra.mxu0 0
    %4944 = vmatpush.bf16.msra.mxu0 0
    %4945 = vmatpush.bf16.msra.mxu0 %v4933
    %4946 = vmatpush.bf16.msra.mxu0 %v4932
    %4947 = vmatmul.bf16.gmra.mxu0 %v4937
    %v4948 = vpop.f32.mrf.mxu0
    %v4949 = vadd.f32 %v4922, %v4948
    %v4950 = vpop.f32.mrf.mxu0
    %v4951 = vadd.f32 %v4922, %v4950
    %4952 = vdwg.mxu0
    %4953 = vst [vmem:[#allocation2] sm:$0xff] %v4949
    %4954 = vst [vmem:[#allocation2 + $0x8] sm:$0xff] %v4951
    %4955 = vmax.xlane.f32.xlu0 %v4949
    %v4956 = vpop.xlane.xlu0 %4955
    %4957 = vmax.xlane.f32.xlu0 %v4951
    %v4958 = vpop.xlane.xlu0 %4957
    %v4959 = vsub.f32 %v4949, %v4956
    %v4960 = vsub.f32 %v4951, %v4958
    %v4961 = vmul.f32 %v4959, 1.442695
    %v4962 = vpow.pop %v4961
    %v4963 = vmul.f32 %v4960, 1.442695
    %v4964 = vpow.pop %v4963
    %4965 = vadd.xlane.f32.xlu0 %v4962
    %v4966 = vpop.xlane.xlu0 %4965
    %4967 = vadd.xlane.f32.xlu0 %v4964
    %v4968 = vpop.xlane.xlu0 %4967
    %v4969 = vlog2.pop %v4966
    %v4970 = vmul.f32 %v4969, 0.6931472
    %v4971 = vlog2.pop %v4968
    %v4972 = vmul.f32 %v4971, 0.6931472
    %v4973 = vadd.f32 %v4970, %v4956
    %v4974 = vadd.f32 %v4972, %v4958
    %v4975 = vld [vmem:[%s79] sm:$0xff]
    %v4976 = vld [vmem:[%s79 + $0x8] sm:$0xff]
    %v4977 = vlaneseq
    %v4978 = vand.u32 %v4977, 127
    %4979 = vset.pattern.permute.xlu0 0
    %4980 = vperm.xlu0 %4979, %v4975
    %v4981 = vpop.permute.xlu0 %4980
    %4982 = vset.pattern.permute.xlu0 0
    %4983 = vperm.xlu0 %4982, %v4976
    %v4984 = vpop.permute.xlu0 %4983
    %vm4985 = vcmp.eq.s32.totalorder %v4978, %v4981
    %vm4986 = vcmp.eq.s32.totalorder %v4978, %v4984
    %v4987 = vsel %vm4985, %v4949, 0.0
    %v4988 = vsel %vm4986, %v4951, 0.0
    %4989 = vadd.xlane.f32.xlu0 %v4987
    %v4990 = vpop.xlane.xlu0 %4989
    %4991 = vadd.xlane.f32.xlu0 %v4988
    %v4992 = vpop.xlane.xlu0 %4991
    %v4993 = vsub.f32 %v4973, %v4990
    %v4994 = vsub.f32 %v4974, %v4992
    %vm4995 = vcmp.ne.s32.totalorder %v4975, 0
    %vm4996 = vcmp.ne.s32.totalorder %v4976, 0
    %v4997 = vsel %vm4995, 1, 0
    %v4998 = vsel %vm4996, 1, 0
    %v4999 = vcvt.s32.f32 %v4997
    %v5000 = vcvt.s32.f32 %v4998
    %v5001 = vmul.f32 %v4993, %v4999
    %v5002 = vmul.f32 %v4994, %v5000
    %v5003 = vlaneseq
    %v5004 = vshrl.u32 %v5003, 7
    %v5005 = vmul.u32 %v5004, 8
    %vm5006 = vcmp.ge.s32.totalorder %v4978, %v5005
    %v5007 = vadd.s32 %v5004, 1
    %v5008 = vmul.u32 %v5007, 8
    %vm5009 = vcmp.lt.s32.totalorder %v4978, %v5008
    %vm5010 = vmand %vm5006, %vm5009
    %v5011 = vsel %vm5010, 1, 0
    %v5012 = vcvt.s32.f32 %v5011
    %v5014 = vsel %vm228, %v5012, 0
    %5016 = vmatpush.msra.mxu0 0.0
    %5017 = vmatpush.msra.mxu0 0.0
    %5018 = vmatpush.msra.mxu0 0.0
    %5019 = vmatpush.msra.mxu0 0.0
    %5020 = vmatpush.msra.mxu0 0.0
    %5021 = vmatpush.msra.mxu0 0.0
    %5022 = vmatpush.msra.mxu0 0.0
    %5023 = vmatpush.msra.mxu0 0.0
    %5024 = vmatpush.msra.mxu0 0.0
    %5025 = vmatpush.msra.mxu0 0.0
    %5026 = vmatpush.msra.mxu0 0.0
    %5027 = vmatpush.msra.mxu0 0.0
    %5028 = vmatpush.msra.mxu0 0.0
    %5029 = vmatpush.msra.mxu0 0.0
    %5030 = vmatpush.msra.mxu0 %v5002
    %5031 = vmatpush.msra.mxu0 %v5001
    %5032 = vmatmul.f32.gmra.mxu0 %v5014
    %v5033 = vpop.f32.mrf.mxu0
    %v5034 = vadd.f32 0.0, %v5033
    %5035 = vdwg.mxu0
    %5036 = vmatpush.msra.mxu0 0.0
    %5037 = vmatpush.msra.mxu0 0.0
    %5038 = vmatpush.msra.mxu0 0.0
    %5039 = vmatpush.msra.mxu0 0.0
    %5040 = vmatpush.msra.mxu0 0.0
    %5041 = vmatpush.msra.mxu0 0.0
    %5042 = vmatpush.msra.mxu0 0.0
    %5043 = vmatpush.msra.mxu0 0.0
    %5044 = vmatpush.msra.mxu0 0.0
    %5045 = vmatpush.msra.mxu0 0.0
    %5046 = vmatpush.msra.mxu0 0.0
    %5047 = vmatpush.msra.mxu0 0.0
    %5048 = vmatpush.msra.mxu0 0.0
    %5049 = vmatpush.msra.mxu0 0.0
    %5050 = vmatpush.msra.mxu0 %v5000
    %5051 = vmatpush.msra.mxu0 %v4999
    %5052 = vmatmul.f32.gmra.mxu0 %v5014
    %v5053 = vpop.f32.mrf.mxu0
    %v5054 = vadd.f32 0.0, %v5053
    %5055 = vdwg.mxu0
    %v5056 = vrcp.pop 8.0
    %v5057 = vmul.f32 8.0, %v5056
    %v5058 = vsub.f32 1.0, %v5057
    %v5059 = vmul.f32 %v5056, %v5058
    %v5060 = vadd.f32 %v5056, %v5059
    %vm5061 = vweird.f32 %v5056
    %v5062 = vsel %vm5061, %v5056, %v5060
    %v5063 = vmul.f32 %v5034, %v5062
    %v5064 = vmax.f32 %v5054, 1.0
    %v5065 = vrcp.pop %v5064
    %v5066 = vmul.f32 %v5064, %v5065
    %v5067 = vsub.f32 1.0, %v5066
    %v5068 = vmul.f32 %v5065, %v5067
    %v5069 = vadd.f32 %v5065, %v5068
    %vm5070 = vweird.f32 %v5064
    %vm5071 = vweird.f32 %v5065
    %vm5072 = vmor %vm5070, %vm5071
    %v5073 = vsel %vm5072, %v5065, %v5069
    %v5074 = vand.u32 2147483647, %v5064
    %vm5075 = vcmp.eq.f32.partialorder %v5074, 8.507059e+37
    %v5076 = vand.u32 %v5064, 2147483648
    %v5077 = vor.u32 1.1754944e-38, %v5076
    %v5078 = vsel %vm5075, %v5077, %v5073
    %v5079 = vmul.f32 %v5034, %v5078
    %5081 = vrot.lane.b32.xlu0 %v5079, 1
    %v5082 = vpop.permute.xlu0 %5081
    %vm5084 = vcmask 7168
    %v5085 = vsel %vm5084, %v5063, %v5082
    %vm5086 = vcmask 9216
    %5087 = vst.msk [vmem:[%s85] sm:$0x3] %vm5086, %v5085
    // Predicated region
    $region162: #{translation_model_forward.1} parent=1 // pred_check
      _
    $region163: #{translation_model_forward.1} parent=1 // pred_check_branch
      %5089 = sbr.rel (0) target = $region165
    $region164: #{translation_model_forward.1} parent=1 // pred_region
      %5091 = vsyncadd [#allocation3], 0
      %s5092 = sshll.u32 [#allocation2], 4
      %s5093 = int_to_ptr.vmem [resolvable:$true] %s5092
      %s5094 = sshll.u32 %s81, 4
      %s5095 = int_to_ptr.hbm [resolvable:$true] %s5094
      %5100 = dma.vmem_to_hbm [thread:$0]  %s5093, 256, %s5095, [#allocation3], 128, 128, 8
    $region165: #{translation_model_forward.1} parent=1 // pred_fallthru
      _
    // Predicated region
    $region166: #{translation_model_forward.1} parent=1 // pred_check
      _
    $region167: #{translation_model_forward.1} parent=1 // pred_check_branch
      %5102 = sbr.rel (0) target = $region169
    $region168: #{translation_model_forward.1} parent=1 // pred_region
      %5104 = vsyncadd [#allocation5], 0
      %s5105 = sshll.u32 [#allocation4], 4
      %s5106 = int_to_ptr.vmem [resolvable:$true] %s5105
      %s5107 = sshll.u32 %s83, 4
      %s5108 = int_to_ptr.hbm [resolvable:$true] %s5107
      %5113 = dma.vmem_to_hbm [thread:$0]  %s5106, 256, %s5108, [#allocation5], 128, 128, 8
    $region169: #{translation_model_forward.1} parent=1 // pred_fallthru
      _
    // Predicated region
    $region170: #{translation_model_forward.1} parent=1 // pred_check
      _
    $region171: #{translation_model_forward.1} parent=1 // pred_check_branch
      %5115 = sbr.rel (0) target = $region173
    $region172: #{translation_model_forward.1} parent=1 // pred_region
      _
    $region173: #{translation_model_forward.1} parent=1 // pred_fallthru
      _
    // Predicated region
    $region174: #{translation_model_forward.1} parent=1 // pred_check
      _
    $region175: #{translation_model_forward.1} parent=1 // pred_check_branch
      %5117 = sbr.rel (0) target = $region177
    $region176: #{translation_model_forward.1} parent=1 // pred_region
      %5119 = dma.done [#allocation3], 256
    $region177: #{translation_model_forward.1} parent=1 // pred_fallthru
      _
    // Predicated region
    $region178: #{translation_model_forward.1} parent=1 // pred_check
      _
    $region179: #{translation_model_forward.1} parent=1 // pred_check_branch
      %5121 = sbr.rel (0) target = $region181
    $region180: #{translation_model_forward.1} parent=1 // pred_region
      %5123 = dma.done [#allocation5], 256
    $region181: #{translation_model_forward.1} parent=1 // pred_fallthru
      _
    // Predicated region
    $region182: #{translation_model_forward.1} parent=1 // pred_check
      _
    $region183: #{translation_model_forward.1} parent=1 // pred_check_branch
      %5125 = sbr.rel (0) target = $region185
    $region184: #{translation_model_forward.1} parent=1 // pred_region
      _
    $region185: #{translation_model_forward.1} parent=1 // pred_fallthru
      _
    %5126 = vsyncpa [#allocation3], 1
    %5127 = vsyncpa [#allocation5], 1

</llo_original>
